<compile_context>
chip_gen: v7x
topology: tpu7x:2x2x1
jax: 0.10.0
libtpu: 0.0.40
codegen_flags: <defaults>
</compile_context>

<pallas_src>
import functools
import jax
import jax.numpy as jnp
from jax import lax
from jax.experimental import pallas as pl
from jax.experimental.pallas import tpu as pltpu

MODEL_DIM = 64
BLOCK_SIZE = 32
N_HEAD = 2
N_LAYER = 4
N_OUTPUT = 3
HEAD_SIZE = MODEL_DIM // N_HEAD
EPS = 1e-5   # PyTorch nn.LayerNorm default

# packed rows per layer in `vecs`: [l1w, l1b, l2w, l2b, proj_bias, ffn_out_bias]
_VECS_PER_LAYER = 6


def _layernorm(x, w, b):
    mu = jnp.mean(x, axis=-1, keepdims=True)
    var = jnp.mean((x - mu) ** 2, axis=-1, keepdims=True)
    return (x - mu) * lax.rsqrt(var + EPS) * w + b


# ---------------------------------------------------------------------------
# Fully fused forward kernel: one grid step per BB sequences.
# ---------------------------------------------------------------------------
def _fused_forward_kernel(BB, T,
                          x_ref,                         # (BB*T, D) f32 embedded input
                          wqkv_ref, wp_ref, w1_ref, w2_ref,   # bf16 stacked weights
                          vecs_ref, b1_ref,              # f32 packed small params
                          pooled_ref, attn_ref):         # (BB, D), (L, H, BB, T*T)
    D = MODEL_DIM
    Hd = HEAD_SIZE
    R = BB * T
    scale = Hd ** -0.5
    bf16 = jnp.bfloat16

    x = x_ref[...]                                       # (R, D) f32 residual stream

    # ---- N_LAYER encoder blocks, statically unrolled ----
    for l in range(N_LAYER):
        base = l * _VECS_PER_LAYER
        l1w = vecs_ref[base + 0:base + 1, :]
        l1b = vecs_ref[base + 1:base + 2, :]
        l2w = vecs_ref[base + 2:base + 3, :]
        l2b = vecs_ref[base + 3:base + 4, :]
        bp = vecs_ref[base + 4:base + 5, :]              # projection bias (1, D)
        b2 = vecs_ref[base + 5:base + 6, :]              # FFN output bias (1, D)
        b1 = b1_ref[l:l + 1, :]                          # FFN hidden bias (1, 4D)

        xn = _layernorm(x, l1w, l1b)
        # fused Q/K/V projection for both heads: one (R, D) x (D, 3D) MXU push (bf16 in, f32 acc)
        qkv = jnp.dot(xn.astype(bf16), wqkv_ref[l],
                      preferred_element_type=jnp.float32)          # (R, 3D)

        sa = bp                                          # broadcasts to (R, D) on first add
        for h in range(N_HEAD):                          # static unroll, N_HEAD == 2
            q = qkv[:, h * Hd:(h + 1) * Hd].reshape(BB, T, Hd)
            k = qkv[:, D + h * Hd: D + (h + 1) * Hd].reshape(BB, T, Hd)
            v = qkv[:, 2 * D + h * Hd: 2 * D + (h + 1) * Hd].reshape(BB, T, Hd)
            # per-sequence q @ k^T, batched over the BB dim (no explicit transpose)
            s = lax.dot_general(q.astype(bf16), k.astype(bf16),
                                (((2,), (2,)), ((0,), (0,))),
                                preferred_element_type=jnp.float32) * scale   # (BB, T, T)
            # NOTE: the local-window mask is computed but never applied in the reference,
            # so the softmax is dense over the full sequence.
            s = s - jnp.max(s, axis=-1, keepdims=True)
            e = jnp.exp(s)
            p = e * pl.reciprocal(jnp.sum(e, axis=-1, keepdims=True), approx=True)
            # lane-dense store of the attention map
            attn_ref[l, h] = p.reshape(BB, T * T)
            o = lax.dot_general(p.astype(bf16), v.astype(bf16),
                                (((2,), (1,)), ((0,), (0,))),
                                preferred_element_type=jnp.float32)           # (BB, T, Hd)
            # cat(heads) @ Wp  ==  sum_h  o_h @ Wp[h*Hd:(h+1)*Hd]  (no concatenate)
            sa = sa + jnp.dot(o.reshape(R, Hd).astype(bf16),
                              wp_ref[l, h * Hd:(h + 1) * Hd, :],
                              preferred_element_type=jnp.float32)
        x = x + sa                                       # residual 1 (dropout = identity)

        xn2 = _layernorm(x, l2w, l2b)
        h1 = jnp.maximum(
            jnp.dot(xn2.astype(bf16), w1_ref[l], preferred_element_type=jnp.float32) + b1,
            0.0)
        ff = jnp.dot(h1.astype(bf16), w2_ref[l], preferred_element_type=jnp.float32) + b2
        x = x + ff                                       # residual 2 (dropout = identity)

    # ---- final LayerNorm + mean pool over the sequence ----
    fl = N_LAYER * _VECS_PER_LAYER
    lfw = vecs_ref[fl:fl + 1, :]
    lfb = vecs_ref[fl + 1:fl + 2, :]
    xf = _layernorm(x, lfw, lfb)                         # (R, D)
    pooled_ref[...] = jnp.mean(xf.reshape(BB, T, D), axis=1)   # (BB, D)


def _pick_bb(B, T):
    """Sequences per grid step: fill ~256 MXU rows, keep sublane-friendly block shapes."""
    bb = max(1, min(B, max(1, 256 // T)))
    if bb < B:
        # multi-step grid: pooled/attn block dims must be multiples of 8 sublanes
        bb = max(8, (bb // 8) * 8)
    elif B >= 16 and (B // 2) % 8 == 0 and (B // 2) * T >= 128:
        # keep >=2 grid steps so v7x's second TensorCore gets work (no-op for the MXU fill)
        bb = B // 2
    return bb


# ---------------------------------------------------------------------------
# Wrapper: single pallas_call for the whole forward.
# ---------------------------------------------------------------------------
def sparse_encoder_forward(params, idx):
    B, T = idx.shape
    D = MODEL_DIM
    idx = idx.astype(jnp.int32)

    BB = _pick_bb(B, T)
    n_steps = pl.cdiv(B, BB)
    B_pad = n_steps * BB
    if B_pad != B:
        idx = jnp.concatenate(
            [idx, jnp.zeros((B_pad - B, T), jnp.int32)], axis=0)

    # Embedding gather + positional add hoisted out of the kernel (keeps tok_emb out of
    # VMEM and off the per-step critical path).
    x_emb = jnp.take(params["tok_emb"], idx, axis=0) + params["pos_emb"][:T][None, :, :]
    x_emb = x_emb.reshape(B_pad * T, D).astype(jnp.float32)

    bf = jnp.bfloat16
    wqkv = params["wqkv"].astype(bf)      # (L, D, 3D)
    wp = params["wp"].astype(bf)          # (L, D, D)
    w1 = params["w1"].astype(bf)          # (L, D, 4D)
    w2 = params["w2"].astype(bf)          # (L, 4D, D)
    vecs = params["vecs"]                 # (L*6 + 2, D) f32
    b1s = params["b1s"]                   # (L, 4D) f32

    def wspec(a):
        # whole array as one block, constant block index -> loaded once, stays in VMEM
        n = a.ndim
        return pl.BlockSpec(a.shape, lambda i, _n=n: (0,) * _n)

    grid_spec = pltpu.PrefetchScalarGridSpec(
        num_scalar_prefetch=0,
        grid=(n_steps,),
        in_specs=[
            pl.BlockSpec((BB * T, D), lambda i: (i, 0)),        # activations block
            wspec(wqkv), wspec(wp), wspec(w1), wspec(w2),
            wspec(vecs), wspec(b1s),
        ],
        out_specs=(
            pl.BlockSpec((BB, D), lambda i: (i, 0)),
            pl.BlockSpec((N_LAYER, N_HEAD, BB, T * T), lambda i: (0, 0, i, 0)),
        ),
    )
    out_shape = (
        jax.ShapeDtypeStruct((B_pad, D), jnp.float32),
        jax.ShapeDtypeStruct((N_LAYER, N_HEAD, B_pad, T * T), jnp.float32),
    )

    kernel = functools.partial(_fused_forward_kernel, BB, T)
    pooled, attn = pl.pallas_call(
        kernel,
        grid_spec=grid_spec,
        out_shape=out_shape,
        compiler_params=pltpu.CompilerParams(dimension_semantics=("parallel",)),
    )(x_emb, wqkv, wp, w1, w2, vecs, b1s)

    pooled = pooled[:B]
    attn = attn[:, :, :B].reshape(N_LAYER, N_HEAD, B, T, T)
    # per-layer maps, each (H, B, T, T) == torch.stack over heads
    attention_maps = [attn[l] for l in range(N_LAYER)]
    return pooled, attention_maps


# ---------------------------------------------------------------------------
# Parameter init (deterministic, matching the module's _init_weights scheme),
# with weights pre-stacked over layers, Q/K/V pre-fused, and small per-layer
# vectors packed into `vecs` / `b1s` for the kernel.
# ---------------------------------------------------------------------------
def init_params(key, vocab_size):
    std = 0.02
    keys = iter(jax.random.split(key, 64))
    D = MODEL_DIM

    def nrm(shape):
        return jax.random.normal(next(keys), shape, jnp.float32) * std

    params = {
        "tok_emb": nrm((vocab_size, D)),
        "pos_emb": nrm((BLOCK_SIZE, D)),
    }

    ones = jnp.ones((D,), jnp.float32)
    zeros = jnp.zeros((D,), jnp.float32)

    wqkv, wp, w1, w2, b1s = [], [], [], [], []
    vec_rows = []
    for _ in range(N_LAYER):
        wq = nrm((N_HEAD, D, HEAD_SIZE))
        wk = nrm((N_HEAD, D, HEAD_SIZE))
        wv = nrm((N_HEAD, D, HEAD_SIZE))

        def heads_cat(w):  # (H, D, Hd) -> (D, H*Hd)
            return jnp.concatenate([w[h] for h in range(N_HEAD)], axis=-1)

        # fused QKV columns: [ q_h0 q_h1 | k_h0 k_h1 | v_h0 v_h1 ]
        wqkv.append(jnp.concatenate([heads_cat(wq), heads_cat(wk), heads_cat(wv)], axis=-1))
        wp.append(nrm((D, D)))
        w1.append(nrm((D, 4 * D)))
        w2.append(nrm((4 * D, D)))
        b1s.append(jnp.zeros((4 * D,), jnp.float32))
        # packed (D,)-vectors per layer: l1w, l1b, l2w, l2b, proj bias, ffn-out bias
        vec_rows += [ones, zeros, ones, zeros, zeros, zeros]
    vec_rows += [ones, zeros]   # final LayerNorm weight / bias

    params.update(
        wqkv=jnp.stack(wqkv), wp=jnp.stack(wp), w1=jnp.stack(w1), w2=jnp.stack(w2),
        b1s=jnp.stack(b1s), vecs=jnp.stack(vec_rows),
    )

    # classifier (Linear(model_dim, n_output)) exists in __init__ but is unused in forward()
    params["clf_w"] = nrm((D, N_OUTPUT))
    params["clf_b"] = jnp.zeros((N_OUTPUT,), jnp.float32)
    return params


if __name__ == "__main__":
    key = jax.random.PRNGKey(0)
    pkey, dkey = jax.random.split(key)

    vocab_size = 20
    B, T = 2, 8                                           # T <= block_size (32)

    params = init_params(pkey, vocab_size)
    idx = jax.random.randint(dkey, (B, T), 0, vocab_size, dtype=jnp.int32)

    pooled, attention_maps = sparse_encoder_forward(params, idx)
    pooled = jax.block_until_ready(pooled)
    attention_maps = [jax.block_until_ready(a) for a in attention_maps]

    assert pooled.shape == (B, MODEL_DIM)
    assert len(attention_maps) == N_LAYER
    assert all(a.shape == (N_HEAD, B, T, T) for a in attention_maps)
    # attention rows sum to 1 (dense softmax; the local-window mask is unused, as in the
    # reference).  Tolerance accounts for bf16 MXU operands + EUP approx reciprocal.
    assert jnp.allclose(jnp.sum(attention_maps[0], axis=-1), 1.0, atol=5e-3)
    assert jnp.all(jnp.isfinite(pooled))

    print("KERNEL_OK")
</pallas_src>

<mosaic_0001>
module attributes {stable_mosaic.version = 11 : i64} {
  func.func @_fused_forward_kernel(%arg0: i32, %arg1: memref<16x64xf32, #tpu.memory_space<vmem>>, %arg2: memref<4x64x192xbf16, #tpu.memory_space<vmem>>, %arg3: memref<4x64x64xbf16, #tpu.memory_space<vmem>>, %arg4: memref<4x64x256xbf16, #tpu.memory_space<vmem>>, %arg5: memref<4x256x64xbf16, #tpu.memory_space<vmem>>, %arg6: memref<26x64xf32, #tpu.memory_space<vmem>>, %arg7: memref<4x256xf32, #tpu.memory_space<vmem>>, %arg8: memref<2x64xf32, #tpu.memory_space<vmem>>, %arg9: memref<4x2x2x64xf32, #tpu.memory_space<vmem>>) attributes {dimension_semantics = [#tpu.dimension_semantics<parallel>], iteration_bounds = array<i64: 1>, scalar_prefetch = 0 : i64, scratch_operands = 0 : i64, tpu.core_type = #tpu.core_type<tc>, window_params = [{transform_indices = @transform_0, window_bounds = array<i64: 16, 64>}, {pipeline_mode = #tpu.pipeline_mode<synchronous>, transform_indices = @transform_1, window_bounds = array<i64: 4, 64, 192>}, {pipeline_mode = #tpu.pipeline_mode<synchronous>, transform_indices = @transform_2, window_bounds = array<i64: 4, 64, 64>}, {pipeline_mode = #tpu.pipeline_mode<synchronous>, transform_indices = @transform_3, window_bounds = array<i64: 4, 64, 256>}, {pipeline_mode = #tpu.pipeline_mode<synchronous>, transform_indices = @transform_4, window_bounds = array<i64: 4, 256, 64>}, {pipeline_mode = #tpu.pipeline_mode<synchronous>, transform_indices = @transform_5, window_bounds = array<i64: 26, 64>}, {pipeline_mode = #tpu.pipeline_mode<synchronous>, transform_indices = @transform_6, window_bounds = array<i64: 4, 256>}, {transform_indices = @transform_7, window_bounds = array<i64: 2, 64>}, {transform_indices = @transform_8, window_bounds = array<i64: 4, 2, 2, 64>}]} {
    %c0 = arith.constant 0 : index
    %c0_0 = arith.constant 0 : index
    %0 = vector.load %arg1[%c0, %c0_0] : memref<16x64xf32, #tpu.memory_space<vmem>>, vector<16x64xf32>
    %c0_1 = arith.constant 0 : index
    %c0_2 = arith.constant 0 : index
    %1 = vector.load %arg6[%c0_1, %c0_2] : memref<26x64xf32, #tpu.memory_space<vmem>>, vector<1x64xf32>
    %c1 = arith.constant 1 : index
    %c0_3 = arith.constant 0 : index
    %2 = vector.load %arg6[%c1, %c0_3] : memref<26x64xf32, #tpu.memory_space<vmem>>, vector<1x64xf32>
    %c2 = arith.constant 2 : index
    %c0_4 = arith.constant 0 : index
    %3 = vector.load %arg6[%c2, %c0_4] : memref<26x64xf32, #tpu.memory_space<vmem>>, vector<1x64xf32>
    %c3 = arith.constant 3 : index
    %c0_5 = arith.constant 0 : index
    %4 = vector.load %arg6[%c3, %c0_5] : memref<26x64xf32, #tpu.memory_space<vmem>>, vector<1x64xf32>
    %c4 = arith.constant 4 : index
    %c0_6 = arith.constant 0 : index
    %5 = vector.load %arg6[%c4, %c0_6] : memref<26x64xf32, #tpu.memory_space<vmem>>, vector<1x64xf32>
    %c5 = arith.constant 5 : index
    %c0_7 = arith.constant 0 : index
    %6 = vector.load %arg6[%c5, %c0_7] : memref<26x64xf32, #tpu.memory_space<vmem>>, vector<1x64xf32>
    %c0_8 = arith.constant 0 : index
    %c0_9 = arith.constant 0 : index
    %7 = vector.load %arg7[%c0_8, %c0_9] : memref<4x256xf32, #tpu.memory_space<vmem>>, vector<1x256xf32>
    %cst = arith.constant dense<0.000000e+00> : vector<16xf32>
    %8 = vector.multi_reduction <add>, %0, %cst [1] : vector<16x64xf32> to vector<16xf32>
    %9 = vector.shape_cast %8 : vector<16xf32> to vector<16x1xf32>
    %cst_10 = arith.constant 6.400000e+01 : f32
    %10 = vector.broadcast %cst_10 : f32 to vector<16x1xf32>
    %11 = arith.divf %9, %10 : vector<16x1xf32>
    %12 = vector.broadcast %11 : vector<16x1xf32> to vector<16x64xf32>
    %13 = arith.subf %0, %12 : vector<16x64xf32>
    %14 = arith.mulf %13, %13 : vector<16x64xf32>
    %cst_11 = arith.constant dense<0.000000e+00> : vector<16xf32>
    %15 = vector.multi_reduction <add>, %14, %cst_11 [1] : vector<16x64xf32> to vector<16xf32>
    %16 = vector.shape_cast %15 : vector<16xf32> to vector<16x1xf32>
    %cst_12 = arith.constant 6.400000e+01 : f32
    %17 = vector.broadcast %cst_12 : f32 to vector<16x1xf32>
    %18 = arith.divf %16, %17 : vector<16x1xf32>
    %19 = vector.broadcast %11 : vector<16x1xf32> to vector<16x64xf32>
    %20 = arith.subf %0, %19 : vector<16x64xf32>
    %cst_13 = arith.constant 9.99999974E-6 : f32
    %21 = vector.broadcast %cst_13 : f32 to vector<16x1xf32>
    %22 = arith.addf %18, %21 : vector<16x1xf32>
    %23 = math.rsqrt %22 : vector<16x1xf32>
    %24 = vector.broadcast %23 : vector<16x1xf32> to vector<16x64xf32>
    %25 = arith.mulf %20, %24 : vector<16x64xf32>
    %26 = vector.broadcast %1 : vector<1x64xf32> to vector<16x64xf32>
    %27 = arith.mulf %25, %26 : vector<16x64xf32>
    %28 = vector.broadcast %2 : vector<1x64xf32> to vector<16x64xf32>
    %29 = arith.addf %27, %28 : vector<16x64xf32>
    %30 = arith.truncf %29 : vector<16x64xf32> to vector<16x64xbf16>
    %c0_14 = arith.constant 0 : index
    %c0_15 = arith.constant 0 : index
    %c0_16 = arith.constant 0 : index
    %31 = vector.load %arg2[%c0_14, %c0_15, %c0_16] : memref<4x64x192xbf16, #tpu.memory_space<vmem>>, vector<1x64x192xbf16>
    %32 = vector.shape_cast %31 : vector<1x64x192xbf16> to vector<64x192xbf16>
    %cst_17 = arith.constant dense<0.000000e+00> : vector<16x192xf32>
    %33 = tpu.matmul %30, %32, %cst_17 {dimension_numbers = #tpu.dot_dimension_numbers<[1], [0], [0], [1], [0, 0, 1, 1], [], []>} : vector<16x64xbf16>, vector<64x192xbf16>, vector<16x192xf32> -> vector<16x192xf32>
    %34 = vector.extract_strided_slice %33 {offsets = [0, 0], sizes = [16, 32], strides = [1, 1]} : vector<16x192xf32> to vector<16x32xf32>
    %35 = vector.shape_cast %34 : vector<16x32xf32> to vector<2x8x32xf32>
    %36 = vector.extract_strided_slice %33 {offsets = [0, 64], sizes = [16, 32], strides = [1, 1]} : vector<16x192xf32> to vector<16x32xf32>
    %37 = vector.shape_cast %36 : vector<16x32xf32> to vector<2x8x32xf32>
    %38 = vector.extract_strided_slice %33 {offsets = [0, 128], sizes = [16, 32], strides = [1, 1]} : vector<16x192xf32> to vector<16x32xf32>
    %39 = vector.shape_cast %38 : vector<16x32xf32> to vector<2x8x32xf32>
    %40 = arith.truncf %35 : vector<2x8x32xf32> to vector<2x8x32xbf16>
    %41 = arith.truncf %37 : vector<2x8x32xf32> to vector<2x8x32xbf16>
    %cst_18 = arith.constant dense<0.000000e+00> : vector<2x8x8xf32>
    %42 = tpu.matmul %40, %41, %cst_18 {dimension_numbers = #tpu.dot_dimension_numbers<[2], [2], [1], [1], [0, 0, 0, 1, 1, 1], [0], [0]>} : vector<2x8x32xbf16>, vector<2x8x32xbf16>, vector<2x8x8xf32> -> vector<2x8x8xf32>
    %cst_19 = arith.constant 0.176776692 : f32
    %43 = vector.broadcast %cst_19 : f32 to vector<2x8x8xf32>
    %44 = arith.mulf %42, %43 : vector<2x8x8xf32>
    %cst_20 = arith.constant dense<0xFF800000> : vector<2x8xf32>
    %45 = vector.multi_reduction <maximumf>, %44, %cst_20 [2] : vector<2x8x8xf32> to vector<2x8xf32>
    %46 = vector.shape_cast %45 : vector<2x8xf32> to vector<2x8x1xf32>
    %47 = vector.broadcast %46 : vector<2x8x1xf32> to vector<2x8x8xf32>
    %48 = arith.subf %44, %47 : vector<2x8x8xf32>
    %49 = math.exp %48 : vector<2x8x8xf32>
    %cst_21 = arith.constant dense<0.000000e+00> : vector<2x8xf32>
    %50 = vector.multi_reduction <add>, %49, %cst_21 [2] : vector<2x8x8xf32> to vector<2x8xf32>
    %51 = vector.shape_cast %50 : vector<2x8xf32> to vector<2x8x1xf32>
    %52 = tpu.reciprocal %51 {approx = true} : vector<2x8x1xf32> -> vector<2x8x1xf32>
    %53 = vector.broadcast %52 : vector<2x8x1xf32> to vector<2x8x8xf32>
    %54 = arith.mulf %49, %53 : vector<2x8x8xf32>
    %55 = vector.shape_cast %54 : vector<2x8x8xf32> to vector<2x64xf32>
    %c0_22 = arith.constant 0 : index
    %c0_23 = arith.constant 0 : index
    %c0_24 = arith.constant 0 : index
    %c0_25 = arith.constant 0 : index
    %56 = vector.load %arg9[%c0_22, %c0_23, %c0_24, %c0_25] : memref<4x2x2x64xf32, #tpu.memory_space<vmem>>, vector<1x1x2x64xf32>
    %57 = vector.shape_cast %56 : vector<1x1x2x64xf32> to vector<2x64xf32>
    %58 = vector.shape_cast %55 : vector<2x64xf32> to vector<1x1x2x64xf32>
    tpu.vector_store %arg9[%c0_22, %c0_23, %c0_24, %c0_25], %58 {strides = array<i32>} : memref<4x2x2x64xf32, #tpu.memory_space<vmem>>, vector<1x1x2x64xf32>,
    %59 = arith.truncf %54 : vector<2x8x8xf32> to vector<2x8x8xbf16>
    %60 = arith.truncf %39 : vector<2x8x32xf32> to vector<2x8x32xbf16>
    %cst_26 = arith.constant dense<0.000000e+00> : vector<2x8x32xf32>
    %61 = tpu.matmul %59, %60, %cst_26 {dimension_numbers = #tpu.dot_dimension_numbers<[2], [1], [1], [2], [0, 0, 0, 1, 1, 2], [0], [0]>} : vector<2x8x8xbf16>, vector<2x8x32xbf16>, vector<2x8x32xf32> -> vector<2x8x32xf32>
    %62 = vector.shape_cast %61 : vector<2x8x32xf32> to vector<16x32xf32>
    %63 = arith.truncf %62 : vector<16x32xf32> to vector<16x32xbf16>
    %c0_27 = arith.constant 0 : index
    %c0_28 = arith.constant 0 : index
    %c0_29 = arith.constant 0 : index
    %64 = vector.load %arg3[%c0_27, %c0_28, %c0_29] : memref<4x64x64xbf16, #tpu.memory_space<vmem>>, vector<1x32x64xbf16>
    %65 = vector.shape_cast %64 : vector<1x32x64xbf16> to vector<32x64xbf16>
    %cst_30 = arith.constant dense<0.000000e+00> : vector<16x64xf32>
    %66 = tpu.matmul %63, %65, %cst_30 {dimension_numbers = #tpu.dot_dimension_numbers<[1], [0], [0], [1], [0, 0, 1, 1], [], []>} : vector<16x32xbf16>, vector<32x64xbf16>, vector<16x64xf32> -> vector<16x64xf32>
    %67 = vector.broadcast %5 : vector<1x64xf32> to vector<16x64xf32>
    %68 = arith.addf %67, %66 : vector<16x64xf32>
    %69 = vector.extract_strided_slice %33 {offsets = [0, 32], sizes = [16, 32], strides = [1, 1]} : vector<16x192xf32> to vector<16x32xf32>
    %70 = vector.shape_cast %69 : vector<16x32xf32> to vector<2x8x32xf32>
    %71 = vector.extract_strided_slice %33 {offsets = [0, 96], sizes = [16, 32], strides = [1, 1]} : vector<16x192xf32> to vector<16x32xf32>
    %72 = vector.shape_cast %71 : vector<16x32xf32> to vector<2x8x32xf32>
    %73 = vector.extract_strided_slice %33 {offsets = [0, 160], sizes = [16, 32], strides = [1, 1]} : vector<16x192xf32> to vector<16x32xf32>
    %74 = vector.shape_cast %73 : vector<16x32xf32> to vector<2x8x32xf32>
    %75 = arith.truncf %70 : vector<2x8x32xf32> to vector<2x8x32xbf16>
    %76 = arith.truncf %72 : vector<2x8x32xf32> to vector<2x8x32xbf16>
    %cst_31 = arith.constant dense<0.000000e+00> : vector<2x8x8xf32>
    %77 = tpu.matmul %75, %76, %cst_31 {dimension_numbers = #tpu.dot_dimension_numbers<[2], [2], [1], [1], [0, 0, 0, 1, 1, 1], [0], [0]>} : vector<2x8x32xbf16>, vector<2x8x32xbf16>, vector<2x8x8xf32> -> vector<2x8x8xf32>
    %cst_32 = arith.constant 0.176776692 : f32
    %78 = vector.broadcast %cst_32 : f32 to vector<2x8x8xf32>
    %79 = arith.mulf %77, %78 : vector<2x8x8xf32>
    %cst_33 = arith.constant dense<0xFF800000> : vector<2x8xf32>
    %80 = vector.multi_reduction <maximumf>, %79, %cst_33 [2] : vector<2x8x8xf32> to vector<2x8xf32>
    %81 = vector.shape_cast %80 : vector<2x8xf32> to vector<2x8x1xf32>
    %82 = vector.broadcast %81 : vector<2x8x1xf32> to vector<2x8x8xf32>
    %83 = arith.subf %79, %82 : vector<2x8x8xf32>
    %84 = math.exp %83 : vector<2x8x8xf32>
    %cst_34 = arith.constant dense<0.000000e+00> : vector<2x8xf32>
    %85 = vector.multi_reduction <add>, %84, %cst_34 [2] : vector<2x8x8xf32> to vector<2x8xf32>
    %86 = vector.shape_cast %85 : vector<2x8xf32> to vector<2x8x1xf32>
    %87 = tpu.reciprocal %86 {approx = true} : vector<2x8x1xf32> -> vector<2x8x1xf32>
    %88 = vector.broadcast %87 : vector<2x8x1xf32> to vector<2x8x8xf32>
    %89 = arith.mulf %84, %88 : vector<2x8x8xf32>
    %90 = vector.shape_cast %89 : vector<2x8x8xf32> to vector<2x64xf32>
    %c0_35 = arith.constant 0 : index
    %c1_36 = arith.constant 1 : index
    %c0_37 = arith.constant 0 : index
    %c0_38 = arith.constant 0 : index
    %91 = vector.load %arg9[%c0_35, %c1_36, %c0_37, %c0_38] : memref<4x2x2x64xf32, #tpu.memory_space<vmem>>, vector<1x1x2x64xf32>
    %92 = vector.shape_cast %91 : vector<1x1x2x64xf32> to vector<2x64xf32>
    %93 = vector.shape_cast %90 : vector<2x64xf32> to vector<1x1x2x64xf32>
    tpu.vector_store %arg9[%c0_35, %c1_36, %c0_37, %c0_38], %93 {strides = array<i32>} : memref<4x2x2x64xf32, #tpu.memory_space<vmem>>, vector<1x1x2x64xf32>,
    %94 = arith.truncf %89 : vector<2x8x8xf32> to vector<2x8x8xbf16>
    %95 = arith.truncf %74 : vector<2x8x32xf32> to vector<2x8x32xbf16>
    %cst_39 = arith.constant dense<0.000000e+00> : vector<2x8x32xf32>
    %96 = tpu.matmul %94, %95, %cst_39 {dimension_numbers = #tpu.dot_dimension_numbers<[2], [1], [1], [2], [0, 0, 0, 1, 1, 2], [0], [0]>} : vector<2x8x8xbf16>, vector<2x8x32xbf16>, vector<2x8x32xf32> -> vector<2x8x32xf32>
    %97 = vector.shape_cast %96 : vector<2x8x32xf32> to vector<16x32xf32>
    %98 = arith.truncf %97 : vector<16x32xf32> to vector<16x32xbf16>
    %c0_40 = arith.constant 0 : index
    %c32 = arith.constant 32 : index
    %c0_41 = arith.constant 0 : index
    %99 = vector.load %arg3[%c0_40, %c32, %c0_41] : memref<4x64x64xbf16, #tpu.memory_space<vmem>>, vector<1x32x64xbf16>
    %100 = vector.shape_cast %99 : vector<1x32x64xbf16> to vector<32x64xbf16>
    %cst_42 = arith.constant dense<0.000000e+00> : vector<16x64xf32>
    %101 = tpu.matmul %98, %100, %cst_42 {dimension_numbers = #tpu.dot_dimension_numbers<[1], [0], [0], [1], [0, 0, 1, 1], [], []>} : vector<16x32xbf16>, vector<32x64xbf16>, vector<16x64xf32> -> vector<16x64xf32>
    %102 = arith.addf %68, %101 : vector<16x64xf32>
    %103 = arith.addf %0, %102 : vector<16x64xf32>
    %cst_43 = arith.constant dense<0.000000e+00> : vector<16xf32>
    %104 = vector.multi_reduction <add>, %103, %cst_43 [1] : vector<16x64xf32> to vector<16xf32>
    %105 = vector.shape_cast %104 : vector<16xf32> to vector<16x1xf32>
    %cst_44 = arith.constant 6.400000e+01 : f32
    %106 = vector.broadcast %cst_44 : f32 to vector<16x1xf32>
    %107 = arith.divf %105, %106 : vector<16x1xf32>
    %108 = vector.broadcast %107 : vector<16x1xf32> to vector<16x64xf32>
    %109 = arith.subf %103, %108 : vector<16x64xf32>
    %110 = arith.mulf %109, %109 : vector<16x64xf32>
    %cst_45 = arith.constant dense<0.000000e+00> : vector<16xf32>
    %111 = vector.multi_reduction <add>, %110, %cst_45 [1] : vector<16x64xf32> to vector<16xf32>
    %112 = vector.shape_cast %111 : vector<16xf32> to vector<16x1xf32>
    %cst_46 = arith.constant 6.400000e+01 : f32
    %113 = vector.broadcast %cst_46 : f32 to vector<16x1xf32>
    %114 = arith.divf %112, %113 : vector<16x1xf32>
    %115 = vector.broadcast %107 : vector<16x1xf32> to vector<16x64xf32>
    %116 = arith.subf %103, %115 : vector<16x64xf32>
    %cst_47 = arith.constant 9.99999974E-6 : f32
    %117 = vector.broadcast %cst_47 : f32 to vector<16x1xf32>
    %118 = arith.addf %114, %117 : vector<16x1xf32>
    %119 = math.rsqrt %118 : vector<16x1xf32>
    %120 = vector.broadcast %119 : vector<16x1xf32> to vector<16x64xf32>
    %121 = arith.mulf %116, %120 : vector<16x64xf32>
    %122 = vector.broadcast %3 : vector<1x64xf32> to vector<16x64xf32>
    %123 = arith.mulf %121, %122 : vector<16x64xf32>
    %124 = vector.broadcast %4 : vector<1x64xf32> to vector<16x64xf32>
    %125 = arith.addf %123, %124 : vector<16x64xf32>
    %126 = arith.truncf %125 : vector<16x64xf32> to vector<16x64xbf16>
    %c0_48 = arith.constant 0 : index
    %c0_49 = arith.constant 0 : index
    %c0_50 = arith.constant 0 : index
    %127 = vector.load %arg4[%c0_48, %c0_49, %c0_50] : memref<4x64x256xbf16, #tpu.memory_space<vmem>>, vector<1x64x256xbf16>
    %128 = vector.shape_cast %127 : vector<1x64x256xbf16> to vector<64x256xbf16>
    %cst_51 = arith.constant dense<0.000000e+00> : vector<16x256xf32>
    %129 = tpu.matmul %126, %128, %cst_51 {dimension_numbers = #tpu.dot_dimension_numbers<[1], [0], [0], [1], [0, 0, 1, 1], [], []>} : vector<16x64xbf16>, vector<64x256xbf16>, vector<16x256xf32> -> vector<16x256xf32>
    %130 = vector.broadcast %7 : vector<1x256xf32> to vector<16x256xf32>
    %131 = arith.addf %129, %130 : vector<16x256xf32>
    %cst_52 = arith.constant 0.000000e+00 : f32
    %132 = vector.broadcast %cst_52 : f32 to vector<16x256xf32>
    %133 = arith.maximumf %131, %132 : vector<16x256xf32>
    %134 = arith.truncf %133 : vector<16x256xf32> to vector<16x256xbf16>
    %c0_53 = arith.constant 0 : index
    %c0_54 = arith.constant 0 : index
    %c0_55 = arith.constant 0 : index
    %135 = vector.load %arg5[%c0_53, %c0_54, %c0_55] : memref<4x256x64xbf16, #tpu.memory_space<vmem>>, vector<1x256x64xbf16>
    %136 = vector.shape_cast %135 : vector<1x256x64xbf16> to vector<256x64xbf16>
    %cst_56 = arith.constant dense<0.000000e+00> : vector<16x64xf32>
    %137 = tpu.matmul %134, %136, %cst_56 {dimension_numbers = #tpu.dot_dimension_numbers<[1], [0], [0], [1], [0, 0, 1, 1], [], []>} : vector<16x256xbf16>, vector<256x64xbf16>, vector<16x64xf32> -> vector<16x64xf32>
    %138 = vector.broadcast %6 : vector<1x64xf32> to vector<16x64xf32>
    %139 = arith.addf %137, %138 : vector<16x64xf32>
    %140 = arith.addf %103, %139 : vector<16x64xf32>
    %c6 = arith.constant 6 : index
    %c0_57 = arith.constant 0 : index
    %141 = vector.load %arg6[%c6, %c0_57] : memref<26x64xf32, #tpu.memory_space<vmem>>, vector<1x64xf32>
    %c7 = arith.constant 7 : index
    %c0_58 = arith.constant 0 : index
    %142 = vector.load %arg6[%c7, %c0_58] : memref<26x64xf32, #tpu.memory_space<vmem>>, vector<1x64xf32>
    %c8 = arith.constant 8 : index
    %c0_59 = arith.constant 0 : index
    %143 = vector.load %arg6[%c8, %c0_59] : memref<26x64xf32, #tpu.memory_space<vmem>>, vector<1x64xf32>
    %c9 = arith.constant 9 : index
    %c0_60 = arith.constant 0 : index
    %144 = vector.load %arg6[%c9, %c0_60] : memref<26x64xf32, #tpu.memory_space<vmem>>, vector<1x64xf32>
    %c10 = arith.constant 10 : index
    %c0_61 = arith.constant 0 : index
    %145 = vector.load %arg6[%c10, %c0_61] : memref<26x64xf32, #tpu.memory_space<vmem>>, vector<1x64xf32>
    %c11 = arith.constant 11 : index
    %c0_62 = arith.constant 0 : index
    %146 = vector.load %arg6[%c11, %c0_62] : memref<26x64xf32, #tpu.memory_space<vmem>>, vector<1x64xf32>
    %c1_63 = arith.constant 1 : index
    %c0_64 = arith.constant 0 : index
    %147 = vector.load %arg7[%c1_63, %c0_64] : memref<4x256xf32, #tpu.memory_space<vmem>>, vector<1x256xf32>
    %cst_65 = arith.constant dense<0.000000e+00> : vector<16xf32>
    %148 = vector.multi_reduction <add>, %140, %cst_65 [1] : vector<16x64xf32> to vector<16xf32>
    %149 = vector.shape_cast %148 : vector<16xf32> to vector<16x1xf32>
    %cst_66 = arith.constant 6.400000e+01 : f32
    %150 = vector.broadcast %cst_66 : f32 to vector<16x1xf32>
    %151 = arith.divf %149, %150 : vector<16x1xf32>
    %152 = vector.broadcast %151 : vector<16x1xf32> to vector<16x64xf32>
    %153 = arith.subf %140, %152 : vector<16x64xf32>
    %154 = arith.mulf %153, %153 : vector<16x64xf32>
    %cst_67 = arith.constant dense<0.000000e+00> : vector<16xf32>
    %155 = vector.multi_reduction <add>, %154, %cst_67 [1] : vector<16x64xf32> to vector<16xf32>
    %156 = vector.shape_cast %155 : vector<16xf32> to vector<16x1xf32>
    %cst_68 = arith.constant 6.400000e+01 : f32
    %157 = vector.broadcast %cst_68 : f32 to vector<16x1xf32>
    %158 = arith.divf %156, %157 : vector<16x1xf32>
    %159 = vector.broadcast %151 : vector<16x1xf32> to vector<16x64xf32>
    %160 = arith.subf %140, %159 : vector<16x64xf32>
    %cst_69 = arith.constant 9.99999974E-6 : f32
    %161 = vector.broadcast %cst_69 : f32 to vector<16x1xf32>
    %162 = arith.addf %158, %161 : vector<16x1xf32>
    %163 = math.rsqrt %162 : vector<16x1xf32>
    %164 = vector.broadcast %163 : vector<16x1xf32> to vector<16x64xf32>
    %165 = arith.mulf %160, %164 : vector<16x64xf32>
    %166 = vector.broadcast %141 : vector<1x64xf32> to vector<16x64xf32>
    %167 = arith.mulf %165, %166 : vector<16x64xf32>
    %168 = vector.broadcast %142 : vector<1x64xf32> to vector<16x64xf32>
    %169 = arith.addf %167, %168 : vector<16x64xf32>
    %170 = arith.truncf %169 : vector<16x64xf32> to vector<16x64xbf16>
    %c1_70 = arith.constant 1 : index
    %c0_71 = arith.constant 0 : index
    %c0_72 = arith.constant 0 : index
    %171 = vector.load %arg2[%c1_70, %c0_71, %c0_72] : memref<4x64x192xbf16, #tpu.memory_space<vmem>>, vector<1x64x192xbf16>
    %172 = vector.shape_cast %171 : vector<1x64x192xbf16> to vector<64x192xbf16>
    %cst_73 = arith.constant dense<0.000000e+00> : vector<16x192xf32>
    %173 = tpu.matmul %170, %172, %cst_73 {dimension_numbers = #tpu.dot_dimension_numbers<[1], [0], [0], [1], [0, 0, 1, 1], [], []>} : vector<16x64xbf16>, vector<64x192xbf16>, vector<16x192xf32> -> vector<16x192xf32>
    %174 = vector.extract_strided_slice %173 {offsets = [0, 0], sizes = [16, 32], strides = [1, 1]} : vector<16x192xf32> to vector<16x32xf32>
    %175 = vector.shape_cast %174 : vector<16x32xf32> to vector<2x8x32xf32>
    %176 = vector.extract_strided_slice %173 {offsets = [0, 64], sizes = [16, 32], strides = [1, 1]} : vector<16x192xf32> to vector<16x32xf32>
    %177 = vector.shape_cast %176 : vector<16x32xf32> to vector<2x8x32xf32>
    %178 = vector.extract_strided_slice %173 {offsets = [0, 128], sizes = [16, 32], strides = [1, 1]} : vector<16x192xf32> to vector<16x32xf32>
    %179 = vector.shape_cast %178 : vector<16x32xf32> to vector<2x8x32xf32>
    %180 = arith.truncf %175 : vector<2x8x32xf32> to vector<2x8x32xbf16>
    %181 = arith.truncf %177 : vector<2x8x32xf32> to vector<2x8x32xbf16>
    %cst_74 = arith.constant dense<0.000000e+00> : vector<2x8x8xf32>
    %182 = tpu.matmul %180, %181, %cst_74 {dimension_numbers = #tpu.dot_dimension_numbers<[2], [2], [1], [1], [0, 0, 0, 1, 1, 1], [0], [0]>} : vector<2x8x32xbf16>, vector<2x8x32xbf16>, vector<2x8x8xf32> -> vector<2x8x8xf32>
    %cst_75 = arith.constant 0.176776692 : f32
    %183 = vector.broadcast %cst_75 : f32 to vector<2x8x8xf32>
    %184 = arith.mulf %182, %183 : vector<2x8x8xf32>
    %cst_76 = arith.constant dense<0xFF800000> : vector<2x8xf32>
    %185 = vector.multi_reduction <maximumf>, %184, %cst_76 [2] : vector<2x8x8xf32> to vector<2x8xf32>
    %186 = vector.shape_cast %185 : vector<2x8xf32> to vector<2x8x1xf32>
    %187 = vector.broadcast %186 : vector<2x8x1xf32> to vector<2x8x8xf32>
    %188 = arith.subf %184, %187 : vector<2x8x8xf32>
    %189 = math.exp %188 : vector<2x8x8xf32>
    %cst_77 = arith.constant dense<0.000000e+00> : vector<2x8xf32>
    %190 = vector.multi_reduction <add>, %189, %cst_77 [2] : vector<2x8x8xf32> to vector<2x8xf32>
    %191 = vector.shape_cast %190 : vector<2x8xf32> to vector<2x8x1xf32>
    %192 = tpu.reciprocal %191 {approx = true} : vector<2x8x1xf32> -> vector<2x8x1xf32>
    %193 = vector.broadcast %192 : vector<2x8x1xf32> to vector<2x8x8xf32>
    %194 = arith.mulf %189, %193 : vector<2x8x8xf32>
    %195 = vector.shape_cast %194 : vector<2x8x8xf32> to vector<2x64xf32>
    %c1_78 = arith.constant 1 : index
    %c0_79 = arith.constant 0 : index
    %c0_80 = arith.constant 0 : index
    %c0_81 = arith.constant 0 : index
    %196 = vector.load %arg9[%c1_78, %c0_79, %c0_80, %c0_81] : memref<4x2x2x64xf32, #tpu.memory_space<vmem>>, vector<1x1x2x64xf32>
    %197 = vector.shape_cast %196 : vector<1x1x2x64xf32> to vector<2x64xf32>
    %198 = vector.shape_cast %195 : vector<2x64xf32> to vector<1x1x2x64xf32>
    tpu.vector_store %arg9[%c1_78, %c0_79, %c0_80, %c0_81], %198 {strides = array<i32>} : memref<4x2x2x64xf32, #tpu.memory_space<vmem>>, vector<1x1x2x64xf32>,
    %199 = arith.truncf %194 : vector<2x8x8xf32> to vector<2x8x8xbf16>
    %200 = arith.truncf %179 : vector<2x8x32xf32> to vector<2x8x32xbf16>
    %cst_82 = arith.constant dense<0.000000e+00> : vector<2x8x32xf32>
    %201 = tpu.matmul %199, %200, %cst_82 {dimension_numbers = #tpu.dot_dimension_numbers<[2], [1], [1], [2], [0, 0, 0, 1, 1, 2], [0], [0]>} : vector<2x8x8xbf16>, vector<2x8x32xbf16>, vector<2x8x32xf32> -> vector<2x8x32xf32>
    %202 = vector.shape_cast %201 : vector<2x8x32xf32> to vector<16x32xf32>
    %203 = arith.truncf %202 : vector<16x32xf32> to vector<16x32xbf16>
    %c1_83 = arith.constant 1 : index
    %c0_84 = arith.constant 0 : index
    %c0_85 = arith.constant 0 : index
    %204 = vector.load %arg3[%c1_83, %c0_84, %c0_85] : memref<4x64x64xbf16, #tpu.memory_space<vmem>>, vector<1x32x64xbf16>
    %205 = vector.shape_cast %204 : vector<1x32x64xbf16> to vector<32x64xbf16>
    %cst_86 = arith.constant dense<0.000000e+00> : vector<16x64xf32>
    %206 = tpu.matmul %203, %205, %cst_86 {dimension_numbers = #tpu.dot_dimension_numbers<[1], [0], [0], [1], [0, 0, 1, 1], [], []>} : vector<16x32xbf16>, vector<32x64xbf16>, vector<16x64xf32> -> vector<16x64xf32>
    %207 = vector.broadcast %145 : vector<1x64xf32> to vector<16x64xf32>
    %208 = arith.addf %207, %206 : vector<16x64xf32>
    %209 = vector.extract_strided_slice %173 {offsets = [0, 32], sizes = [16, 32], strides = [1, 1]} : vector<16x192xf32> to vector<16x32xf32>
    %210 = vector.shape_cast %209 : vector<16x32xf32> to vector<2x8x32xf32>
    %211 = vector.extract_strided_slice %173 {offsets = [0, 96], sizes = [16, 32], strides = [1, 1]} : vector<16x192xf32> to vector<16x32xf32>
    %212 = vector.shape_cast %211 : vector<16x32xf32> to vector<2x8x32xf32>
    %213 = vector.extract_strided_slice %173 {offsets = [0, 160], sizes = [16, 32], strides = [1, 1]} : vector<16x192xf32> to vector<16x32xf32>
    %214 = vector.shape_cast %213 : vector<16x32xf32> to vector<2x8x32xf32>
    %215 = arith.truncf %210 : vector<2x8x32xf32> to vector<2x8x32xbf16>
    %216 = arith.truncf %212 : vector<2x8x32xf32> to vector<2x8x32xbf16>
    %cst_87 = arith.constant dense<0.000000e+00> : vector<2x8x8xf32>
    %217 = tpu.matmul %215, %216, %cst_87 {dimension_numbers = #tpu.dot_dimension_numbers<[2], [2], [1], [1], [0, 0, 0, 1, 1, 1], [0], [0]>} : vector<2x8x32xbf16>, vector<2x8x32xbf16>, vector<2x8x8xf32> -> vector<2x8x8xf32>
    %cst_88 = arith.constant 0.176776692 : f32
    %218 = vector.broadcast %cst_88 : f32 to vector<2x8x8xf32>
    %219 = arith.mulf %217, %218 : vector<2x8x8xf32>
    %cst_89 = arith.constant dense<0xFF800000> : vector<2x8xf32>
    %220 = vector.multi_reduction <maximumf>, %219, %cst_89 [2] : vector<2x8x8xf32> to vector<2x8xf32>
    %221 = vector.shape_cast %220 : vector<2x8xf32> to vector<2x8x1xf32>
    %222 = vector.broadcast %221 : vector<2x8x1xf32> to vector<2x8x8xf32>
    %223 = arith.subf %219, %222 : vector<2x8x8xf32>
    %224 = math.exp %223 : vector<2x8x8xf32>
    %cst_90 = arith.constant dense<0.000000e+00> : vector<2x8xf32>
    %225 = vector.multi_reduction <add>, %224, %cst_90 [2] : vector<2x8x8xf32> to vector<2x8xf32>
    %226 = vector.shape_cast %225 : vector<2x8xf32> to vector<2x8x1xf32>
    %227 = tpu.reciprocal %226 {approx = true} : vector<2x8x1xf32> -> vector<2x8x1xf32>
    %228 = vector.broadcast %227 : vector<2x8x1xf32> to vector<2x8x8xf32>
    %229 = arith.mulf %224, %228 : vector<2x8x8xf32>
    %230 = vector.shape_cast %229 : vector<2x8x8xf32> to vector<2x64xf32>
    %c1_91 = arith.constant 1 : index
    %c1_92 = arith.constant 1 : index
    %c0_93 = arith.constant 0 : index
    %c0_94 = arith.constant 0 : index
    %231 = vector.load %arg9[%c1_91, %c1_92, %c0_93, %c0_94] : memref<4x2x2x64xf32, #tpu.memory_space<vmem>>, vector<1x1x2x64xf32>
    %232 = vector.shape_cast %231 : vector<1x1x2x64xf32> to vector<2x64xf32>
    %233 = vector.shape_cast %230 : vector<2x64xf32> to vector<1x1x2x64xf32>
    tpu.vector_store %arg9[%c1_91, %c1_92, %c0_93, %c0_94], %233 {strides = array<i32>} : memref<4x2x2x64xf32, #tpu.memory_space<vmem>>, vector<1x1x2x64xf32>,
    %234 = arith.truncf %229 : vector<2x8x8xf32> to vector<2x8x8xbf16>
    %235 = arith.truncf %214 : vector<2x8x32xf32> to vector<2x8x32xbf16>
    %cst_95 = arith.constant dense<0.000000e+00> : vector<2x8x32xf32>
    %236 = tpu.matmul %234, %235, %cst_95 {dimension_numbers = #tpu.dot_dimension_numbers<[2], [1], [1], [2], [0, 0, 0, 1, 1, 2], [0], [0]>} : vector<2x8x8xbf16>, vector<2x8x32xbf16>, vector<2x8x32xf32> -> vector<2x8x32xf32>
    %237 = vector.shape_cast %236 : vector<2x8x32xf32> to vector<16x32xf32>
    %238 = arith.truncf %237 : vector<16x32xf32> to vector<16x32xbf16>
    %c1_96 = arith.constant 1 : index
    %c32_97 = arith.constant 32 : index
    %c0_98 = arith.constant 0 : index
    %239 = vector.load %arg3[%c1_96, %c32_97, %c0_98] : memref<4x64x64xbf16, #tpu.memory_space<vmem>>, vector<1x32x64xbf16>
    %240 = vector.shape_cast %239 : vector<1x32x64xbf16> to vector<32x64xbf16>
    %cst_99 = arith.constant dense<0.000000e+00> : vector<16x64xf32>
    %241 = tpu.matmul %238, %240, %cst_99 {dimension_numbers = #tpu.dot_dimension_numbers<[1], [0], [0], [1], [0, 0, 1, 1], [], []>} : vector<16x32xbf16>, vector<32x64xbf16>, vector<16x64xf32> -> vector<16x64xf32>
    %242 = arith.addf %208, %241 : vector<16x64xf32>
    %243 = arith.addf %140, %242 : vector<16x64xf32>
    %cst_100 = arith.constant dense<0.000000e+00> : vector<16xf32>
    %244 = vector.multi_reduction <add>, %243, %cst_100 [1] : vector<16x64xf32> to vector<16xf32>
    %245 = vector.shape_cast %244 : vector<16xf32> to vector<16x1xf32>
    %cst_101 = arith.constant 6.400000e+01 : f32
    %246 = vector.broadcast %cst_101 : f32 to vector<16x1xf32>
    %247 = arith.divf %245, %246 : vector<16x1xf32>
    %248 = vector.broadcast %247 : vector<16x1xf32> to vector<16x64xf32>
    %249 = arith.subf %243, %248 : vector<16x64xf32>
    %250 = arith.mulf %249, %249 : vector<16x64xf32>
    %cst_102 = arith.constant dense<0.000000e+00> : vector<16xf32>
    %251 = vector.multi_reduction <add>, %250, %cst_102 [1] : vector<16x64xf32> to vector<16xf32>
    %252 = vector.shape_cast %251 : vector<16xf32> to vector<16x1xf32>
    %cst_103 = arith.constant 6.400000e+01 : f32
    %253 = vector.broadcast %cst_103 : f32 to vector<16x1xf32>
    %254 = arith.divf %252, %253 : vector<16x1xf32>
    %255 = vector.broadcast %247 : vector<16x1xf32> to vector<16x64xf32>
    %256 = arith.subf %243, %255 : vector<16x64xf32>
    %cst_104 = arith.constant 9.99999974E-6 : f32
    %257 = vector.broadcast %cst_104 : f32 to vector<16x1xf32>
    %258 = arith.addf %254, %257 : vector<16x1xf32>
    %259 = math.rsqrt %258 : vector<16x1xf32>
    %260 = vector.broadcast %259 : vector<16x1xf32> to vector<16x64xf32>
    %261 = arith.mulf %256, %260 : vector<16x64xf32>
    %262 = vector.broadcast %143 : vector<1x64xf32> to vector<16x64xf32>
    %263 = arith.mulf %261, %262 : vector<16x64xf32>
    %264 = vector.broadcast %144 : vector<1x64xf32> to vector<16x64xf32>
    %265 = arith.addf %263, %264 : vector<16x64xf32>
    %266 = arith.truncf %265 : vector<16x64xf32> to vector<16x64xbf16>
    %c1_105 = arith.constant 1 : index
    %c0_106 = arith.constant 0 : index
    %c0_107 = arith.constant 0 : index
    %267 = vector.load %arg4[%c1_105, %c0_106, %c0_107] : memref<4x64x256xbf16, #tpu.memory_space<vmem>>, vector<1x64x256xbf16>
    %268 = vector.shape_cast %267 : vector<1x64x256xbf16> to vector<64x256xbf16>
    %cst_108 = arith.constant dense<0.000000e+00> : vector<16x256xf32>
    %269 = tpu.matmul %266, %268, %cst_108 {dimension_numbers = #tpu.dot_dimension_numbers<[1], [0], [0], [1], [0, 0, 1, 1], [], []>} : vector<16x64xbf16>, vector<64x256xbf16>, vector<16x256xf32> -> vector<16x256xf32>
    %270 = vector.broadcast %147 : vector<1x256xf32> to vector<16x256xf32>
    %271 = arith.addf %269, %270 : vector<16x256xf32>
    %cst_109 = arith.constant 0.000000e+00 : f32
    %272 = vector.broadcast %cst_109 : f32 to vector<16x256xf32>
    %273 = arith.maximumf %271, %272 : vector<16x256xf32>
    %274 = arith.truncf %273 : vector<16x256xf32> to vector<16x256xbf16>
    %c1_110 = arith.constant 1 : index
    %c0_111 = arith.constant 0 : index
    %c0_112 = arith.constant 0 : index
    %275 = vector.load %arg5[%c1_110, %c0_111, %c0_112] : memref<4x256x64xbf16, #tpu.memory_space<vmem>>, vector<1x256x64xbf16>
    %276 = vector.shape_cast %275 : vector<1x256x64xbf16> to vector<256x64xbf16>
    %cst_113 = arith.constant dense<0.000000e+00> : vector<16x64xf32>
    %277 = tpu.matmul %274, %276, %cst_113 {dimension_numbers = #tpu.dot_dimension_numbers<[1], [0], [0], [1], [0, 0, 1, 1], [], []>} : vector<16x256xbf16>, vector<256x64xbf16>, vector<16x64xf32> -> vector<16x64xf32>
    %278 = vector.broadcast %146 : vector<1x64xf32> to vector<16x64xf32>
    %279 = arith.addf %277, %278 : vector<16x64xf32>
    %280 = arith.addf %243, %279 : vector<16x64xf32>
    %c12 = arith.constant 12 : index
    %c0_114 = arith.constant 0 : index
    %281 = vector.load %arg6[%c12, %c0_114] : memref<26x64xf32, #tpu.memory_space<vmem>>, vector<1x64xf32>
    %c13 = arith.constant 13 : index
    %c0_115 = arith.constant 0 : index
    %282 = vector.load %arg6[%c13, %c0_115] : memref<26x64xf32, #tpu.memory_space<vmem>>, vector<1x64xf32>
    %c14 = arith.constant 14 : index
    %c0_116 = arith.constant 0 : index
    %283 = vector.load %arg6[%c14, %c0_116] : memref<26x64xf32, #tpu.memory_space<vmem>>, vector<1x64xf32>
    %c15 = arith.constant 15 : index
    %c0_117 = arith.constant 0 : index
    %284 = vector.load %arg6[%c15, %c0_117] : memref<26x64xf32, #tpu.memory_space<vmem>>, vector<1x64xf32>
    %c16 = arith.constant 16 : index
    %c0_118 = arith.constant 0 : index
    %285 = vector.load %arg6[%c16, %c0_118] : memref<26x64xf32, #tpu.memory_space<vmem>>, vector<1x64xf32>
    %c17 = arith.constant 17 : index
    %c0_119 = arith.constant 0 : index
    %286 = vector.load %arg6[%c17, %c0_119] : memref<26x64xf32, #tpu.memory_space<vmem>>, vector<1x64xf32>
    %c2_120 = arith.constant 2 : index
    %c0_121 = arith.constant 0 : index
    %287 = vector.load %arg7[%c2_120, %c0_121] : memref<4x256xf32, #tpu.memory_space<vmem>>, vector<1x256xf32>
    %cst_122 = arith.constant dense<0.000000e+00> : vector<16xf32>
    %288 = vector.multi_reduction <add>, %280, %cst_122 [1] : vector<16x64xf32> to vector<16xf32>
    %289 = vector.shape_cast %288 : vector<16xf32> to vector<16x1xf32>
    %cst_123 = arith.constant 6.400000e+01 : f32
    %290 = vector.broadcast %cst_123 : f32 to vector<16x1xf32>
    %291 = arith.divf %289, %290 : vector<16x1xf32>
    %292 = vector.broadcast %291 : vector<16x1xf32> to vector<16x64xf32>
    %293 = arith.subf %280, %292 : vector<16x64xf32>
    %294 = arith.mulf %293, %293 : vector<16x64xf32>
    %cst_124 = arith.constant dense<0.000000e+00> : vector<16xf32>
    %295 = vector.multi_reduction <add>, %294, %cst_124 [1] : vector<16x64xf32> to vector<16xf32>
    %296 = vector.shape_cast %295 : vector<16xf32> to vector<16x1xf32>
    %cst_125 = arith.constant 6.400000e+01 : f32
    %297 = vector.broadcast %cst_125 : f32 to vector<16x1xf32>
    %298 = arith.divf %296, %297 : vector<16x1xf32>
    %299 = vector.broadcast %291 : vector<16x1xf32> to vector<16x64xf32>
    %300 = arith.subf %280, %299 : vector<16x64xf32>
    %cst_126 = arith.constant 9.99999974E-6 : f32
    %301 = vector.broadcast %cst_126 : f32 to vector<16x1xf32>
    %302 = arith.addf %298, %301 : vector<16x1xf32>
    %303 = math.rsqrt %302 : vector<16x1xf32>
    %304 = vector.broadcast %303 : vector<16x1xf32> to vector<16x64xf32>
    %305 = arith.mulf %300, %304 : vector<16x64xf32>
    %306 = vector.broadcast %281 : vector<1x64xf32> to vector<16x64xf32>
    %307 = arith.mulf %305, %306 : vector<16x64xf32>
    %308 = vector.broadcast %282 : vector<1x64xf32> to vector<16x64xf32>
    %309 = arith.addf %307, %308 : vector<16x64xf32>
    %310 = arith.truncf %309 : vector<16x64xf32> to vector<16x64xbf16>
    %c2_127 = arith.constant 2 : index
    %c0_128 = arith.constant 0 : index
    %c0_129 = arith.constant 0 : index
    %311 = vector.load %arg2[%c2_127, %c0_128, %c0_129] : memref<4x64x192xbf16, #tpu.memory_space<vmem>>, vector<1x64x192xbf16>
    %312 = vector.shape_cast %311 : vector<1x64x192xbf16> to vector<64x192xbf16>
    %cst_130 = arith.constant dense<0.000000e+00> : vector<16x192xf32>
    %313 = tpu.matmul %310, %312, %cst_130 {dimension_numbers = #tpu.dot_dimension_numbers<[1], [0], [0], [1], [0, 0, 1, 1], [], []>} : vector<16x64xbf16>, vector<64x192xbf16>, vector<16x192xf32> -> vector<16x192xf32>
    %314 = vector.extract_strided_slice %313 {offsets = [0, 0], sizes = [16, 32], strides = [1, 1]} : vector<16x192xf32> to vector<16x32xf32>
    %315 = vector.shape_cast %314 : vector<16x32xf32> to vector<2x8x32xf32>
    %316 = vector.extract_strided_slice %313 {offsets = [0, 64], sizes = [16, 32], strides = [1, 1]} : vector<16x192xf32> to vector<16x32xf32>
    %317 = vector.shape_cast %316 : vector<16x32xf32> to vector<2x8x32xf32>
    %318 = vector.extract_strided_slice %313 {offsets = [0, 128], sizes = [16, 32], strides = [1, 1]} : vector<16x192xf32> to vector<16x32xf32>
    %319 = vector.shape_cast %318 : vector<16x32xf32> to vector<2x8x32xf32>
    %320 = arith.truncf %315 : vector<2x8x32xf32> to vector<2x8x32xbf16>
    %321 = arith.truncf %317 : vector<2x8x32xf32> to vector<2x8x32xbf16>
    %cst_131 = arith.constant dense<0.000000e+00> : vector<2x8x8xf32>
    %322 = tpu.matmul %320, %321, %cst_131 {dimension_numbers = #tpu.dot_dimension_numbers<[2], [2], [1], [1], [0, 0, 0, 1, 1, 1], [0], [0]>} : vector<2x8x32xbf16>, vector<2x8x32xbf16>, vector<2x8x8xf32> -> vector<2x8x8xf32>
    %cst_132 = arith.constant 0.176776692 : f32
    %323 = vector.broadcast %cst_132 : f32 to vector<2x8x8xf32>
    %324 = arith.mulf %322, %323 : vector<2x8x8xf32>
    %cst_133 = arith.constant dense<0xFF800000> : vector<2x8xf32>
    %325 = vector.multi_reduction <maximumf>, %324, %cst_133 [2] : vector<2x8x8xf32> to vector<2x8xf32>
    %326 = vector.shape_cast %325 : vector<2x8xf32> to vector<2x8x1xf32>
    %327 = vector.broadcast %326 : vector<2x8x1xf32> to vector<2x8x8xf32>
    %328 = arith.subf %324, %327 : vector<2x8x8xf32>
    %329 = math.exp %328 : vector<2x8x8xf32>
    %cst_134 = arith.constant dense<0.000000e+00> : vector<2x8xf32>
    %330 = vector.multi_reduction <add>, %329, %cst_134 [2] : vector<2x8x8xf32> to vector<2x8xf32>
    %331 = vector.shape_cast %330 : vector<2x8xf32> to vector<2x8x1xf32>
    %332 = tpu.reciprocal %331 {approx = true} : vector<2x8x1xf32> -> vector<2x8x1xf32>
    %333 = vector.broadcast %332 : vector<2x8x1xf32> to vector<2x8x8xf32>
    %334 = arith.mulf %329, %333 : vector<2x8x8xf32>
    %335 = vector.shape_cast %334 : vector<2x8x8xf32> to vector<2x64xf32>
    %c2_135 = arith.constant 2 : index
    %c0_136 = arith.constant 0 : index
    %c0_137 = arith.constant 0 : index
    %c0_138 = arith.constant 0 : index
    %336 = vector.load %arg9[%c2_135, %c0_136, %c0_137, %c0_138] : memref<4x2x2x64xf32, #tpu.memory_space<vmem>>, vector<1x1x2x64xf32>
    %337 = vector.shape_cast %336 : vector<1x1x2x64xf32> to vector<2x64xf32>
    %338 = vector.shape_cast %335 : vector<2x64xf32> to vector<1x1x2x64xf32>
    tpu.vector_store %arg9[%c2_135, %c0_136, %c0_137, %c0_138], %338 {strides = array<i32>} : memref<4x2x2x64xf32, #tpu.memory_space<vmem>>, vector<1x1x2x64xf32>,
    %339 = arith.truncf %334 : vector<2x8x8xf32> to vector<2x8x8xbf16>
    %340 = arith.truncf %319 : vector<2x8x32xf32> to vector<2x8x32xbf16>
    %cst_139 = arith.constant dense<0.000000e+00> : vector<2x8x32xf32>
    %341 = tpu.matmul %339, %340, %cst_139 {dimension_numbers = #tpu.dot_dimension_numbers<[2], [1], [1], [2], [0, 0, 0, 1, 1, 2], [0], [0]>} : vector<2x8x8xbf16>, vector<2x8x32xbf16>, vector<2x8x32xf32> -> vector<2x8x32xf32>
    %342 = vector.shape_cast %341 : vector<2x8x32xf32> to vector<16x32xf32>
    %343 = arith.truncf %342 : vector<16x32xf32> to vector<16x32xbf16>
    %c2_140 = arith.constant 2 : index
    %c0_141 = arith.constant 0 : index
    %c0_142 = arith.constant 0 : index
    %344 = vector.load %arg3[%c2_140, %c0_141, %c0_142] : memref<4x64x64xbf16, #tpu.memory_space<vmem>>, vector<1x32x64xbf16>
    %345 = vector.shape_cast %344 : vector<1x32x64xbf16> to vector<32x64xbf16>
    %cst_143 = arith.constant dense<0.000000e+00> : vector<16x64xf32>
    %346 = tpu.matmul %343, %345, %cst_143 {dimension_numbers = #tpu.dot_dimension_numbers<[1], [0], [0], [1], [0, 0, 1, 1], [], []>} : vector<16x32xbf16>, vector<32x64xbf16>, vector<16x64xf32> -> vector<16x64xf32>
    %347 = vector.broadcast %285 : vector<1x64xf32> to vector<16x64xf32>
    %348 = arith.addf %347, %346 : vector<16x64xf32>
    %349 = vector.extract_strided_slice %313 {offsets = [0, 32], sizes = [16, 32], strides = [1, 1]} : vector<16x192xf32> to vector<16x32xf32>
    %350 = vector.shape_cast %349 : vector<16x32xf32> to vector<2x8x32xf32>
    %351 = vector.extract_strided_slice %313 {offsets = [0, 96], sizes = [16, 32], strides = [1, 1]} : vector<16x192xf32> to vector<16x32xf32>
    %352 = vector.shape_cast %351 : vector<16x32xf32> to vector<2x8x32xf32>
    %353 = vector.extract_strided_slice %313 {offsets = [0, 160], sizes = [16, 32], strides = [1, 1]} : vector<16x192xf32> to vector<16x32xf32>
    %354 = vector.shape_cast %353 : vector<16x32xf32> to vector<2x8x32xf32>
    %355 = arith.truncf %350 : vector<2x8x32xf32> to vector<2x8x32xbf16>
    %356 = arith.truncf %352 : vector<2x8x32xf32> to vector<2x8x32xbf16>
    %cst_144 = arith.constant dense<0.000000e+00> : vector<2x8x8xf32>
    %357 = tpu.matmul %355, %356, %cst_144 {dimension_numbers = #tpu.dot_dimension_numbers<[2], [2], [1], [1], [0, 0, 0, 1, 1, 1], [0], [0]>} : vector<2x8x32xbf16>, vector<2x8x32xbf16>, vector<2x8x8xf32> -> vector<2x8x8xf32>
    %cst_145 = arith.constant 0.176776692 : f32
    %358 = vector.broadcast %cst_145 : f32 to vector<2x8x8xf32>
    %359 = arith.mulf %357, %358 : vector<2x8x8xf32>
    %cst_146 = arith.constant dense<0xFF800000> : vector<2x8xf32>
    %360 = vector.multi_reduction <maximumf>, %359, %cst_146 [2] : vector<2x8x8xf32> to vector<2x8xf32>
    %361 = vector.shape_cast %360 : vector<2x8xf32> to vector<2x8x1xf32>
    %362 = vector.broadcast %361 : vector<2x8x1xf32> to vector<2x8x8xf32>
    %363 = arith.subf %359, %362 : vector<2x8x8xf32>
    %364 = math.exp %363 : vector<2x8x8xf32>
    %cst_147 = arith.constant dense<0.000000e+00> : vector<2x8xf32>
    %365 = vector.multi_reduction <add>, %364, %cst_147 [2] : vector<2x8x8xf32> to vector<2x8xf32>
    %366 = vector.shape_cast %365 : vector<2x8xf32> to vector<2x8x1xf32>
    %367 = tpu.reciprocal %366 {approx = true} : vector<2x8x1xf32> -> vector<2x8x1xf32>
    %368 = vector.broadcast %367 : vector<2x8x1xf32> to vector<2x8x8xf32>
    %369 = arith.mulf %364, %368 : vector<2x8x8xf32>
    %370 = vector.shape_cast %369 : vector<2x8x8xf32> to vector<2x64xf32>
    %c2_148 = arith.constant 2 : index
    %c1_149 = arith.constant 1 : index
    %c0_150 = arith.constant 0 : index
    %c0_151 = arith.constant 0 : index
    %371 = vector.load %arg9[%c2_148, %c1_149, %c0_150, %c0_151] : memref<4x2x2x64xf32, #tpu.memory_space<vmem>>, vector<1x1x2x64xf32>
    %372 = vector.shape_cast %371 : vector<1x1x2x64xf32> to vector<2x64xf32>
    %373 = vector.shape_cast %370 : vector<2x64xf32> to vector<1x1x2x64xf32>
    tpu.vector_store %arg9[%c2_148, %c1_149, %c0_150, %c0_151], %373 {strides = array<i32>} : memref<4x2x2x64xf32, #tpu.memory_space<vmem>>, vector<1x1x2x64xf32>,
    %374 = arith.truncf %369 : vector<2x8x8xf32> to vector<2x8x8xbf16>
    %375 = arith.truncf %354 : vector<2x8x32xf32> to vector<2x8x32xbf16>
    %cst_152 = arith.constant dense<0.000000e+00> : vector<2x8x32xf32>
    %376 = tpu.matmul %374, %375, %cst_152 {dimension_numbers = #tpu.dot_dimension_numbers<[2], [1], [1], [2], [0, 0, 0, 1, 1, 2], [0], [0]>} : vector<2x8x8xbf16>, vector<2x8x32xbf16>, vector<2x8x32xf32> -> vector<2x8x32xf32>
    %377 = vector.shape_cast %376 : vector<2x8x32xf32> to vector<16x32xf32>
    %378 = arith.truncf %377 : vector<16x32xf32> to vector<16x32xbf16>
    %c2_153 = arith.constant 2 : index
    %c32_154 = arith.constant 32 : index
    %c0_155 = arith.constant 0 : index
    %379 = vector.load %arg3[%c2_153, %c32_154, %c0_155] : memref<4x64x64xbf16, #tpu.memory_space<vmem>>, vector<1x32x64xbf16>
    %380 = vector.shape_cast %379 : vector<1x32x64xbf16> to vector<32x64xbf16>
    %cst_156 = arith.constant dense<0.000000e+00> : vector<16x64xf32>
    %381 = tpu.matmul %378, %380, %cst_156 {dimension_numbers = #tpu.dot_dimension_numbers<[1], [0], [0], [1], [0, 0, 1, 1], [], []>} : vector<16x32xbf16>, vector<32x64xbf16>, vector<16x64xf32> -> vector<16x64xf32>
    %382 = arith.addf %348, %381 : vector<16x64xf32>
    %383 = arith.addf %280, %382 : vector<16x64xf32>
    %cst_157 = arith.constant dense<0.000000e+00> : vector<16xf32>
    %384 = vector.multi_reduction <add>, %383, %cst_157 [1] : vector<16x64xf32> to vector<16xf32>
    %385 = vector.shape_cast %384 : vector<16xf32> to vector<16x1xf32>
    %cst_158 = arith.constant 6.400000e+01 : f32
    %386 = vector.broadcast %cst_158 : f32 to vector<16x1xf32>
    %387 = arith.divf %385, %386 : vector<16x1xf32>
    %388 = vector.broadcast %387 : vector<16x1xf32> to vector<16x64xf32>
    %389 = arith.subf %383, %388 : vector<16x64xf32>
    %390 = arith.mulf %389, %389 : vector<16x64xf32>
    %cst_159 = arith.constant dense<0.000000e+00> : vector<16xf32>
    %391 = vector.multi_reduction <add>, %390, %cst_159 [1] : vector<16x64xf32> to vector<16xf32>
    %392 = vector.shape_cast %391 : vector<16xf32> to vector<16x1xf32>
    %cst_160 = arith.constant 6.400000e+01 : f32
    %393 = vector.broadcast %cst_160 : f32 to vector<16x1xf32>
    %394 = arith.divf %392, %393 : vector<16x1xf32>
    %395 = vector.broadcast %387 : vector<16x1xf32> to vector<16x64xf32>
    %396 = arith.subf %383, %395 : vector<16x64xf32>
    %cst_161 = arith.constant 9.99999974E-6 : f32
    %397 = vector.broadcast %cst_161 : f32 to vector<16x1xf32>
    %398 = arith.addf %394, %397 : vector<16x1xf32>
    %399 = math.rsqrt %398 : vector<16x1xf32>
    %400 = vector.broadcast %399 : vector<16x1xf32> to vector<16x64xf32>
    %401 = arith.mulf %396, %400 : vector<16x64xf32>
    %402 = vector.broadcast %283 : vector<1x64xf32> to vector<16x64xf32>
    %403 = arith.mulf %401, %402 : vector<16x64xf32>
    %404 = vector.broadcast %284 : vector<1x64xf32> to vector<16x64xf32>
    %405 = arith.addf %403, %404 : vector<16x64xf32>
    %406 = arith.truncf %405 : vector<16x64xf32> to vector<16x64xbf16>
    %c2_162 = arith.constant 2 : index
    %c0_163 = arith.constant 0 : index
    %c0_164 = arith.constant 0 : index
    %407 = vector.load %arg4[%c2_162, %c0_163, %c0_164] : memref<4x64x256xbf16, #tpu.memory_space<vmem>>, vector<1x64x256xbf16>
    %408 = vector.shape_cast %407 : vector<1x64x256xbf16> to vector<64x256xbf16>
    %cst_165 = arith.constant dense<0.000000e+00> : vector<16x256xf32>
    %409 = tpu.matmul %406, %408, %cst_165 {dimension_numbers = #tpu.dot_dimension_numbers<[1], [0], [0], [1], [0, 0, 1, 1], [], []>} : vector<16x64xbf16>, vector<64x256xbf16>, vector<16x256xf32> -> vector<16x256xf32>
    %410 = vector.broadcast %287 : vector<1x256xf32> to vector<16x256xf32>
    %411 = arith.addf %409, %410 : vector<16x256xf32>
    %cst_166 = arith.constant 0.000000e+00 : f32
    %412 = vector.broadcast %cst_166 : f32 to vector<16x256xf32>
    %413 = arith.maximumf %411, %412 : vector<16x256xf32>
    %414 = arith.truncf %413 : vector<16x256xf32> to vector<16x256xbf16>
    %c2_167 = arith.constant 2 : index
    %c0_168 = arith.constant 0 : index
    %c0_169 = arith.constant 0 : index
    %415 = vector.load %arg5[%c2_167, %c0_168, %c0_169] : memref<4x256x64xbf16, #tpu.memory_space<vmem>>, vector<1x256x64xbf16>
    %416 = vector.shape_cast %415 : vector<1x256x64xbf16> to vector<256x64xbf16>
    %cst_170 = arith.constant dense<0.000000e+00> : vector<16x64xf32>
    %417 = tpu.matmul %414, %416, %cst_170 {dimension_numbers = #tpu.dot_dimension_numbers<[1], [0], [0], [1], [0, 0, 1, 1], [], []>} : vector<16x256xbf16>, vector<256x64xbf16>, vector<16x64xf32> -> vector<16x64xf32>
    %418 = vector.broadcast %286 : vector<1x64xf32> to vector<16x64xf32>
    %419 = arith.addf %417, %418 : vector<16x64xf32>
    %420 = arith.addf %383, %419 : vector<16x64xf32>
    %c18 = arith.constant 18 : index
    %c0_171 = arith.constant 0 : index
    %421 = vector.load %arg6[%c18, %c0_171] : memref<26x64xf32, #tpu.memory_space<vmem>>, vector<1x64xf32>
    %c19 = arith.constant 19 : index
    %c0_172 = arith.constant 0 : index
    %422 = vector.load %arg6[%c19, %c0_172] : memref<26x64xf32, #tpu.memory_space<vmem>>, vector<1x64xf32>
    %c20 = arith.constant 20 : index
    %c0_173 = arith.constant 0 : index
    %423 = vector.load %arg6[%c20, %c0_173] : memref<26x64xf32, #tpu.memory_space<vmem>>, vector<1x64xf32>
    %c21 = arith.constant 21 : index
    %c0_174 = arith.constant 0 : index
    %424 = vector.load %arg6[%c21, %c0_174] : memref<26x64xf32, #tpu.memory_space<vmem>>, vector<1x64xf32>
    %c22 = arith.constant 22 : index
    %c0_175 = arith.constant 0 : index
    %425 = vector.load %arg6[%c22, %c0_175] : memref<26x64xf32, #tpu.memory_space<vmem>>, vector<1x64xf32>
    %c23 = arith.constant 23 : index
    %c0_176 = arith.constant 0 : index
    %426 = vector.load %arg6[%c23, %c0_176] : memref<26x64xf32, #tpu.memory_space<vmem>>, vector<1x64xf32>
    %c3_177 = arith.constant 3 : index
    %c0_178 = arith.constant 0 : index
    %427 = vector.load %arg7[%c3_177, %c0_178] : memref<4x256xf32, #tpu.memory_space<vmem>>, vector<1x256xf32>
    %cst_179 = arith.constant dense<0.000000e+00> : vector<16xf32>
    %428 = vector.multi_reduction <add>, %420, %cst_179 [1] : vector<16x64xf32> to vector<16xf32>
    %429 = vector.shape_cast %428 : vector<16xf32> to vector<16x1xf32>
    %cst_180 = arith.constant 6.400000e+01 : f32
    %430 = vector.broadcast %cst_180 : f32 to vector<16x1xf32>
    %431 = arith.divf %429, %430 : vector<16x1xf32>
    %432 = vector.broadcast %431 : vector<16x1xf32> to vector<16x64xf32>
    %433 = arith.subf %420, %432 : vector<16x64xf32>
    %434 = arith.mulf %433, %433 : vector<16x64xf32>
    %cst_181 = arith.constant dense<0.000000e+00> : vector<16xf32>
    %435 = vector.multi_reduction <add>, %434, %cst_181 [1] : vector<16x64xf32> to vector<16xf32>
    %436 = vector.shape_cast %435 : vector<16xf32> to vector<16x1xf32>
    %cst_182 = arith.constant 6.400000e+01 : f32
    %437 = vector.broadcast %cst_182 : f32 to vector<16x1xf32>
    %438 = arith.divf %436, %437 : vector<16x1xf32>
    %439 = vector.broadcast %431 : vector<16x1xf32> to vector<16x64xf32>
    %440 = arith.subf %420, %439 : vector<16x64xf32>
    %cst_183 = arith.constant 9.99999974E-6 : f32
    %441 = vector.broadcast %cst_183 : f32 to vector<16x1xf32>
    %442 = arith.addf %438, %441 : vector<16x1xf32>
    %443 = math.rsqrt %442 : vector<16x1xf32>
    %444 = vector.broadcast %443 : vector<16x1xf32> to vector<16x64xf32>
    %445 = arith.mulf %440, %444 : vector<16x64xf32>
    %446 = vector.broadcast %421 : vector<1x64xf32> to vector<16x64xf32>
    %447 = arith.mulf %445, %446 : vector<16x64xf32>
    %448 = vector.broadcast %422 : vector<1x64xf32> to vector<16x64xf32>
    %449 = arith.addf %447, %448 : vector<16x64xf32>
    %450 = arith.truncf %449 : vector<16x64xf32> to vector<16x64xbf16>
    %c3_184 = arith.constant 3 : index
    %c0_185 = arith.constant 0 : index
    %c0_186 = arith.constant 0 : index
    %451 = vector.load %arg2[%c3_184, %c0_185, %c0_186] : memref<4x64x192xbf16, #tpu.memory_space<vmem>>, vector<1x64x192xbf16>
    %452 = vector.shape_cast %451 : vector<1x64x192xbf16> to vector<64x192xbf16>
    %cst_187 = arith.constant dense<0.000000e+00> : vector<16x192xf32>
    %453 = tpu.matmul %450, %452, %cst_187 {dimension_numbers = #tpu.dot_dimension_numbers<[1], [0], [0], [1], [0, 0, 1, 1], [], []>} : vector<16x64xbf16>, vector<64x192xbf16>, vector<16x192xf32> -> vector<16x192xf32>
    %454 = vector.extract_strided_slice %453 {offsets = [0, 0], sizes = [16, 32], strides = [1, 1]} : vector<16x192xf32> to vector<16x32xf32>
    %455 = vector.shape_cast %454 : vector<16x32xf32> to vector<2x8x32xf32>
    %456 = vector.extract_strided_slice %453 {offsets = [0, 64], sizes = [16, 32], strides = [1, 1]} : vector<16x192xf32> to vector<16x32xf32>
    %457 = vector.shape_cast %456 : vector<16x32xf32> to vector<2x8x32xf32>
    %458 = vector.extract_strided_slice %453 {offsets = [0, 128], sizes = [16, 32], strides = [1, 1]} : vector<16x192xf32> to vector<16x32xf32>
    %459 = vector.shape_cast %458 : vector<16x32xf32> to vector<2x8x32xf32>
    %460 = arith.truncf %455 : vector<2x8x32xf32> to vector<2x8x32xbf16>
    %461 = arith.truncf %457 : vector<2x8x32xf32> to vector<2x8x32xbf16>
    %cst_188 = arith.constant dense<0.000000e+00> : vector<2x8x8xf32>
    %462 = tpu.matmul %460, %461, %cst_188 {dimension_numbers = #tpu.dot_dimension_numbers<[2], [2], [1], [1], [0, 0, 0, 1, 1, 1], [0], [0]>} : vector<2x8x32xbf16>, vector<2x8x32xbf16>, vector<2x8x8xf32> -> vector<2x8x8xf32>
    %cst_189 = arith.constant 0.176776692 : f32
    %463 = vector.broadcast %cst_189 : f32 to vector<2x8x8xf32>
    %464 = arith.mulf %462, %463 : vector<2x8x8xf32>
    %cst_190 = arith.constant dense<0xFF800000> : vector<2x8xf32>
    %465 = vector.multi_reduction <maximumf>, %464, %cst_190 [2] : vector<2x8x8xf32> to vector<2x8xf32>
    %466 = vector.shape_cast %465 : vector<2x8xf32> to vector<2x8x1xf32>
    %467 = vector.broadcast %466 : vector<2x8x1xf32> to vector<2x8x8xf32>
    %468 = arith.subf %464, %467 : vector<2x8x8xf32>
    %469 = math.exp %468 : vector<2x8x8xf32>
    %cst_191 = arith.constant dense<0.000000e+00> : vector<2x8xf32>
    %470 = vector.multi_reduction <add>, %469, %cst_191 [2] : vector<2x8x8xf32> to vector<2x8xf32>
    %471 = vector.shape_cast %470 : vector<2x8xf32> to vector<2x8x1xf32>
    %472 = tpu.reciprocal %471 {approx = true} : vector<2x8x1xf32> -> vector<2x8x1xf32>
    %473 = vector.broadcast %472 : vector<2x8x1xf32> to vector<2x8x8xf32>
    %474 = arith.mulf %469, %473 : vector<2x8x8xf32>
    %475 = vector.shape_cast %474 : vector<2x8x8xf32> to vector<2x64xf32>
    %c3_192 = arith.constant 3 : index
    %c0_193 = arith.constant 0 : index
    %c0_194 = arith.constant 0 : index
    %c0_195 = arith.constant 0 : index
    %476 = vector.load %arg9[%c3_192, %c0_193, %c0_194, %c0_195] : memref<4x2x2x64xf32, #tpu.memory_space<vmem>>, vector<1x1x2x64xf32>
    %477 = vector.shape_cast %476 : vector<1x1x2x64xf32> to vector<2x64xf32>
    %478 = vector.shape_cast %475 : vector<2x64xf32> to vector<1x1x2x64xf32>
    tpu.vector_store %arg9[%c3_192, %c0_193, %c0_194, %c0_195], %478 {strides = array<i32>} : memref<4x2x2x64xf32, #tpu.memory_space<vmem>>, vector<1x1x2x64xf32>,
    %479 = arith.truncf %474 : vector<2x8x8xf32> to vector<2x8x8xbf16>
    %480 = arith.truncf %459 : vector<2x8x32xf32> to vector<2x8x32xbf16>
    %cst_196 = arith.constant dense<0.000000e+00> : vector<2x8x32xf32>
    %481 = tpu.matmul %479, %480, %cst_196 {dimension_numbers = #tpu.dot_dimension_numbers<[2], [1], [1], [2], [0, 0, 0, 1, 1, 2], [0], [0]>} : vector<2x8x8xbf16>, vector<2x8x32xbf16>, vector<2x8x32xf32> -> vector<2x8x32xf32>
    %482 = vector.shape_cast %481 : vector<2x8x32xf32> to vector<16x32xf32>
    %483 = arith.truncf %482 : vector<16x32xf32> to vector<16x32xbf16>
    %c3_197 = arith.constant 3 : index
    %c0_198 = arith.constant 0 : index
    %c0_199 = arith.constant 0 : index
    %484 = vector.load %arg3[%c3_197, %c0_198, %c0_199] : memref<4x64x64xbf16, #tpu.memory_space<vmem>>, vector<1x32x64xbf16>
    %485 = vector.shape_cast %484 : vector<1x32x64xbf16> to vector<32x64xbf16>
    %cst_200 = arith.constant dense<0.000000e+00> : vector<16x64xf32>
    %486 = tpu.matmul %483, %485, %cst_200 {dimension_numbers = #tpu.dot_dimension_numbers<[1], [0], [0], [1], [0, 0, 1, 1], [], []>} : vector<16x32xbf16>, vector<32x64xbf16>, vector<16x64xf32> -> vector<16x64xf32>
    %487 = vector.broadcast %425 : vector<1x64xf32> to vector<16x64xf32>
    %488 = arith.addf %487, %486 : vector<16x64xf32>
    %489 = vector.extract_strided_slice %453 {offsets = [0, 32], sizes = [16, 32], strides = [1, 1]} : vector<16x192xf32> to vector<16x32xf32>
    %490 = vector.shape_cast %489 : vector<16x32xf32> to vector<2x8x32xf32>
    %491 = vector.extract_strided_slice %453 {offsets = [0, 96], sizes = [16, 32], strides = [1, 1]} : vector<16x192xf32> to vector<16x32xf32>
    %492 = vector.shape_cast %491 : vector<16x32xf32> to vector<2x8x32xf32>
    %493 = vector.extract_strided_slice %453 {offsets = [0, 160], sizes = [16, 32], strides = [1, 1]} : vector<16x192xf32> to vector<16x32xf32>
    %494 = vector.shape_cast %493 : vector<16x32xf32> to vector<2x8x32xf32>
    %495 = arith.truncf %490 : vector<2x8x32xf32> to vector<2x8x32xbf16>
    %496 = arith.truncf %492 : vector<2x8x32xf32> to vector<2x8x32xbf16>
    %cst_201 = arith.constant dense<0.000000e+00> : vector<2x8x8xf32>
    %497 = tpu.matmul %495, %496, %cst_201 {dimension_numbers = #tpu.dot_dimension_numbers<[2], [2], [1], [1], [0, 0, 0, 1, 1, 1], [0], [0]>} : vector<2x8x32xbf16>, vector<2x8x32xbf16>, vector<2x8x8xf32> -> vector<2x8x8xf32>
    %cst_202 = arith.constant 0.176776692 : f32
    %498 = vector.broadcast %cst_202 : f32 to vector<2x8x8xf32>
    %499 = arith.mulf %497, %498 : vector<2x8x8xf32>
    %cst_203 = arith.constant dense<0xFF800000> : vector<2x8xf32>
    %500 = vector.multi_reduction <maximumf>, %499, %cst_203 [2] : vector<2x8x8xf32> to vector<2x8xf32>
    %501 = vector.shape_cast %500 : vector<2x8xf32> to vector<2x8x1xf32>
    %502 = vector.broadcast %501 : vector<2x8x1xf32> to vector<2x8x8xf32>
    %503 = arith.subf %499, %502 : vector<2x8x8xf32>
    %504 = math.exp %503 : vector<2x8x8xf32>
    %cst_204 = arith.constant dense<0.000000e+00> : vector<2x8xf32>
    %505 = vector.multi_reduction <add>, %504, %cst_204 [2] : vector<2x8x8xf32> to vector<2x8xf32>
    %506 = vector.shape_cast %505 : vector<2x8xf32> to vector<2x8x1xf32>
    %507 = tpu.reciprocal %506 {approx = true} : vector<2x8x1xf32> -> vector<2x8x1xf32>
    %508 = vector.broadcast %507 : vector<2x8x1xf32> to vector<2x8x8xf32>
    %509 = arith.mulf %504, %508 : vector<2x8x8xf32>
    %510 = vector.shape_cast %509 : vector<2x8x8xf32> to vector<2x64xf32>
    %c3_205 = arith.constant 3 : index
    %c1_206 = arith.constant 1 : index
    %c0_207 = arith.constant 0 : index
    %c0_208 = arith.constant 0 : index
    %511 = vector.load %arg9[%c3_205, %c1_206, %c0_207, %c0_208] : memref<4x2x2x64xf32, #tpu.memory_space<vmem>>, vector<1x1x2x64xf32>
    %512 = vector.shape_cast %511 : vector<1x1x2x64xf32> to vector<2x64xf32>
    %513 = vector.shape_cast %510 : vector<2x64xf32> to vector<1x1x2x64xf32>
    tpu.vector_store %arg9[%c3_205, %c1_206, %c0_207, %c0_208], %513 {strides = array<i32>} : memref<4x2x2x64xf32, #tpu.memory_space<vmem>>, vector<1x1x2x64xf32>,
    %514 = arith.truncf %509 : vector<2x8x8xf32> to vector<2x8x8xbf16>
    %515 = arith.truncf %494 : vector<2x8x32xf32> to vector<2x8x32xbf16>
    %cst_209 = arith.constant dense<0.000000e+00> : vector<2x8x32xf32>
    %516 = tpu.matmul %514, %515, %cst_209 {dimension_numbers = #tpu.dot_dimension_numbers<[2], [1], [1], [2], [0, 0, 0, 1, 1, 2], [0], [0]>} : vector<2x8x8xbf16>, vector<2x8x32xbf16>, vector<2x8x32xf32> -> vector<2x8x32xf32>
    %517 = vector.shape_cast %516 : vector<2x8x32xf32> to vector<16x32xf32>
    %518 = arith.truncf %517 : vector<16x32xf32> to vector<16x32xbf16>
    %c3_210 = arith.constant 3 : index
    %c32_211 = arith.constant 32 : index
    %c0_212 = arith.constant 0 : index
    %519 = vector.load %arg3[%c3_210, %c32_211, %c0_212] : memref<4x64x64xbf16, #tpu.memory_space<vmem>>, vector<1x32x64xbf16>
    %520 = vector.shape_cast %519 : vector<1x32x64xbf16> to vector<32x64xbf16>
    %cst_213 = arith.constant dense<0.000000e+00> : vector<16x64xf32>
    %521 = tpu.matmul %518, %520, %cst_213 {dimension_numbers = #tpu.dot_dimension_numbers<[1], [0], [0], [1], [0, 0, 1, 1], [], []>} : vector<16x32xbf16>, vector<32x64xbf16>, vector<16x64xf32> -> vector<16x64xf32>
    %522 = arith.addf %488, %521 : vector<16x64xf32>
    %523 = arith.addf %420, %522 : vector<16x64xf32>
    %cst_214 = arith.constant dense<0.000000e+00> : vector<16xf32>
    %524 = vector.multi_reduction <add>, %523, %cst_214 [1] : vector<16x64xf32> to vector<16xf32>
    %525 = vector.shape_cast %524 : vector<16xf32> to vector<16x1xf32>
    %cst_215 = arith.constant 6.400000e+01 : f32
    %526 = vector.broadcast %cst_215 : f32 to vector<16x1xf32>
    %527 = arith.divf %525, %526 : vector<16x1xf32>
    %528 = vector.broadcast %527 : vector<16x1xf32> to vector<16x64xf32>
    %529 = arith.subf %523, %528 : vector<16x64xf32>
    %530 = arith.mulf %529, %529 : vector<16x64xf32>
    %cst_216 = arith.constant dense<0.000000e+00> : vector<16xf32>
    %531 = vector.multi_reduction <add>, %530, %cst_216 [1] : vector<16x64xf32> to vector<16xf32>
    %532 = vector.shape_cast %531 : vector<16xf32> to vector<16x1xf32>
    %cst_217 = arith.constant 6.400000e+01 : f32
    %533 = vector.broadcast %cst_217 : f32 to vector<16x1xf32>
    %534 = arith.divf %532, %533 : vector<16x1xf32>
    %535 = vector.broadcast %527 : vector<16x1xf32> to vector<16x64xf32>
    %536 = arith.subf %523, %535 : vector<16x64xf32>
    %cst_218 = arith.constant 9.99999974E-6 : f32
    %537 = vector.broadcast %cst_218 : f32 to vector<16x1xf32>
    %538 = arith.addf %534, %537 : vector<16x1xf32>
    %539 = math.rsqrt %538 : vector<16x1xf32>
    %540 = vector.broadcast %539 : vector<16x1xf32> to vector<16x64xf32>
    %541 = arith.mulf %536, %540 : vector<16x64xf32>
    %542 = vector.broadcast %423 : vector<1x64xf32> to vector<16x64xf32>
    %543 = arith.mulf %541, %542 : vector<16x64xf32>
    %544 = vector.broadcast %424 : vector<1x64xf32> to vector<16x64xf32>
    %545 = arith.addf %543, %544 : vector<16x64xf32>
    %546 = arith.truncf %545 : vector<16x64xf32> to vector<16x64xbf16>
    %c3_219 = arith.constant 3 : index
    %c0_220 = arith.constant 0 : index
    %c0_221 = arith.constant 0 : index
    %547 = vector.load %arg4[%c3_219, %c0_220, %c0_221] : memref<4x64x256xbf16, #tpu.memory_space<vmem>>, vector<1x64x256xbf16>
    %548 = vector.shape_cast %547 : vector<1x64x256xbf16> to vector<64x256xbf16>
    %cst_222 = arith.constant dense<0.000000e+00> : vector<16x256xf32>
    %549 = tpu.matmul %546, %548, %cst_222 {dimension_numbers = #tpu.dot_dimension_numbers<[1], [0], [0], [1], [0, 0, 1, 1], [], []>} : vector<16x64xbf16>, vector<64x256xbf16>, vector<16x256xf32> -> vector<16x256xf32>
    %550 = vector.broadcast %427 : vector<1x256xf32> to vector<16x256xf32>
    %551 = arith.addf %549, %550 : vector<16x256xf32>
    %cst_223 = arith.constant 0.000000e+00 : f32
    %552 = vector.broadcast %cst_223 : f32 to vector<16x256xf32>
    %553 = arith.maximumf %551, %552 : vector<16x256xf32>
    %554 = arith.truncf %553 : vector<16x256xf32> to vector<16x256xbf16>
    %c3_224 = arith.constant 3 : index
    %c0_225 = arith.constant 0 : index
    %c0_226 = arith.constant 0 : index
    %555 = vector.load %arg5[%c3_224, %c0_225, %c0_226] : memref<4x256x64xbf16, #tpu.memory_space<vmem>>, vector<1x256x64xbf16>
    %556 = vector.shape_cast %555 : vector<1x256x64xbf16> to vector<256x64xbf16>
    %cst_227 = arith.constant dense<0.000000e+00> : vector<16x64xf32>
    %557 = tpu.matmul %554, %556, %cst_227 {dimension_numbers = #tpu.dot_dimension_numbers<[1], [0], [0], [1], [0, 0, 1, 1], [], []>} : vector<16x256xbf16>, vector<256x64xbf16>, vector<16x64xf32> -> vector<16x64xf32>
    %558 = vector.broadcast %426 : vector<1x64xf32> to vector<16x64xf32>
    %559 = arith.addf %557, %558 : vector<16x64xf32>
    %560 = arith.addf %523, %559 : vector<16x64xf32>
    %c24 = arith.constant 24 : index
    %c0_228 = arith.constant 0 : index
    %561 = vector.load %arg6[%c24, %c0_228] : memref<26x64xf32, #tpu.memory_space<vmem>>, vector<1x64xf32>
    %c25 = arith.constant 25 : index
    %c0_229 = arith.constant 0 : index
    %562 = vector.load %arg6[%c25, %c0_229] : memref<26x64xf32, #tpu.memory_space<vmem>>, vector<1x64xf32>
    %cst_230 = arith.constant dense<0.000000e+00> : vector<16xf32>
    %563 = vector.multi_reduction <add>, %560, %cst_230 [1] : vector<16x64xf32> to vector<16xf32>
    %564 = vector.shape_cast %563 : vector<16xf32> to vector<16x1xf32>
    %cst_231 = arith.constant 6.400000e+01 : f32
    %565 = vector.broadcast %cst_231 : f32 to vector<16x1xf32>
    %566 = arith.divf %564, %565 : vector<16x1xf32>
    %567 = vector.broadcast %566 : vector<16x1xf32> to vector<16x64xf32>
    %568 = arith.subf %560, %567 : vector<16x64xf32>
    %569 = arith.mulf %568, %568 : vector<16x64xf32>
    %cst_232 = arith.constant dense<0.000000e+00> : vector<16xf32>
    %570 = vector.multi_reduction <add>, %569, %cst_232 [1] : vector<16x64xf32> to vector<16xf32>
    %571 = vector.shape_cast %570 : vector<16xf32> to vector<16x1xf32>
    %cst_233 = arith.constant 6.400000e+01 : f32
    %572 = vector.broadcast %cst_233 : f32 to vector<16x1xf32>
    %573 = arith.divf %571, %572 : vector<16x1xf32>
    %574 = vector.broadcast %566 : vector<16x1xf32> to vector<16x64xf32>
    %575 = arith.subf %560, %574 : vector<16x64xf32>
    %cst_234 = arith.constant 9.99999974E-6 : f32
    %576 = vector.broadcast %cst_234 : f32 to vector<16x1xf32>
    %577 = arith.addf %573, %576 : vector<16x1xf32>
    %578 = math.rsqrt %577 : vector<16x1xf32>
    %579 = vector.broadcast %578 : vector<16x1xf32> to vector<16x64xf32>
    %580 = arith.mulf %575, %579 : vector<16x64xf32>
    %581 = vector.broadcast %561 : vector<1x64xf32> to vector<16x64xf32>
    %582 = arith.mulf %580, %581 : vector<16x64xf32>
    %583 = vector.broadcast %562 : vector<1x64xf32> to vector<16x64xf32>
    %584 = arith.addf %582, %583 : vector<16x64xf32>
    %585 = vector.shape_cast %584 : vector<16x64xf32> to vector<2x8x64xf32>
    %cst_235 = arith.constant dense<0.000000e+00> : vector<2x64xf32>
    %586 = vector.multi_reduction <add>, %585, %cst_235 [1] : vector<2x8x64xf32> to vector<2x64xf32>
    %cst_236 = arith.constant 8.000000e+00 : f32
    %587 = vector.broadcast %cst_236 : f32 to vector<2x64xf32>
    %588 = arith.divf %586, %587 : vector<2x64xf32>
    %c0_237 = arith.constant 0 : index
    %c0_238 = arith.constant 0 : index
    %589 = vector.load %arg8[%c0_237, %c0_238] : memref<2x64xf32, #tpu.memory_space<vmem>>, vector<2x64xf32>
    tpu.vector_store %arg8[%c0_237, %c0_238], %588 {strides = array<i32>} : memref<2x64xf32, #tpu.memory_space<vmem>>, vector<2x64xf32>,
    return
  }
  func.func @transform_0(%arg0: i32) -> (i32, i32) {
    %c0_i32 = arith.constant 0 : i32
    %c0_i32_0 = arith.constant 0 : i32
    return %arg0, %c0_i32 : i32, i32
  }
  func.func @transform_1(%arg0: i32) -> (i32, i32, i32) {
    %c0_i32 = arith.constant 0 : i32
    %c0_i32_0 = arith.constant 0 : i32
    %c0_i32_1 = arith.constant 0 : i32
    %c0_i32_2 = arith.constant 0 : i32
    return %c0_i32, %c0_i32_0, %c0_i32_1 : i32, i32, i32
  }
  func.func @transform_2(%arg0: i32) -> (i32, i32, i32) {
    %c0_i32 = arith.constant 0 : i32
    %c0_i32_0 = arith.constant 0 : i32
    %c0_i32_1 = arith.constant 0 : i32
    %c0_i32_2 = arith.constant 0 : i32
    return %c0_i32, %c0_i32_0, %c0_i32_1 : i32, i32, i32
  }
  func.func @transform_3(%arg0: i32) -> (i32, i32, i32) {
    %c0_i32 = arith.constant 0 : i32
    %c0_i32_0 = arith.constant 0 : i32
    %c0_i32_1 = arith.constant 0 : i32
    %c0_i32_2 = arith.constant 0 : i32
    return %c0_i32, %c0_i32_0, %c0_i32_1 : i32, i32, i32
  }
  func.func @transform_4(%arg0: i32) -> (i32, i32, i32) {
    %c0_i32 = arith.constant 0 : i32
    %c0_i32_0 = arith.constant 0 : i32
    %c0_i32_1 = arith.constant 0 : i32
    %c0_i32_2 = arith.constant 0 : i32
    return %c0_i32, %c0_i32_0, %c0_i32_1 : i32, i32, i32
  }
  func.func @transform_5(%arg0: i32) -> (i32, i32) {
    %c0_i32 = arith.constant 0 : i32
    %c0_i32_0 = arith.constant 0 : i32
    %c0_i32_1 = arith.constant 0 : i32
    return %c0_i32, %c0_i32_0 : i32, i32
  }
  func.func @transform_6(%arg0: i32) -> (i32, i32) {
    %c0_i32 = arith.constant 0 : i32
    %c0_i32_0 = arith.constant 0 : i32
    %c0_i32_1 = arith.constant 0 : i32
    return %c0_i32, %c0_i32_0 : i32, i32
  }
  func.func @transform_7(%arg0: i32) -> (i32, i32) {
    %c0_i32 = arith.constant 0 : i32
    %c0_i32_0 = arith.constant 0 : i32
    return %arg0, %c0_i32 : i32, i32
  }
  func.func @transform_8(%arg0: i32) -> (i32, i32, i32, i32) {
    %c0_i32 = arith.constant 0 : i32
    %c0_i32_0 = arith.constant 0 : i32
    %c0_i32_1 = arith.constant 0 : i32
    %c0_i32_2 = arith.constant 0 : i32
    return %c0_i32, %c0_i32_0, %arg0, %c0_i32_1 : i32, i32, i32, i32
  }
}

</mosaic_0001>

<llo_original>
// kernel: tpu_custom_call.1
$region0: #{tpu_custom_call.1}
  #allocation0 [shape = 'u32[]', space=smem, size = 0x4, offset = 0x4, fixed_abs, tag = 'smem constant byte address 0x4 - core index']
  #allocation1 [shape = 'u32[144,128]{1,0:T(1,128)}', space=vmem, size = 0x12000, scoped, tag = 'internal scratch']
  %s0 = inlined_call_operand.vmem [shape: f32[16,64], index: 0, kind: input, shape index: {}]
  %s1 = inlined_call_operand.vmem [shape: bf16[4,64,192], index: 1, kind: input, shape index: {}]
  %s2 = inlined_call_operand.vmem [shape: bf16[4,64,64], index: 2, kind: input, shape index: {}]
  %s3 = inlined_call_operand.vmem [shape: bf16[4,64,256], index: 3, kind: input, shape index: {}]
  %s4 = inlined_call_operand.vmem [shape: bf16[4,256,64], index: 4, kind: input, shape index: {}]
  %s5 = inlined_call_operand.vmem [shape: f32[26,64], index: 5, kind: input, shape index: {}]
  %s6 = inlined_call_operand.vmem [shape: f32[4,256], index: 6, kind: input, shape index: {}]
  %s7 = inlined_call_operand.hbm [shape: f32[2,64], index: 7, kind: output, shape index: {0}]
  %s8 = inlined_call_operand.hbm [shape: f32[4,2,2,64], index: 8, kind: output, shape index: {1}]
  %9 = xla_tuple %s7, %s8
  %s10 = sld [smem:[#allocation0]]
  $region46: #{tpu_custom_call.1} parent=0
    _
  %s12 = ssub.s32 1, %s10
  %s13 = scalar_select 0, %s12, %s10
  $region1: #{tpu_custom_call.1} parent=0
    #allocation2 [shape = 'u8[1024]{0}', space=vmem, size = 0x400, scoped, tag = 'output window, operand 0, single buffered']
    #allocation3 [shape = 's32[1]{0}', space=sflag, size = 0x4, scoped, tag = 'scoped memory for tpu_custom_call.1']
    #allocation4 [shape = 'u8[8192]{0}', space=vmem, size = 0x2000, scoped, tag = 'output window, operand 1, single buffered']
    #allocation5 [shape = 's32[1]{0}', space=sflag, size = 0x4, scoped, tag = 'scoped memory for tpu_custom_call.1']
    %14 = vsyncpa [#allocation3], 0
    %15 = vsyncpa [#allocation5], 0
    // Predicated region
    $region2: #{tpu_custom_call.1} parent=1 // pred_check
      _
    $region3: #{tpu_custom_call.1} parent=1 // pred_check_branch
      %17 = sbr.rel (0) target = $region5
    $region4: #{tpu_custom_call.1} parent=1 // pred_region
      _
    $region5: #{tpu_custom_call.1} parent=1 // pred_fallthru
      _
    // Predicated region
    $region6: #{tpu_custom_call.1} parent=1 // pred_check
      _
    $region7: #{tpu_custom_call.1} parent=1 // pred_check_branch
      %19 = sbr.rel (0) target = $region9
    $region8: #{tpu_custom_call.1} parent=1 // pred_region
      _
    $region9: #{tpu_custom_call.1} parent=1 // pred_fallthru
      _
    // Predicated region
    $region10: #{tpu_custom_call.1} parent=1 // pred_check
      _
    $region11: #{tpu_custom_call.1} parent=1 // pred_check_branch
      %21 = sbr.rel (0) target = $region13
    $region12: #{tpu_custom_call.1} parent=1 // pred_region
      _
    $region13: #{tpu_custom_call.1} parent=1 // pred_fallthru
      _
    // Predicated region
    $region14: #{tpu_custom_call.1} parent=1 // pred_check
      _
    $region15: #{tpu_custom_call.1} parent=1 // pred_check_branch
      %23 = sbr.rel (0) target = $region17
    $region16: #{tpu_custom_call.1} parent=1 // pred_region
      _
    $region17: #{tpu_custom_call.1} parent=1 // pred_fallthru
      _
    // Predicated region
    $region18: #{tpu_custom_call.1} parent=1 // pred_check
      _
    $region19: #{tpu_custom_call.1} parent=1 // pred_check_branch
      %25 = sbr.rel (0) target = $region21
    $region20: #{tpu_custom_call.1} parent=1 // pred_region
      _
    $region21: #{tpu_custom_call.1} parent=1 // pred_fallthru
      _
    // Predicated region
    $region22: #{tpu_custom_call.1} parent=1 // pred_check
      _
    $region23: #{tpu_custom_call.1} parent=1 // pred_check_branch
      %27 = sbr.rel (0) target = $region25
    $region24: #{tpu_custom_call.1} parent=1 // pred_region
      _
    $region25: #{tpu_custom_call.1} parent=1 // pred_fallthru
      _
    // Predicated region
    $region26: #{tpu_custom_call.1} parent=1 // pred_check
      _
    $region27: #{tpu_custom_call.1} parent=1 // pred_check_branch
      %29 = sbr.rel (0) target = $region29
    $region28: #{tpu_custom_call.1} parent=1 // pred_region
      _
    $region29: #{tpu_custom_call.1} parent=1 // pred_fallthru
      _
    %v31 = vld [vmem:[%s0] sm:$0xff]
    %v32 = vld [vmem:[%s0 + $0x8] sm:$0xff]
    %v33 = vld [vmem:[%s5] sm:$0x1]
    %v34 = vld [vmem:[%s5 + $0x1] sm:$0x1]
    %v35 = vld [vmem:[%s5 + $0x2] sm:$0x1]
    %v36 = vld [vmem:[%s5 + $0x3] sm:$0x1]
    %v37 = vld [vmem:[%s5 + $0x4] sm:$0x1]
    %v38 = vld [vmem:[%s5 + $0x5] sm:$0x1]
    %v39 = vld [vmem:[%s6] ss:$4 sm:$0x3]
    %vm40 = vcmask 523264
    %v41 = vsel %vm40, %v31, 0.0
    %42 = vadd.xlane.f32.xlu0 %v41
    %v43 = vpop.xlane.xlu0 %42
    %v44 = vsel %vm40, %v32, 0.0
    %45 = vadd.xlane.f32.xlu0 %v44
    %v46 = vpop.xlane.xlu0 %45
    %v47 = vrcp.pop 64.0
    %v48 = vmul.f32 %v43, %v47
    %v49 = vmul.f32 %v46, %v47
    %v50 = vsub.f32 %v31, %v48
    %v51 = vsub.f32 %v32, %v49
    %v52 = vmul.f32 %v50, %v50
    %v53 = vmul.f32 %v51, %v51
    %v54 = vsel %vm40, %v52, 0.0
    %55 = vadd.xlane.f32.xlu0 %v54
    %v56 = vpop.xlane.xlu0 %55
    %v57 = vsel %vm40, %v53, 0.0
    %58 = vadd.xlane.f32.xlu0 %v57
    %v59 = vpop.xlane.xlu0 %58
    %v60 = vmul.f32 %v56, %v47
    %v61 = vmul.f32 %v59, %v47
    %v62 = vadd.f32 %v60, 1e-05
    %v63 = vadd.f32 %v61, 1e-05
    %v64 = vrsqrt.pop %v62
    %v65 = vrsqrt.pop %v63
    %v66 = vmul.f32 %v50, %v64
    %v67 = vmul.f32 %v51, %v65
    %v68 = vlaneseq
    %v69 = vshrl.u32 %v68, 7
    %v70 = vsub.s32 0, %v69
    %v71 = vrot.slane %v33, %v70
    %v72 = vmul.f32 %v66, %v71
    %v73 = vmul.f32 %v67, %v71
    %v74 = vlaneseq
    %v75 = vshrl.u32 %v74, 7
    %v76 = vsub.s32 0, %v75
    %v77 = vrot.slane %v34, %v76
    %v78 = vadd.f32 %v72, %v77
    %v79 = vadd.f32 %v73, %v77
    %v80 = vpack.c.bf16 %v79, %v78
    %v81 = vld [vmem:[%s1] sm:$0xff]
    %v82 = vld [vmem:[%s1 + $0x8] sm:$0xff]
    %v83 = vld [vmem:[%s1 + $0x10] sm:$0xff]
    %v84 = vld [vmem:[%s1 + $0x18] sm:$0xff]
    %v85 = vld [vmem:[%s1 + $0x20] sm:$0xff]
    %v86 = vld [vmem:[%s1 + $0x28] sm:$0xff]
    %v87 = vld [vmem:[%s1 + $0x30] sm:$0xff]
    %v88 = vld [vmem:[%s1 + $0x38] sm:$0xff]
    %v97 = vunpack.c.l.b16 %v81
    %v98 = vunpack.c.h.b16 %v81
    %v99 = vunpack.c.l.b16 %v82
    %v100 = vunpack.c.h.b16 %v82
    %v101 = vunpack.c.l.b16 %v83
    %v102 = vunpack.c.h.b16 %v83
    %v103 = vunpack.c.l.b16 %v84
    %v104 = vunpack.c.h.b16 %v84
    %v105 = vunpack.c.l.b16 %v85
    %v106 = vunpack.c.h.b16 %v85
    %v107 = vunpack.c.l.b16 %v86
    %v108 = vunpack.c.h.b16 %v86
    %v109 = vunpack.c.l.b16 %v87
    %v110 = vunpack.c.h.b16 %v87
    %v111 = vunpack.c.l.b16 %v88
    %v112 = vunpack.c.h.b16 %v88
    %v113 = vpack.c.b16 %v99, %v97
    %v114 = vpack.c.b16 %v100, %v98
    %v115 = vpack.c.b16 %v103, %v101
    %v116 = vpack.c.b16 %v104, %v102
    %v117 = vpack.c.b16 %v107, %v105
    %v118 = vpack.c.b16 %v108, %v106
    %v119 = vpack.c.b16 %v111, %v109
    %v120 = vpack.c.b16 %v112, %v110
    %v130 = vsel %vm40, %v80, 0
    %132 = vmatprep.subr.bf16.mxu0 %v114
    %133 = vmatpush1.bf16.msra.mxu0 %v113
    %134 = vmatprep.subr.bf16.mxu0 %v116
    %135 = vmatpush1.bf16.msra.mxu0 %v115
    %136 = vmatprep.subr.bf16.mxu0 %v118
    %137 = vmatpush1.bf16.msra.mxu0 %v117
    %138 = vmatprep.subr.bf16.mxu0 %v120
    %139 = vmatpush1.bf16.msra.mxu0 %v119
    %140 = vmatprep.subr.bf16.mxu0 0
    %141 = vmatpush1.bf16.msra.mxu0 0
    %142 = vmatprep.subr.bf16.mxu0 0
    %143 = vmatpush1.bf16.msra.mxu0 0
    %144 = vmatprep.subr.bf16.mxu0 0
    %145 = vmatpush1.bf16.msra.mxu0 0
    %146 = vmatprep.subr.bf16.mxu0 0
    %147 = vmatpush1.bf16.msra.mxu0 0
    %148 = vmatprep.subr.bf16.mxu0 0
    %149 = vmatpush1.bf16.msra.mxu0 0
    %150 = vmatprep.subr.bf16.mxu0 0
    %151 = vmatpush1.bf16.msra.mxu0 0
    %152 = vmatprep.subr.bf16.mxu0 0
    %153 = vmatpush1.bf16.msra.mxu0 0
    %154 = vmatprep.subr.bf16.mxu0 0
    %155 = vmatpush1.bf16.msra.mxu0 0
    %156 = vmatprep.subr.bf16.mxu0 0
    %157 = vmatpush1.bf16.msra.mxu0 0
    %158 = vmatprep.subr.bf16.mxu0 0
    %159 = vmatpush1.bf16.msra.mxu0 0
    %160 = vmatprep.subr.bf16.mxu0 0
    %161 = vmatpush1.bf16.msra.mxu0 0
    %162 = vmatprep.subr.bf16.mxu0 0
    %163 = vmatpush1.bf16.msra.mxu0 0
    %164 = vmatprep.mubr.bf16.mxu0 0
    %165 = vmatmul.mubr.bf16.gmra.mrb[0].mxu0 %v130
    %v166 = vpop.f32.mrb[0].mxu0
    %v167 = vadd.f32 0.0, %v166
    %v168 = vpop.f32.mrb[0].mxu0
    %v169 = vadd.f32 0.0, %v168
    %v170 = vpop.f32.mrb[0].mxu0
    %v171 = vadd.f32 0.0, %v170
    %v172 = vpop.f32.mrb[0].mxu0
    %v173 = vadd.f32 0.0, %v172
    %174 = vdwg.mxu0
    %v175 = vpack.c.bf16 %v167, %v167
    %v176 = vpack.c.bf16 %v171, %v171
    %178 = vrot.lane.b32.xlu0 %v175, 64
    %v179 = vpop.permute.xlu0 %178
    %vm180 = vcmask 261120
    %v182 = vsel %vm180, %v175, 0
    %v185 = vsel %vm180, %v179, 0
    %187 = vmatprep.subr.bf16.mxu0 0
    %188 = vmatpush1.bf16.xpose.msra.mxu0 %v185
    %189 = vmatprep.subr.bf16.mxu0 0
    %190 = vmatpush1.bf16.xpose.msra.mxu0 0
    %191 = vmatprep.subr.bf16.mxu0 0
    %192 = vmatpush1.bf16.xpose.msra.mxu0 0
    %193 = vmatprep.subr.bf16.mxu0 0
    %194 = vmatpush1.bf16.xpose.msra.mxu0 0
    %195 = vmatprep.subr.bf16.mxu0 0
    %196 = vmatpush1.bf16.xpose.msra.mxu0 0
    %197 = vmatprep.subr.bf16.mxu0 0
    %198 = vmatpush1.bf16.xpose.msra.mxu0 0
    %199 = vmatprep.subr.bf16.mxu0 0
    %200 = vmatpush1.bf16.xpose.msra.mxu0 0
    %201 = vmatprep.subr.bf16.mxu0 0
    %202 = vmatpush1.bf16.xpose.msra.mxu0 0
    %203 = vmatprep.subr.bf16.mxu0 0
    %204 = vmatpush1.bf16.xpose.msra.mxu0 0
    %205 = vmatprep.subr.bf16.mxu0 0
    %206 = vmatpush1.bf16.xpose.msra.mxu0 0
    %207 = vmatprep.subr.bf16.mxu0 0
    %208 = vmatpush1.bf16.xpose.msra.mxu0 0
    %209 = vmatprep.subr.bf16.mxu0 0
    %210 = vmatpush1.bf16.xpose.msra.mxu0 0
    %211 = vmatprep.subr.bf16.mxu0 0
    %212 = vmatpush1.bf16.xpose.msra.mxu0 0
    %213 = vmatprep.subr.bf16.mxu0 0
    %214 = vmatpush1.bf16.xpose.msra.mxu0 0
    %215 = vmatprep.subr.bf16.mxu0 0
    %216 = vmatpush1.bf16.xpose.msra.mxu0 0
    %217 = vmatprep.subr.bf16.mxu0 0
    %218 = vmatpush1.bf16.xpose.msra.mxu0 0
    %219 = vmatprep.mubr.bf16.mxu0 0
    %220 = vmatmul.mubr.bf16.gmra.mrb[0].mxu0 %v182
    %v221 = vpop.f32.mrb[0].mxu0
    %v222 = vadd.f32 0.0, %v221
    %v223 = vpop.f32.mrb[0].mxu0
    %v224 = vpop.f32.mrb[0].mxu0
    %v225 = vpop.f32.mrb[0].mxu0
    %226 = vdwg.mxu0
    %228 = vrot.lane.b32.xlu0 %v176, 64
    %v229 = vpop.permute.xlu0 %228
    %v231 = vsel %vm180, %v176, 0
    %v234 = vsel %vm180, %v229, 0
    %236 = vmatprep.subr.bf16.mxu0 0
    %237 = vmatpush1.bf16.xpose.msra.mxu0 %v234
    %238 = vmatprep.subr.bf16.mxu0 0
    %239 = vmatpush1.bf16.xpose.msra.mxu0 0
    %240 = vmatprep.subr.bf16.mxu0 0
    %241 = vmatpush1.bf16.xpose.msra.mxu0 0
    %242 = vmatprep.subr.bf16.mxu0 0
    %243 = vmatpush1.bf16.xpose.msra.mxu0 0
    %244 = vmatprep.subr.bf16.mxu0 0
    %245 = vmatpush1.bf16.xpose.msra.mxu0 0
    %246 = vmatprep.subr.bf16.mxu0 0
    %247 = vmatpush1.bf16.xpose.msra.mxu0 0
    %248 = vmatprep.subr.bf16.mxu0 0
    %249 = vmatpush1.bf16.xpose.msra.mxu0 0
    %250 = vmatprep.subr.bf16.mxu0 0
    %251 = vmatpush1.bf16.xpose.msra.mxu0 0
    %252 = vmatprep.subr.bf16.mxu0 0
    %253 = vmatpush1.bf16.xpose.msra.mxu0 0
    %254 = vmatprep.subr.bf16.mxu0 0
    %255 = vmatpush1.bf16.xpose.msra.mxu0 0
    %256 = vmatprep.subr.bf16.mxu0 0
    %257 = vmatpush1.bf16.xpose.msra.mxu0 0
    %258 = vmatprep.subr.bf16.mxu0 0
    %259 = vmatpush1.bf16.xpose.msra.mxu0 0
    %260 = vmatprep.subr.bf16.mxu0 0
    %261 = vmatpush1.bf16.xpose.msra.mxu0 0
    %262 = vmatprep.subr.bf16.mxu0 0
    %263 = vmatpush1.bf16.xpose.msra.mxu0 0
    %264 = vmatprep.subr.bf16.mxu0 0
    %265 = vmatpush1.bf16.xpose.msra.mxu0 0
    %266 = vmatprep.subr.bf16.mxu0 0
    %267 = vmatpush1.bf16.xpose.msra.mxu0 0
    %268 = vmatprep.mubr.bf16.mxu0 0
    %269 = vmatmul.mubr.bf16.gmra.mrb[0].mxu0 %v231
    %v270 = vpop.f32.mrb[0].mxu0
    %v271 = vadd.f32 0.0, %v270
    %v272 = vpop.f32.mrb[0].mxu0
    %v273 = vpop.f32.mrb[0].mxu0
    %v274 = vpop.f32.mrb[0].mxu0
    %275 = vdwg.mxu0
    %v276 = vmul.f32 %v222, 0.17677669
    %v277 = vmul.f32 %v271, 0.17677669
    %vm278 = vcmask 64512
    %v279 = vsel %vm278, %v276, -inf
    %280 = vmax.xlane.f32.xlu0 %v279
    %v281 = vpop.xlane.xlu0 %280
    %v282 = vsel %vm278, %v277, -inf
    %283 = vmax.xlane.f32.xlu0 %v282
    %v284 = vpop.xlane.xlu0 %283
    %v285 = vsub.f32 %v276, %v281
    %v286 = vsub.f32 %v277, %v284
    %v287 = vmul.f32 %v285, 1.442695
    %v288 = vpow.pop %v287
    %v289 = vmul.f32 %v286, 1.442695
    %v290 = vpow.pop %v289
    %v291 = vsel %vm278, %v288, 0.0
    %292 = vadd.xlane.f32.xlu0 %v291
    %v293 = vpop.xlane.xlu0 %292
    %v294 = vsel %vm278, %v290, 0.0
    %295 = vadd.xlane.f32.xlu0 %v294
    %v296 = vpop.xlane.xlu0 %295
    %v297 = vrcp.pop %v293
    %v298 = vrcp.pop %v296
    %v299 = vmul.f32 %v288, %v297
    %v300 = vmul.f32 %v290, %v298
    %v301 = vcombine.high %v299, 0.0
    %v303 = vunpack.c.l.s4 1983009808
    %v304 = vunpack.c.0.s8 %v303
    %v305 = vlaneseq
    %v306 = vshrl.u32 %v305, 7
    %v307 = vsub.s32 %v304, %v306
    %v308 = vrot.slane %v299, %v307
    %v310 = vunpack.c.l.s4 1983009808
    %v311 = vunpack.c.0.s8 %v310
    %v312 = vlaneseq
    %v313 = vshrl.u32 %v312, 7
    %v314 = vsub.s32 %v311, %v313
    %v315 = vrot.slane %v301, %v314
    %v316 = vcombine.high %v300, 0.0
    %v318 = vunpack.c.l.s4 1983009808
    %v319 = vunpack.c.0.s8 %v318
    %v320 = vlaneseq
    %v321 = vshrl.u32 %v320, 7
    %v322 = vsub.s32 %v319, %v321
    %v323 = vrot.slane %v300, %v322
    %v325 = vunpack.c.l.s4 1983009808
    %v326 = vunpack.c.0.s8 %v325
    %v327 = vlaneseq
    %v328 = vshrl.u32 %v327, 7
    %v329 = vsub.s32 %v326, %v328
    %v330 = vrot.slane %v316, %v329
    %v331 = vcombine.low %v308, %v323
    %v332 = vcombine.high %v308, %v323
    %v334 = vunpack.c.l.s4 1934713408
    %v335 = vunpack.c.0.s8 %v334
    %v336 = vlaneseq
    %v337 = vshrl.u32 %v336, 7
    %v338 = vsub.s32 %v335, %v337
    %v339 = vrot.slane %v331, %v338
    %v341 = vunpack.c.l.s4 1934713408
    %v342 = vunpack.c.0.s8 %v341
    %v343 = vlaneseq
    %v344 = vshrl.u32 %v343, 7
    %v345 = vsub.s32 %v342, %v344
    %v346 = vrot.slane %v332, %v345
    %v347 = vcombine.low %v315, %v330
    %v348 = vcombine.high %v315, %v330
    %v350 = vunpack.c.l.s4 1934713408
    %v351 = vunpack.c.0.s8 %v350
    %v352 = vlaneseq
    %v353 = vshrl.u32 %v352, 7
    %v354 = vsub.s32 %v351, %v353
    %v355 = vrot.slane %v347, %v354
    %v357 = vunpack.c.l.s4 1934713408
    %v358 = vunpack.c.0.s8 %v357
    %v359 = vlaneseq
    %v360 = vshrl.u32 %v359, 7
    %v361 = vsub.s32 %v358, %v360
    %v362 = vrot.slane %v348, %v361
    %v363 = vcombine.high %v339, 0.0
    %v364 = vcombine.high %v346, 0.0
    %v365 = vcombine.high %v355, 0.0
    %v366 = vcombine.high %v362, 0.0
    %368 = vrot.lane.b32.xlu0 %v363, 8
    %v369 = vpop.permute.xlu0 %368
    %372 = vrot.lane.b32.xlu0 %v346, 16
    %v373 = vpop.permute.xlu0 %372
    %376 = vrot.lane.b32.xlu0 %v364, 24
    %v377 = vpop.permute.xlu0 %376
    %380 = vrot.lane.b32.xlu0 %v355, 32
    %v381 = vpop.permute.xlu0 %380
    %384 = vrot.lane.b32.xlu0 %v365, 40
    %v385 = vpop.permute.xlu0 %384
    %388 = vrot.lane.b32.xlu0 %v362, 48
    %v389 = vpop.permute.xlu0 %388
    %392 = vrot.lane.b32.xlu0 %v366, 56
    %v393 = vpop.permute.xlu0 %392
    %v395 = vsel %vm278, %v339, %v369
    %vm396 = vcmask 130048
    %v397 = vsel %vm396, %v395, %v373
    %vm398 = vcmask 195584
    %v399 = vsel %vm398, %v397, %v377
    %v400 = vsel %vm180, %v399, %v381
    %vm401 = vcmask 326656
    %v402 = vsel %vm401, %v400, %v385
    %vm403 = vcmask 392192
    %v404 = vsel %vm403, %v402, %v389
    %vm405 = vcmask 457728
    %v406 = vsel %vm405, %v404, %v393
    %vm407 = vcmask 517120
    %408 = vst.msk [vmem:[#allocation4] sm:$0x3] %vm407, %v406
    %v409 = vpack.c.bf16 %v299, %v299
    %v410 = vpack.c.bf16 %v300, %v300
    %v411 = vpack.c.bf16 %v169, %v169
    %v412 = vpack.c.bf16 %v173, %v173
    %v414 = vsel %vm278, %v409, 0
    %vm416 = vcmask 1043456
    %v418 = vsel %vm416, %v411, 0
    %420 = vmatprep.subr.bf16.mxu0 0
    %421 = vmatpush1.bf16.msra.mxu0 %v418
    %422 = vmatprep.subr.bf16.mxu0 0
    %423 = vmatpush1.bf16.msra.mxu0 0
    %424 = vmatprep.subr.bf16.mxu0 0
    %425 = vmatpush1.bf16.msra.mxu0 0
    %426 = vmatprep.subr.bf16.mxu0 0
    %427 = vmatpush1.bf16.msra.mxu0 0
    %428 = vmatprep.subr.bf16.mxu0 0
    %429 = vmatpush1.bf16.msra.mxu0 0
    %430 = vmatprep.subr.bf16.mxu0 0
    %431 = vmatpush1.bf16.msra.mxu0 0
    %432 = vmatprep.subr.bf16.mxu0 0
    %433 = vmatpush1.bf16.msra.mxu0 0
    %434 = vmatprep.subr.bf16.mxu0 0
    %435 = vmatpush1.bf16.msra.mxu0 0
    %436 = vmatprep.subr.bf16.mxu0 0
    %437 = vmatpush1.bf16.msra.mxu0 0
    %438 = vmatprep.subr.bf16.mxu0 0
    %439 = vmatpush1.bf16.msra.mxu0 0
    %440 = vmatprep.subr.bf16.mxu0 0
    %441 = vmatpush1.bf16.msra.mxu0 0
    %442 = vmatprep.subr.bf16.mxu0 0
    %443 = vmatpush1.bf16.msra.mxu0 0
    %444 = vmatprep.subr.bf16.mxu0 0
    %445 = vmatpush1.bf16.msra.mxu0 0
    %446 = vmatprep.subr.bf16.mxu0 0
    %447 = vmatpush1.bf16.msra.mxu0 0
    %448 = vmatprep.subr.bf16.mxu0 0
    %449 = vmatpush1.bf16.msra.mxu0 0
    %450 = vmatprep.subr.bf16.mxu0 0
    %451 = vmatpush1.bf16.msra.mxu0 0
    %452 = vmatprep.mubr.bf16.mxu0 0
    %453 = vmatmul.mubr.bf16.gmra.mrb[0].mxu0 %v414
    %v454 = vpop.f32.mrb[0].mxu0
    %v455 = vadd.f32 0.0, %v454
    %v456 = vpop.f32.mrb[0].mxu0
    %v457 = vpop.f32.mrb[0].mxu0
    %v458 = vpop.f32.mrb[0].mxu0
    %459 = vdwg.mxu0
    %v461 = vsel %vm278, %v410, 0
    %v464 = vsel %vm416, %v412, 0
    %466 = vmatprep.subr.bf16.mxu0 0
    %467 = vmatpush1.bf16.msra.mxu0 %v464
    %468 = vmatprep.subr.bf16.mxu0 0
    %469 = vmatpush1.bf16.msra.mxu0 0
    %470 = vmatprep.subr.bf16.mxu0 0
    %471 = vmatpush1.bf16.msra.mxu0 0
    %472 = vmatprep.subr.bf16.mxu0 0
    %473 = vmatpush1.bf16.msra.mxu0 0
    %474 = vmatprep.subr.bf16.mxu0 0
    %475 = vmatpush1.bf16.msra.mxu0 0
    %476 = vmatprep.subr.bf16.mxu0 0
    %477 = vmatpush1.bf16.msra.mxu0 0
    %478 = vmatprep.subr.bf16.mxu0 0
    %479 = vmatpush1.bf16.msra.mxu0 0
    %480 = vmatprep.subr.bf16.mxu0 0
    %481 = vmatpush1.bf16.msra.mxu0 0
    %482 = vmatprep.subr.bf16.mxu0 0
    %483 = vmatpush1.bf16.msra.mxu0 0
    %484 = vmatprep.subr.bf16.mxu0 0
    %485 = vmatpush1.bf16.msra.mxu0 0
    %486 = vmatprep.subr.bf16.mxu0 0
    %487 = vmatpush1.bf16.msra.mxu0 0
    %488 = vmatprep.subr.bf16.mxu0 0
    %489 = vmatpush1.bf16.msra.mxu0 0
    %490 = vmatprep.subr.bf16.mxu0 0
    %491 = vmatpush1.bf16.msra.mxu0 0
    %492 = vmatprep.subr.bf16.mxu0 0
    %493 = vmatpush1.bf16.msra.mxu0 0
    %494 = vmatprep.subr.bf16.mxu0 0
    %495 = vmatpush1.bf16.msra.mxu0 0
    %496 = vmatprep.subr.bf16.mxu0 0
    %497 = vmatpush1.bf16.msra.mxu0 0
    %498 = vmatprep.mubr.bf16.mxu0 0
    %499 = vmatmul.mubr.bf16.gmra.mrb[0].mxu0 %v461
    %v500 = vpop.f32.mrb[0].mxu0
    %v501 = vadd.f32 0.0, %v500
    %v502 = vpop.f32.mrb[0].mxu0
    %v503 = vpop.f32.mrb[0].mxu0
    %v504 = vpop.f32.mrb[0].mxu0
    %505 = vdwg.mxu0
    %v506 = vpack.c.bf16 %v501, %v455
    %v507 = vld [vmem:[%s2] sm:$0xf]
    %v508 = vld [vmem:[%s2 + $0x4] sm:$0xf]
    %v509 = vld [vmem:[%s2 + $0x8] sm:$0xf]
    %v510 = vld [vmem:[%s2 + $0xc] sm:$0xf]
    %v515 = vunpack.c.l.b16 %v507
    %v516 = vunpack.c.l.b16 %v508
    %v517 = vunpack.c.l.b16 %v509
    %v518 = vunpack.c.l.b16 %v510
    %v519 = vpack.c.b16 %v516, %v515
    %v520 = vpack.c.b16 %v518, %v517
    %v524 = vsel %vm180, %v506, 0
    %526 = vmatprep.subr.bf16.mxu0 0
    %527 = vmatpush1.bf16.msra.mxu0 %v519
    %528 = vmatprep.subr.bf16.mxu0 0
    %529 = vmatpush1.bf16.msra.mxu0 %v520
    %530 = vmatprep.subr.bf16.mxu0 0
    %531 = vmatpush1.bf16.msra.mxu0 0
    %532 = vmatprep.subr.bf16.mxu0 0
    %533 = vmatpush1.bf16.msra.mxu0 0
    %534 = vmatprep.subr.bf16.mxu0 0
    %535 = vmatpush1.bf16.msra.mxu0 0
    %536 = vmatprep.subr.bf16.mxu0 0
    %537 = vmatpush1.bf16.msra.mxu0 0
    %538 = vmatprep.subr.bf16.mxu0 0
    %539 = vmatpush1.bf16.msra.mxu0 0
    %540 = vmatprep.subr.bf16.mxu0 0
    %541 = vmatpush1.bf16.msra.mxu0 0
    %542 = vmatprep.subr.bf16.mxu0 0
    %543 = vmatpush1.bf16.msra.mxu0 0
    %544 = vmatprep.subr.bf16.mxu0 0
    %545 = vmatpush1.bf16.msra.mxu0 0
    %546 = vmatprep.subr.bf16.mxu0 0
    %547 = vmatpush1.bf16.msra.mxu0 0
    %548 = vmatprep.subr.bf16.mxu0 0
    %549 = vmatpush1.bf16.msra.mxu0 0
    %550 = vmatprep.subr.bf16.mxu0 0
    %551 = vmatpush1.bf16.msra.mxu0 0
    %552 = vmatprep.subr.bf16.mxu0 0
    %553 = vmatpush1.bf16.msra.mxu0 0
    %554 = vmatprep.subr.bf16.mxu0 0
    %555 = vmatpush1.bf16.msra.mxu0 0
    %556 = vmatprep.subr.bf16.mxu0 0
    %557 = vmatpush1.bf16.msra.mxu0 0
    %558 = vmatprep.mubr.bf16.mxu0 0
    %559 = vmatmul.mubr.bf16.gmra.mrb[0].mxu0 %v524
    %v560 = vpop.f32.mrb[0].mxu0
    %v561 = vadd.f32 0.0, %v560
    %v562 = vpop.f32.mrb[0].mxu0
    %v563 = vpop.f32.mrb[0].mxu0
    %v564 = vadd.f32 0.0, %v563
    %v565 = vpop.f32.mrb[0].mxu0
    %566 = vdwg.mxu0
    %v567 = vlaneseq
    %v568 = vshrl.u32 %v567, 7
    %v569 = vsub.s32 0, %v568
    %v570 = vrot.slane %v37, %v569
    %v571 = vadd.f32 %v570, %v561
    %v572 = vadd.f32 %v570, %v564
    %573 = vrot.lane.b32.xlu0 %v175, 96
    %v574 = vpop.permute.xlu0 %573
    %575 = vrot.lane.b32.xlu0 %v175, 32
    %v576 = vpop.permute.xlu0 %575
    %v578 = vsel %vm180, %v574, 0
    %v581 = vsel %vm180, %v576, 0
    %583 = vmatprep.subr.bf16.mxu0 0
    %584 = vmatpush1.bf16.xpose.msra.mxu0 %v581
    %585 = vmatprep.subr.bf16.mxu0 0
    %586 = vmatpush1.bf16.xpose.msra.mxu0 0
    %587 = vmatprep.subr.bf16.mxu0 0
    %588 = vmatpush1.bf16.xpose.msra.mxu0 0
    %589 = vmatprep.subr.bf16.mxu0 0
    %590 = vmatpush1.bf16.xpose.msra.mxu0 0
    %591 = vmatprep.subr.bf16.mxu0 0
    %592 = vmatpush1.bf16.xpose.msra.mxu0 0
    %593 = vmatprep.subr.bf16.mxu0 0
    %594 = vmatpush1.bf16.xpose.msra.mxu0 0
    %595 = vmatprep.subr.bf16.mxu0 0
    %596 = vmatpush1.bf16.xpose.msra.mxu0 0
    %597 = vmatprep.subr.bf16.mxu0 0
    %598 = vmatpush1.bf16.xpose.msra.mxu0 0
    %599 = vmatprep.subr.bf16.mxu0 0
    %600 = vmatpush1.bf16.xpose.msra.mxu0 0
    %601 = vmatprep.subr.bf16.mxu0 0
    %602 = vmatpush1.bf16.xpose.msra.mxu0 0
    %603 = vmatprep.subr.bf16.mxu0 0
    %604 = vmatpush1.bf16.xpose.msra.mxu0 0
    %605 = vmatprep.subr.bf16.mxu0 0
    %606 = vmatpush1.bf16.xpose.msra.mxu0 0
    %607 = vmatprep.subr.bf16.mxu0 0
    %608 = vmatpush1.bf16.xpose.msra.mxu0 0
    %609 = vmatprep.subr.bf16.mxu0 0
    %610 = vmatpush1.bf16.xpose.msra.mxu0 0
    %611 = vmatprep.subr.bf16.mxu0 0
    %612 = vmatpush1.bf16.xpose.msra.mxu0 0
    %613 = vmatprep.subr.bf16.mxu0 0
    %614 = vmatpush1.bf16.xpose.msra.mxu0 0
    %615 = vmatprep.mubr.bf16.mxu0 0
    %616 = vmatmul.mubr.bf16.gmra.mrb[0].mxu0 %v578
    %v617 = vpop.f32.mrb[0].mxu0
    %v618 = vadd.f32 0.0, %v617
    %v619 = vpop.f32.mrb[0].mxu0
    %v620 = vpop.f32.mrb[0].mxu0
    %v621 = vpop.f32.mrb[0].mxu0
    %622 = vdwg.mxu0
    %623 = vrot.lane.b32.xlu0 %v176, 96
    %v624 = vpop.permute.xlu0 %623
    %625 = vrot.lane.b32.xlu0 %v176, 32
    %v626 = vpop.permute.xlu0 %625
    %v628 = vsel %vm180, %v624, 0
    %v631 = vsel %vm180, %v626, 0
    %633 = vmatprep.subr.bf16.mxu0 0
    %634 = vmatpush1.bf16.xpose.msra.mxu0 %v631
    %635 = vmatprep.subr.bf16.mxu0 0
    %636 = vmatpush1.bf16.xpose.msra.mxu0 0
    %637 = vmatprep.subr.bf16.mxu0 0
    %638 = vmatpush1.bf16.xpose.msra.mxu0 0
    %639 = vmatprep.subr.bf16.mxu0 0
    %640 = vmatpush1.bf16.xpose.msra.mxu0 0
    %641 = vmatprep.subr.bf16.mxu0 0
    %642 = vmatpush1.bf16.xpose.msra.mxu0 0
    %643 = vmatprep.subr.bf16.mxu0 0
    %644 = vmatpush1.bf16.xpose.msra.mxu0 0
    %645 = vmatprep.subr.bf16.mxu0 0
    %646 = vmatpush1.bf16.xpose.msra.mxu0 0
    %647 = vmatprep.subr.bf16.mxu0 0
    %648 = vmatpush1.bf16.xpose.msra.mxu0 0
    %649 = vmatprep.subr.bf16.mxu0 0
    %650 = vmatpush1.bf16.xpose.msra.mxu0 0
    %651 = vmatprep.subr.bf16.mxu0 0
    %652 = vmatpush1.bf16.xpose.msra.mxu0 0
    %653 = vmatprep.subr.bf16.mxu0 0
    %654 = vmatpush1.bf16.xpose.msra.mxu0 0
    %655 = vmatprep.subr.bf16.mxu0 0
    %656 = vmatpush1.bf16.xpose.msra.mxu0 0
    %657 = vmatprep.subr.bf16.mxu0 0
    %658 = vmatpush1.bf16.xpose.msra.mxu0 0
    %659 = vmatprep.subr.bf16.mxu0 0
    %660 = vmatpush1.bf16.xpose.msra.mxu0 0
    %661 = vmatprep.subr.bf16.mxu0 0
    %662 = vmatpush1.bf16.xpose.msra.mxu0 0
    %663 = vmatprep.subr.bf16.mxu0 0
    %664 = vmatpush1.bf16.xpose.msra.mxu0 0
    %665 = vmatprep.mubr.bf16.mxu0 0
    %666 = vmatmul.mubr.bf16.gmra.mrb[0].mxu0 %v628
    %v667 = vpop.f32.mrb[0].mxu0
    %v668 = vadd.f32 0.0, %v667
    %v669 = vpop.f32.mrb[0].mxu0
    %v670 = vpop.f32.mrb[0].mxu0
    %v671 = vpop.f32.mrb[0].mxu0
    %672 = vdwg.mxu0
    %v673 = vmul.f32 %v618, 0.17677669
    %v674 = vmul.f32 %v668, 0.17677669
    %v675 = vsel %vm278, %v673, -inf
    %676 = vmax.xlane.f32.xlu0 %v675
    %v677 = vpop.xlane.xlu0 %676
    %v678 = vsel %vm278, %v674, -inf
    %679 = vmax.xlane.f32.xlu0 %v678
    %v680 = vpop.xlane.xlu0 %679
    %v681 = vsub.f32 %v673, %v677
    %v682 = vsub.f32 %v674, %v680
    %v683 = vmul.f32 %v681, 1.442695
    %v684 = vpow.pop %v683
    %v685 = vmul.f32 %v682, 1.442695
    %v686 = vpow.pop %v685
    %v687 = vsel %vm278, %v684, 0.0
    %688 = vadd.xlane.f32.xlu0 %v687
    %v689 = vpop.xlane.xlu0 %688
    %v690 = vsel %vm278, %v686, 0.0
    %691 = vadd.xlane.f32.xlu0 %v690
    %v692 = vpop.xlane.xlu0 %691
    %v693 = vrcp.pop %v689
    %v694 = vrcp.pop %v692
    %v695 = vmul.f32 %v684, %v693
    %v696 = vmul.f32 %v686, %v694
    %v697 = vcombine.high %v695, 0.0
    %v699 = vunpack.c.l.s4 1983009808
    %v700 = vunpack.c.0.s8 %v699
    %v701 = vlaneseq
    %v702 = vshrl.u32 %v701, 7
    %v703 = vsub.s32 %v700, %v702
    %v704 = vrot.slane %v695, %v703
    %v706 = vunpack.c.l.s4 1983009808
    %v707 = vunpack.c.0.s8 %v706
    %v708 = vlaneseq
    %v709 = vshrl.u32 %v708, 7
    %v710 = vsub.s32 %v707, %v709
    %v711 = vrot.slane %v697, %v710
    %v712 = vcombine.high %v696, 0.0
    %v714 = vunpack.c.l.s4 1983009808
    %v715 = vunpack.c.0.s8 %v714
    %v716 = vlaneseq
    %v717 = vshrl.u32 %v716, 7
    %v718 = vsub.s32 %v715, %v717
    %v719 = vrot.slane %v696, %v718
    %v721 = vunpack.c.l.s4 1983009808
    %v722 = vunpack.c.0.s8 %v721
    %v723 = vlaneseq
    %v724 = vshrl.u32 %v723, 7
    %v725 = vsub.s32 %v722, %v724
    %v726 = vrot.slane %v712, %v725
    %v727 = vcombine.low %v704, %v719
    %v728 = vcombine.high %v704, %v719
    %v730 = vunpack.c.l.s4 1934713408
    %v731 = vunpack.c.0.s8 %v730
    %v732 = vlaneseq
    %v733 = vshrl.u32 %v732, 7
    %v734 = vsub.s32 %v731, %v733
    %v735 = vrot.slane %v727, %v734
    %v737 = vunpack.c.l.s4 1934713408
    %v738 = vunpack.c.0.s8 %v737
    %v739 = vlaneseq
    %v740 = vshrl.u32 %v739, 7
    %v741 = vsub.s32 %v738, %v740
    %v742 = vrot.slane %v728, %v741
    %v743 = vcombine.low %v711, %v726
    %v744 = vcombine.high %v711, %v726
    %v746 = vunpack.c.l.s4 1934713408
    %v747 = vunpack.c.0.s8 %v746
    %v748 = vlaneseq
    %v749 = vshrl.u32 %v748, 7
    %v750 = vsub.s32 %v747, %v749
    %v751 = vrot.slane %v743, %v750
    %v753 = vunpack.c.l.s4 1934713408
    %v754 = vunpack.c.0.s8 %v753
    %v755 = vlaneseq
    %v756 = vshrl.u32 %v755, 7
    %v757 = vsub.s32 %v754, %v756
    %v758 = vrot.slane %v744, %v757
    %v759 = vcombine.high %v735, 0.0
    %v760 = vcombine.high %v742, 0.0
    %v761 = vcombine.high %v751, 0.0
    %v762 = vcombine.high %v758, 0.0
    %764 = vrot.lane.b32.xlu0 %v759, 8
    %v765 = vpop.permute.xlu0 %764
    %768 = vrot.lane.b32.xlu0 %v742, 16
    %v769 = vpop.permute.xlu0 %768
    %772 = vrot.lane.b32.xlu0 %v760, 24
    %v773 = vpop.permute.xlu0 %772
    %776 = vrot.lane.b32.xlu0 %v751, 32
    %v777 = vpop.permute.xlu0 %776
    %780 = vrot.lane.b32.xlu0 %v761, 40
    %v781 = vpop.permute.xlu0 %780
    %784 = vrot.lane.b32.xlu0 %v758, 48
    %v785 = vpop.permute.xlu0 %784
    %788 = vrot.lane.b32.xlu0 %v762, 56
    %v789 = vpop.permute.xlu0 %788
    %v791 = vsel %vm278, %v735, %v765
    %v792 = vsel %vm396, %v791, %v769
    %v793 = vsel %vm398, %v792, %v773
    %v794 = vsel %vm180, %v793, %v777
    %v795 = vsel %vm401, %v794, %v781
    %v796 = vsel %vm403, %v795, %v785
    %v797 = vsel %vm405, %v796, %v789
    %s798 = scalar_lea.vmem [#allocation4], 2
    %799 = vst.msk [vmem:[%s798] sm:$0x3] %vm407, %v797
    %v800 = vpack.c.bf16 %v695, %v695
    %v801 = vpack.c.bf16 %v696, %v696
    %803 = vrot.lane.b32.xlu0 %v411, 96
    %v804 = vpop.permute.xlu0 %803
    %v806 = vsel %vm278, %v800, 0
    %v809 = vsel %vm416, %v804, 0
    %811 = vmatprep.subr.bf16.mxu0 0
    %812 = vmatpush1.bf16.msra.mxu0 %v809
    %813 = vmatprep.subr.bf16.mxu0 0
    %814 = vmatpush1.bf16.msra.mxu0 0
    %815 = vmatprep.subr.bf16.mxu0 0
    %816 = vmatpush1.bf16.msra.mxu0 0
    %817 = vmatprep.subr.bf16.mxu0 0
    %818 = vmatpush1.bf16.msra.mxu0 0
    %819 = vmatprep.subr.bf16.mxu0 0
    %820 = vmatpush1.bf16.msra.mxu0 0
    %821 = vmatprep.subr.bf16.mxu0 0
    %822 = vmatpush1.bf16.msra.mxu0 0
    %823 = vmatprep.subr.bf16.mxu0 0
    %824 = vmatpush1.bf16.msra.mxu0 0
    %825 = vmatprep.subr.bf16.mxu0 0
    %826 = vmatpush1.bf16.msra.mxu0 0
    %827 = vmatprep.subr.bf16.mxu0 0
    %828 = vmatpush1.bf16.msra.mxu0 0
    %829 = vmatprep.subr.bf16.mxu0 0
    %830 = vmatpush1.bf16.msra.mxu0 0
    %831 = vmatprep.subr.bf16.mxu0 0
    %832 = vmatpush1.bf16.msra.mxu0 0
    %833 = vmatprep.subr.bf16.mxu0 0
    %834 = vmatpush1.bf16.msra.mxu0 0
    %835 = vmatprep.subr.bf16.mxu0 0
    %836 = vmatpush1.bf16.msra.mxu0 0
    %837 = vmatprep.subr.bf16.mxu0 0
    %838 = vmatpush1.bf16.msra.mxu0 0
    %839 = vmatprep.subr.bf16.mxu0 0
    %840 = vmatpush1.bf16.msra.mxu0 0
    %841 = vmatprep.subr.bf16.mxu0 0
    %842 = vmatpush1.bf16.msra.mxu0 0
    %843 = vmatprep.mubr.bf16.mxu0 0
    %844 = vmatmul.mubr.bf16.gmra.mrb[0].mxu0 %v806
    %v845 = vpop.f32.mrb[0].mxu0
    %v846 = vadd.f32 0.0, %v845
    %v847 = vpop.f32.mrb[0].mxu0
    %v848 = vpop.f32.mrb[0].mxu0
    %v849 = vpop.f32.mrb[0].mxu0
    %850 = vdwg.mxu0
    %852 = vrot.lane.b32.xlu0 %v412, 96
    %v853 = vpop.permute.xlu0 %852
    %v855 = vsel %vm278, %v801, 0
    %v858 = vsel %vm416, %v853, 0
    %860 = vmatprep.subr.bf16.mxu0 0
    %861 = vmatpush1.bf16.msra.mxu0 %v858
    %862 = vmatprep.subr.bf16.mxu0 0
    %863 = vmatpush1.bf16.msra.mxu0 0
    %864 = vmatprep.subr.bf16.mxu0 0
    %865 = vmatpush1.bf16.msra.mxu0 0
    %866 = vmatprep.subr.bf16.mxu0 0
    %867 = vmatpush1.bf16.msra.mxu0 0
    %868 = vmatprep.subr.bf16.mxu0 0
    %869 = vmatpush1.bf16.msra.mxu0 0
    %870 = vmatprep.subr.bf16.mxu0 0
    %871 = vmatpush1.bf16.msra.mxu0 0
    %872 = vmatprep.subr.bf16.mxu0 0
    %873 = vmatpush1.bf16.msra.mxu0 0
    %874 = vmatprep.subr.bf16.mxu0 0
    %875 = vmatpush1.bf16.msra.mxu0 0
    %876 = vmatprep.subr.bf16.mxu0 0
    %877 = vmatpush1.bf16.msra.mxu0 0
    %878 = vmatprep.subr.bf16.mxu0 0
    %879 = vmatpush1.bf16.msra.mxu0 0
    %880 = vmatprep.subr.bf16.mxu0 0
    %881 = vmatpush1.bf16.msra.mxu0 0
    %882 = vmatprep.subr.bf16.mxu0 0
    %883 = vmatpush1.bf16.msra.mxu0 0
    %884 = vmatprep.subr.bf16.mxu0 0
    %885 = vmatpush1.bf16.msra.mxu0 0
    %886 = vmatprep.subr.bf16.mxu0 0
    %887 = vmatpush1.bf16.msra.mxu0 0
    %888 = vmatprep.subr.bf16.mxu0 0
    %889 = vmatpush1.bf16.msra.mxu0 0
    %890 = vmatprep.subr.bf16.mxu0 0
    %891 = vmatpush1.bf16.msra.mxu0 0
    %892 = vmatprep.mubr.bf16.mxu0 0
    %893 = vmatmul.mubr.bf16.gmra.mrb[0].mxu0 %v855
    %v894 = vpop.f32.mrb[0].mxu0
    %v895 = vadd.f32 0.0, %v894
    %v896 = vpop.f32.mrb[0].mxu0
    %v897 = vpop.f32.mrb[0].mxu0
    %v898 = vpop.f32.mrb[0].mxu0
    %899 = vdwg.mxu0
    %v900 = vpack.c.bf16 %v895, %v846
    %v901 = vld [vmem:[%s2 + $0x10] sm:$0xf]
    %v902 = vld [vmem:[%s2 + $0x14] sm:$0xf]
    %v903 = vld [vmem:[%s2 + $0x18] sm:$0xf]
    %v904 = vld [vmem:[%s2 + $0x1c] sm:$0xf]
    %v909 = vunpack.c.l.b16 %v901
    %v910 = vunpack.c.l.b16 %v902
    %v911 = vunpack.c.l.b16 %v903
    %v912 = vunpack.c.l.b16 %v904
    %v913 = vpack.c.b16 %v910, %v909
    %v914 = vpack.c.b16 %v912, %v911
    %v918 = vsel %vm180, %v900, 0
    %920 = vmatprep.subr.bf16.mxu0 0
    %921 = vmatpush1.bf16.msra.mxu0 %v913
    %922 = vmatprep.subr.bf16.mxu0 0
    %923 = vmatpush1.bf16.msra.mxu0 %v914
    %924 = vmatprep.subr.bf16.mxu0 0
    %925 = vmatpush1.bf16.msra.mxu0 0
    %926 = vmatprep.subr.bf16.mxu0 0
    %927 = vmatpush1.bf16.msra.mxu0 0
    %928 = vmatprep.subr.bf16.mxu0 0
    %929 = vmatpush1.bf16.msra.mxu0 0
    %930 = vmatprep.subr.bf16.mxu0 0
    %931 = vmatpush1.bf16.msra.mxu0 0
    %932 = vmatprep.subr.bf16.mxu0 0
    %933 = vmatpush1.bf16.msra.mxu0 0
    %934 = vmatprep.subr.bf16.mxu0 0
    %935 = vmatpush1.bf16.msra.mxu0 0
    %936 = vmatprep.subr.bf16.mxu0 0
    %937 = vmatpush1.bf16.msra.mxu0 0
    %938 = vmatprep.subr.bf16.mxu0 0
    %939 = vmatpush1.bf16.msra.mxu0 0
    %940 = vmatprep.subr.bf16.mxu0 0
    %941 = vmatpush1.bf16.msra.mxu0 0
    %942 = vmatprep.subr.bf16.mxu0 0
    %943 = vmatpush1.bf16.msra.mxu0 0
    %944 = vmatprep.subr.bf16.mxu0 0
    %945 = vmatpush1.bf16.msra.mxu0 0
    %946 = vmatprep.subr.bf16.mxu0 0
    %947 = vmatpush1.bf16.msra.mxu0 0
    %948 = vmatprep.subr.bf16.mxu0 0
    %949 = vmatpush1.bf16.msra.mxu0 0
    %950 = vmatprep.subr.bf16.mxu0 0
    %951 = vmatpush1.bf16.msra.mxu0 0
    %952 = vmatprep.mubr.bf16.mxu0 0
    %953 = vmatmul.mubr.bf16.gmra.mrb[0].mxu0 %v918
    %v954 = vpop.f32.mrb[0].mxu0
    %v955 = vadd.f32 0.0, %v954
    %v956 = vpop.f32.mrb[0].mxu0
    %v957 = vpop.f32.mrb[0].mxu0
    %v958 = vadd.f32 0.0, %v957
    %v959 = vpop.f32.mrb[0].mxu0
    %960 = vdwg.mxu0
    %v961 = vadd.f32 %v571, %v955
    %v962 = vadd.f32 %v572, %v958
    %v963 = vadd.f32 %v31, %v961
    %v964 = vadd.f32 %v32, %v962
    %v965 = vsel %vm40, %v963, 0.0
    %966 = vadd.xlane.f32.xlu0 %v965
    %v967 = vpop.xlane.xlu0 %966
    %v968 = vsel %vm40, %v964, 0.0
    %969 = vadd.xlane.f32.xlu0 %v968
    %v970 = vpop.xlane.xlu0 %969
    %v971 = vmul.f32 %v967, %v47
    %v972 = vmul.f32 %v970, %v47
    %v973 = vsub.f32 %v963, %v971
    %v974 = vsub.f32 %v964, %v972
    %v975 = vmul.f32 %v973, %v973
    %v976 = vmul.f32 %v974, %v974
    %v977 = vsel %vm40, %v975, 0.0
    %978 = vadd.xlane.f32.xlu0 %v977
    %v979 = vpop.xlane.xlu0 %978
    %v980 = vsel %vm40, %v976, 0.0
    %981 = vadd.xlane.f32.xlu0 %v980
    %v982 = vpop.xlane.xlu0 %981
    %v983 = vmul.f32 %v979, %v47
    %v984 = vmul.f32 %v982, %v47
    %v985 = vadd.f32 %v983, 1e-05
    %v986 = vadd.f32 %v984, 1e-05
    %v987 = vrsqrt.pop %v985
    %v988 = vrsqrt.pop %v986
    %v989 = vmul.f32 %v973, %v987
    %v990 = vmul.f32 %v974, %v988
    %v991 = vlaneseq
    %v992 = vshrl.u32 %v991, 7
    %v993 = vsub.s32 0, %v992
    %v994 = vrot.slane %v35, %v993
    %v995 = vmul.f32 %v989, %v994
    %v996 = vmul.f32 %v990, %v994
    %v997 = vlaneseq
    %v998 = vshrl.u32 %v997, 7
    %v999 = vsub.s32 0, %v998
    %v1000 = vrot.slane %v36, %v999
    %v1001 = vadd.f32 %v995, %v1000
    %v1002 = vadd.f32 %v996, %v1000
    %v1003 = vpack.c.bf16 %v1002, %v1001
    %v1004 = vld [vmem:[%s3] sm:$0xff]
    %v1005 = vld [vmem:[%s3 + $0x8] sm:$0xff]
    %v1006 = vld [vmem:[%s3 + $0x10] sm:$0xff]
    %v1007 = vld [vmem:[%s3 + $0x18] sm:$0xff]
    %v1008 = vld [vmem:[%s3 + $0x20] sm:$0xff]
    %v1009 = vld [vmem:[%s3 + $0x28] sm:$0xff]
    %v1010 = vld [vmem:[%s3 + $0x30] sm:$0xff]
    %v1011 = vld [vmem:[%s3 + $0x38] sm:$0xff]
    %v1013 = vlaneseq
    %v1014 = vshrl.u32 %v1013, 7
    %v1015 = vsub.s32 0, %v1014
    %v1016 = vrot.slane %v39, %v1015
    %v1017 = vlaneseq
    %v1018 = vshrl.u32 %v1017, 7
    %v1019 = vsub.s32 1, %v1018
    %v1020 = vrot.slane %v39, %v1019
    %v1031 = vunpack.c.l.b16 %v1004
    %v1032 = vunpack.c.h.b16 %v1004
    %v1033 = vunpack.c.l.b16 %v1005
    %v1034 = vunpack.c.h.b16 %v1005
    %v1035 = vunpack.c.l.b16 %v1006
    %v1036 = vunpack.c.h.b16 %v1006
    %v1037 = vunpack.c.l.b16 %v1007
    %v1038 = vunpack.c.h.b16 %v1007
    %v1039 = vunpack.c.l.b16 %v1008
    %v1040 = vunpack.c.h.b16 %v1008
    %v1041 = vunpack.c.l.b16 %v1009
    %v1042 = vunpack.c.h.b16 %v1009
    %v1043 = vunpack.c.l.b16 %v1010
    %v1044 = vunpack.c.h.b16 %v1010
    %v1045 = vunpack.c.l.b16 %v1011
    %v1046 = vunpack.c.h.b16 %v1011
    %v1047 = vpack.c.b16 %v1033, %v1031
    %v1048 = vpack.c.b16 %v1034, %v1032
    %v1049 = vpack.c.b16 %v1037, %v1035
    %v1050 = vpack.c.b16 %v1038, %v1036
    %v1051 = vpack.c.b16 %v1041, %v1039
    %v1052 = vpack.c.b16 %v1042, %v1040
    %v1053 = vpack.c.b16 %v1045, %v1043
    %v1054 = vpack.c.b16 %v1046, %v1044
    %v1064 = vsel %vm40, %v1003, 0
    %1066 = vmatprep.subr.bf16.mxu0 %v1048
    %1067 = vmatpush1.bf16.msra.mxu0 %v1047
    %1068 = vmatprep.subr.bf16.mxu0 %v1050
    %1069 = vmatpush1.bf16.msra.mxu0 %v1049
    %1070 = vmatprep.subr.bf16.mxu0 %v1052
    %1071 = vmatpush1.bf16.msra.mxu0 %v1051
    %1072 = vmatprep.subr.bf16.mxu0 %v1054
    %1073 = vmatpush1.bf16.msra.mxu0 %v1053
    %1074 = vmatprep.subr.bf16.mxu0 0
    %1075 = vmatpush1.bf16.msra.mxu0 0
    %1076 = vmatprep.subr.bf16.mxu0 0
    %1077 = vmatpush1.bf16.msra.mxu0 0
    %1078 = vmatprep.subr.bf16.mxu0 0
    %1079 = vmatpush1.bf16.msra.mxu0 0
    %1080 = vmatprep.subr.bf16.mxu0 0
    %1081 = vmatpush1.bf16.msra.mxu0 0
    %1082 = vmatprep.subr.bf16.mxu0 0
    %1083 = vmatpush1.bf16.msra.mxu0 0
    %1084 = vmatprep.subr.bf16.mxu0 0
    %1085 = vmatpush1.bf16.msra.mxu0 0
    %1086 = vmatprep.subr.bf16.mxu0 0
    %1087 = vmatpush1.bf16.msra.mxu0 0
    %1088 = vmatprep.subr.bf16.mxu0 0
    %1089 = vmatpush1.bf16.msra.mxu0 0
    %1090 = vmatprep.subr.bf16.mxu0 0
    %1091 = vmatpush1.bf16.msra.mxu0 0
    %1092 = vmatprep.subr.bf16.mxu0 0
    %1093 = vmatpush1.bf16.msra.mxu0 0
    %1094 = vmatprep.subr.bf16.mxu0 0
    %1095 = vmatpush1.bf16.msra.mxu0 0
    %1096 = vmatprep.subr.bf16.mxu0 0
    %1097 = vmatpush1.bf16.msra.mxu0 0
    %1098 = vmatprep.mubr.bf16.mxu0 0
    %1099 = vmatmul.mubr.bf16.gmra.mrb[0].mxu0 %v1064
    %v1100 = vpop.f32.mrb[0].mxu0
    %v1101 = vadd.f32 %v1016, %v1100
    %v1102 = vpop.f32.mrb[0].mxu0
    %v1103 = vadd.f32 %v1020, %v1102
    %v1104 = vpop.f32.mrb[0].mxu0
    %v1105 = vadd.f32 %v1016, %v1104
    %v1106 = vpop.f32.mrb[0].mxu0
    %v1107 = vadd.f32 %v1020, %v1106
    %1108 = vdwg.mxu0
    %v1109 = vmax.f32 %v1101, 0.0
    %v1110 = vmax.f32 %v1103, 0.0
    %v1111 = vmax.f32 %v1105, 0.0
    %v1112 = vmax.f32 %v1107, 0.0
    %v1113 = vpack.c.bf16 %v1111, %v1109
    %v1114 = vpack.c.bf16 %v1112, %v1110
    %v1115 = vld [vmem:[%s4] sm:$0xf]
    %v1116 = vld [vmem:[%s4 + $0x4] sm:$0xf]
    %v1117 = vld [vmem:[%s4 + $0x8] sm:$0xf]
    %v1118 = vld [vmem:[%s4 + $0xc] sm:$0xf]
    %v1119 = vld [vmem:[%s4 + $0x10] sm:$0xf]
    %v1120 = vld [vmem:[%s4 + $0x14] sm:$0xf]
    %v1121 = vld [vmem:[%s4 + $0x18] sm:$0xf]
    %v1122 = vld [vmem:[%s4 + $0x1c] sm:$0xf]
    %v1123 = vld [vmem:[%s4 + $0x20] sm:$0xf]
    %v1124 = vld [vmem:[%s4 + $0x24] sm:$0xf]
    %v1125 = vld [vmem:[%s4 + $0x28] sm:$0xf]
    %v1126 = vld [vmem:[%s4 + $0x2c] sm:$0xf]
    %v1127 = vld [vmem:[%s4 + $0x30] sm:$0xf]
    %v1128 = vld [vmem:[%s4 + $0x34] sm:$0xf]
    %v1129 = vld [vmem:[%s4 + $0x38] sm:$0xf]
    %v1130 = vld [vmem:[%s4 + $0x3c] sm:$0xf]
    %v1131 = vld [vmem:[%s4 + $0x40] sm:$0xf]
    %v1132 = vld [vmem:[%s4 + $0x44] sm:$0xf]
    %v1133 = vld [vmem:[%s4 + $0x48] sm:$0xf]
    %v1134 = vld [vmem:[%s4 + $0x4c] sm:$0xf]
    %v1135 = vld [vmem:[%s4 + $0x50] sm:$0xf]
    %v1136 = vld [vmem:[%s4 + $0x54] sm:$0xf]
    %v1137 = vld [vmem:[%s4 + $0x58] sm:$0xf]
    %v1138 = vld [vmem:[%s4 + $0x5c] sm:$0xf]
    %v1139 = vld [vmem:[%s4 + $0x60] sm:$0xf]
    %v1140 = vld [vmem:[%s4 + $0x64] sm:$0xf]
    %v1141 = vld [vmem:[%s4 + $0x68] sm:$0xf]
    %v1142 = vld [vmem:[%s4 + $0x6c] sm:$0xf]
    %v1143 = vld [vmem:[%s4 + $0x70] sm:$0xf]
    %v1144 = vld [vmem:[%s4 + $0x74] sm:$0xf]
    %v1145 = vld [vmem:[%s4 + $0x78] sm:$0xf]
    %v1146 = vld [vmem:[%s4 + $0x7c] sm:$0xf]
    %v1147 = vlaneseq
    %v1148 = vshrl.u32 %v1147, 7
    %v1149 = vsub.s32 0, %v1148
    %v1150 = vrot.slane %v38, %v1149
    %v1183 = vunpack.c.l.b16 %v1115
    %v1184 = vunpack.c.l.b16 %v1116
    %v1185 = vunpack.c.l.b16 %v1117
    %v1186 = vunpack.c.l.b16 %v1118
    %v1187 = vunpack.c.l.b16 %v1119
    %v1188 = vunpack.c.l.b16 %v1120
    %v1189 = vunpack.c.l.b16 %v1121
    %v1190 = vunpack.c.l.b16 %v1122
    %v1191 = vunpack.c.l.b16 %v1123
    %v1192 = vunpack.c.l.b16 %v1124
    %v1193 = vunpack.c.l.b16 %v1125
    %v1194 = vunpack.c.l.b16 %v1126
    %v1195 = vunpack.c.l.b16 %v1127
    %v1196 = vunpack.c.l.b16 %v1128
    %v1197 = vunpack.c.l.b16 %v1129
    %v1198 = vunpack.c.l.b16 %v1130
    %v1199 = vunpack.c.l.b16 %v1131
    %v1200 = vunpack.c.l.b16 %v1132
    %v1201 = vunpack.c.l.b16 %v1133
    %v1202 = vunpack.c.l.b16 %v1134
    %v1203 = vunpack.c.l.b16 %v1135
    %v1204 = vunpack.c.l.b16 %v1136
    %v1205 = vunpack.c.l.b16 %v1137
    %v1206 = vunpack.c.l.b16 %v1138
    %v1207 = vunpack.c.l.b16 %v1139
    %v1208 = vunpack.c.l.b16 %v1140
    %v1209 = vunpack.c.l.b16 %v1141
    %v1210 = vunpack.c.l.b16 %v1142
    %v1211 = vunpack.c.l.b16 %v1143
    %v1212 = vunpack.c.l.b16 %v1144
    %v1213 = vunpack.c.l.b16 %v1145
    %v1214 = vunpack.c.l.b16 %v1146
    %v1215 = vpack.c.b16 %v1184, %v1183
    %v1216 = vpack.c.b16 %v1186, %v1185
    %v1217 = vpack.c.b16 %v1188, %v1187
    %v1218 = vpack.c.b16 %v1190, %v1189
    %v1219 = vpack.c.b16 %v1192, %v1191
    %v1220 = vpack.c.b16 %v1194, %v1193
    %v1221 = vpack.c.b16 %v1196, %v1195
    %v1222 = vpack.c.b16 %v1198, %v1197
    %v1223 = vpack.c.b16 %v1200, %v1199
    %v1224 = vpack.c.b16 %v1202, %v1201
    %v1225 = vpack.c.b16 %v1204, %v1203
    %v1226 = vpack.c.b16 %v1206, %v1205
    %v1227 = vpack.c.b16 %v1208, %v1207
    %v1228 = vpack.c.b16 %v1210, %v1209
    %v1229 = vpack.c.b16 %v1212, %v1211
    %v1230 = vpack.c.b16 %v1214, %v1213
    %1247 = vmatprep.subr.bf16.mxu0 0
    %1248 = vmatpush1.bf16.msra.mxu0 %v1215
    %1249 = vmatprep.subr.bf16.mxu0 0
    %1250 = vmatpush1.bf16.msra.mxu0 %v1216
    %1251 = vmatprep.subr.bf16.mxu0 0
    %1252 = vmatpush1.bf16.msra.mxu0 %v1217
    %1253 = vmatprep.subr.bf16.mxu0 0
    %1254 = vmatpush1.bf16.msra.mxu0 %v1218
    %1255 = vmatprep.subr.bf16.mxu0 0
    %1256 = vmatpush1.bf16.msra.mxu0 %v1219
    %1257 = vmatprep.subr.bf16.mxu0 0
    %1258 = vmatpush1.bf16.msra.mxu0 %v1220
    %1259 = vmatprep.subr.bf16.mxu0 0
    %1260 = vmatpush1.bf16.msra.mxu0 %v1221
    %1261 = vmatprep.subr.bf16.mxu0 0
    %1262 = vmatpush1.bf16.msra.mxu0 %v1222
    %1263 = vmatprep.subr.bf16.mxu0 0
    %1264 = vmatpush1.bf16.msra.mxu0 %v1223
    %1265 = vmatprep.subr.bf16.mxu0 0
    %1266 = vmatpush1.bf16.msra.mxu0 %v1224
    %1267 = vmatprep.subr.bf16.mxu0 0
    %1268 = vmatpush1.bf16.msra.mxu0 %v1225
    %1269 = vmatprep.subr.bf16.mxu0 0
    %1270 = vmatpush1.bf16.msra.mxu0 %v1226
    %1271 = vmatprep.subr.bf16.mxu0 0
    %1272 = vmatpush1.bf16.msra.mxu0 %v1227
    %1273 = vmatprep.subr.bf16.mxu0 0
    %1274 = vmatpush1.bf16.msra.mxu0 %v1228
    %1275 = vmatprep.subr.bf16.mxu0 0
    %1276 = vmatpush1.bf16.msra.mxu0 %v1229
    %1277 = vmatprep.subr.bf16.mxu0 0
    %1278 = vmatpush1.bf16.msra.mxu0 %v1230
    %1279 = vmatprep.mubr.bf16.mxu0 %v1114
    %1280 = vmatmul.mubr.bf16.gmra.mrb[0].mxu0 %v1113
    %v1281 = vpop.f32.mrb[0].mxu0
    %v1282 = vadd.f32 %v1150, %v1281
    %v1283 = vpop.f32.mrb[0].mxu0
    %v1284 = vpop.f32.mrb[0].mxu0
    %v1285 = vadd.f32 %v1150, %v1284
    %v1286 = vpop.f32.mrb[0].mxu0
    %1287 = vdwg.mxu0
    %v1288 = vadd.f32 %v963, %v1282
    %v1289 = vadd.f32 %v964, %v1285
    %v1290 = vld [vmem:[%s5 + $0x6] sm:$0x1]
    %v1291 = vld [vmem:[%s5 + $0x7] sm:$0x1]
    %v1292 = vld [vmem:[%s5 + $0x8] sm:$0x1]
    %v1293 = vld [vmem:[%s5 + $0x9] sm:$0x1]
    %v1294 = vld [vmem:[%s5 + $0xa] sm:$0x1]
    %v1295 = vld [vmem:[%s5 + $0xb] sm:$0x1]
    %s1296 = scalar_lea.vmem %s6, 1
    %v1297 = vld [vmem:[%s1296] ss:$4 sm:$0x3]
    %v1298 = vsel %vm40, %v1288, 0.0
    %1299 = vadd.xlane.f32.xlu0 %v1298
    %v1300 = vpop.xlane.xlu0 %1299
    %v1301 = vsel %vm40, %v1289, 0.0
    %1302 = vadd.xlane.f32.xlu0 %v1301
    %v1303 = vpop.xlane.xlu0 %1302
    %v1304 = vmul.f32 %v1300, %v47
    %v1305 = vmul.f32 %v1303, %v47
    %v1306 = vsub.f32 %v1288, %v1304
    %v1307 = vsub.f32 %v1289, %v1305
    %v1308 = vmul.f32 %v1306, %v1306
    %v1309 = vmul.f32 %v1307, %v1307
    %v1310 = vsel %vm40, %v1308, 0.0
    %1311 = vadd.xlane.f32.xlu0 %v1310
    %v1312 = vpop.xlane.xlu0 %1311
    %v1313 = vsel %vm40, %v1309, 0.0
    %1314 = vadd.xlane.f32.xlu0 %v1313
    %v1315 = vpop.xlane.xlu0 %1314
    %v1316 = vmul.f32 %v1312, %v47
    %v1317 = vmul.f32 %v1315, %v47
    %v1318 = vadd.f32 %v1316, 1e-05
    %v1319 = vadd.f32 %v1317, 1e-05
    %v1320 = vrsqrt.pop %v1318
    %v1321 = vrsqrt.pop %v1319
    %v1322 = vmul.f32 %v1306, %v1320
    %v1323 = vmul.f32 %v1307, %v1321
    %v1324 = vlaneseq
    %v1325 = vshrl.u32 %v1324, 7
    %v1326 = vsub.s32 0, %v1325
    %v1327 = vrot.slane %v1290, %v1326
    %v1328 = vmul.f32 %v1322, %v1327
    %v1329 = vmul.f32 %v1323, %v1327
    %v1330 = vlaneseq
    %v1331 = vshrl.u32 %v1330, 7
    %v1332 = vsub.s32 0, %v1331
    %v1333 = vrot.slane %v1291, %v1332
    %v1334 = vadd.f32 %v1328, %v1333
    %v1335 = vadd.f32 %v1329, %v1333
    %v1336 = vpack.c.bf16 %v1335, %v1334
    %s1337 = scalar_lea.vmem %s1, 64
    %v1338 = vld [vmem:[%s1337] sm:$0xff]
    %v1339 = vld [vmem:[%s1337 + $0x8] sm:$0xff]
    %v1340 = vld [vmem:[%s1337 + $0x10] sm:$0xff]
    %v1341 = vld [vmem:[%s1337 + $0x18] sm:$0xff]
    %v1342 = vld [vmem:[%s1337 + $0x20] sm:$0xff]
    %v1343 = vld [vmem:[%s1337 + $0x28] sm:$0xff]
    %v1344 = vld [vmem:[%s1337 + $0x30] sm:$0xff]
    %v1345 = vld [vmem:[%s1337 + $0x38] sm:$0xff]
    %v1354 = vunpack.c.l.b16 %v1338
    %v1355 = vunpack.c.h.b16 %v1338
    %v1356 = vunpack.c.l.b16 %v1339
    %v1357 = vunpack.c.h.b16 %v1339
    %v1358 = vunpack.c.l.b16 %v1340
    %v1359 = vunpack.c.h.b16 %v1340
    %v1360 = vunpack.c.l.b16 %v1341
    %v1361 = vunpack.c.h.b16 %v1341
    %v1362 = vunpack.c.l.b16 %v1342
    %v1363 = vunpack.c.h.b16 %v1342
    %v1364 = vunpack.c.l.b16 %v1343
    %v1365 = vunpack.c.h.b16 %v1343
    %v1366 = vunpack.c.l.b16 %v1344
    %v1367 = vunpack.c.h.b16 %v1344
    %v1368 = vunpack.c.l.b16 %v1345
    %v1369 = vunpack.c.h.b16 %v1345
    %v1370 = vpack.c.b16 %v1356, %v1354
    %v1371 = vpack.c.b16 %v1357, %v1355
    %v1372 = vpack.c.b16 %v1360, %v1358
    %v1373 = vpack.c.b16 %v1361, %v1359
    %v1374 = vpack.c.b16 %v1364, %v1362
    %v1375 = vpack.c.b16 %v1365, %v1363
    %v1376 = vpack.c.b16 %v1368, %v1366
    %v1377 = vpack.c.b16 %v1369, %v1367
    %v1387 = vsel %vm40, %v1336, 0
    %1389 = vmatprep.subr.bf16.mxu0 %v1371
    %1390 = vmatpush1.bf16.msra.mxu0 %v1370
    %1391 = vmatprep.subr.bf16.mxu0 %v1373
    %1392 = vmatpush1.bf16.msra.mxu0 %v1372
    %1393 = vmatprep.subr.bf16.mxu0 %v1375
    %1394 = vmatpush1.bf16.msra.mxu0 %v1374
    %1395 = vmatprep.subr.bf16.mxu0 %v1377
    %1396 = vmatpush1.bf16.msra.mxu0 %v1376
    %1397 = vmatprep.subr.bf16.mxu0 0
    %1398 = vmatpush1.bf16.msra.mxu0 0
    %1399 = vmatprep.subr.bf16.mxu0 0
    %1400 = vmatpush1.bf16.msra.mxu0 0
    %1401 = vmatprep.subr.bf16.mxu0 0
    %1402 = vmatpush1.bf16.msra.mxu0 0
    %1403 = vmatprep.subr.bf16.mxu0 0
    %1404 = vmatpush1.bf16.msra.mxu0 0
    %1405 = vmatprep.subr.bf16.mxu0 0
    %1406 = vmatpush1.bf16.msra.mxu0 0
    %1407 = vmatprep.subr.bf16.mxu0 0
    %1408 = vmatpush1.bf16.msra.mxu0 0
    %1409 = vmatprep.subr.bf16.mxu0 0
    %1410 = vmatpush1.bf16.msra.mxu0 0
    %1411 = vmatprep.subr.bf16.mxu0 0
    %1412 = vmatpush1.bf16.msra.mxu0 0
    %1413 = vmatprep.subr.bf16.mxu0 0
    %1414 = vmatpush1.bf16.msra.mxu0 0
    %1415 = vmatprep.subr.bf16.mxu0 0
    %1416 = vmatpush1.bf16.msra.mxu0 0
    %1417 = vmatprep.subr.bf16.mxu0 0
    %1418 = vmatpush1.bf16.msra.mxu0 0
    %1419 = vmatprep.subr.bf16.mxu0 0
    %1420 = vmatpush1.bf16.msra.mxu0 0
    %1421 = vmatprep.mubr.bf16.mxu0 0
    %1422 = vmatmul.mubr.bf16.gmra.mrb[0].mxu0 %v1387
    %v1423 = vpop.f32.mrb[0].mxu0
    %v1424 = vadd.f32 0.0, %v1423
    %v1425 = vpop.f32.mrb[0].mxu0
    %v1426 = vadd.f32 0.0, %v1425
    %v1427 = vpop.f32.mrb[0].mxu0
    %v1428 = vadd.f32 0.0, %v1427
    %v1429 = vpop.f32.mrb[0].mxu0
    %v1430 = vadd.f32 0.0, %v1429
    %1431 = vdwg.mxu0
    %v1432 = vpack.c.bf16 %v1424, %v1424
    %v1433 = vpack.c.bf16 %v1428, %v1428
    %1435 = vrot.lane.b32.xlu0 %v1432, 64
    %v1436 = vpop.permute.xlu0 %1435
    %v1438 = vsel %vm180, %v1432, 0
    %v1441 = vsel %vm180, %v1436, 0
    %1443 = vmatprep.subr.bf16.mxu0 0
    %1444 = vmatpush1.bf16.xpose.msra.mxu0 %v1441
    %1445 = vmatprep.subr.bf16.mxu0 0
    %1446 = vmatpush1.bf16.xpose.msra.mxu0 0
    %1447 = vmatprep.subr.bf16.mxu0 0
    %1448 = vmatpush1.bf16.xpose.msra.mxu0 0
    %1449 = vmatprep.subr.bf16.mxu0 0
    %1450 = vmatpush1.bf16.xpose.msra.mxu0 0
    %1451 = vmatprep.subr.bf16.mxu0 0
    %1452 = vmatpush1.bf16.xpose.msra.mxu0 0
    %1453 = vmatprep.subr.bf16.mxu0 0
    %1454 = vmatpush1.bf16.xpose.msra.mxu0 0
    %1455 = vmatprep.subr.bf16.mxu0 0
    %1456 = vmatpush1.bf16.xpose.msra.mxu0 0
    %1457 = vmatprep.subr.bf16.mxu0 0
    %1458 = vmatpush1.bf16.xpose.msra.mxu0 0
    %1459 = vmatprep.subr.bf16.mxu0 0
    %1460 = vmatpush1.bf16.xpose.msra.mxu0 0
    %1461 = vmatprep.subr.bf16.mxu0 0
    %1462 = vmatpush1.bf16.xpose.msra.mxu0 0
    %1463 = vmatprep.subr.bf16.mxu0 0
    %1464 = vmatpush1.bf16.xpose.msra.mxu0 0
    %1465 = vmatprep.subr.bf16.mxu0 0
    %1466 = vmatpush1.bf16.xpose.msra.mxu0 0
    %1467 = vmatprep.subr.bf16.mxu0 0
    %1468 = vmatpush1.bf16.xpose.msra.mxu0 0
    %1469 = vmatprep.subr.bf16.mxu0 0
    %1470 = vmatpush1.bf16.xpose.msra.mxu0 0
    %1471 = vmatprep.subr.bf16.mxu0 0
    %1472 = vmatpush1.bf16.xpose.msra.mxu0 0
    %1473 = vmatprep.subr.bf16.mxu0 0
    %1474 = vmatpush1.bf16.xpose.msra.mxu0 0
    %1475 = vmatprep.mubr.bf16.mxu0 0
    %1476 = vmatmul.mubr.bf16.gmra.mrb[0].mxu0 %v1438
    %v1477 = vpop.f32.mrb[0].mxu0
    %v1478 = vadd.f32 0.0, %v1477
    %v1479 = vpop.f32.mrb[0].mxu0
    %v1480 = vpop.f32.mrb[0].mxu0
    %v1481 = vpop.f32.mrb[0].mxu0
    %1482 = vdwg.mxu0
    %1484 = vrot.lane.b32.xlu0 %v1433, 64
    %v1485 = vpop.permute.xlu0 %1484
    %v1487 = vsel %vm180, %v1433, 0
    %v1490 = vsel %vm180, %v1485, 0
    %1492 = vmatprep.subr.bf16.mxu0 0
    %1493 = vmatpush1.bf16.xpose.msra.mxu0 %v1490
    %1494 = vmatprep.subr.bf16.mxu0 0
    %1495 = vmatpush1.bf16.xpose.msra.mxu0 0
    %1496 = vmatprep.subr.bf16.mxu0 0
    %1497 = vmatpush1.bf16.xpose.msra.mxu0 0
    %1498 = vmatprep.subr.bf16.mxu0 0
    %1499 = vmatpush1.bf16.xpose.msra.mxu0 0
    %1500 = vmatprep.subr.bf16.mxu0 0
    %1501 = vmatpush1.bf16.xpose.msra.mxu0 0
    %1502 = vmatprep.subr.bf16.mxu0 0
    %1503 = vmatpush1.bf16.xpose.msra.mxu0 0
    %1504 = vmatprep.subr.bf16.mxu0 0
    %1505 = vmatpush1.bf16.xpose.msra.mxu0 0
    %1506 = vmatprep.subr.bf16.mxu0 0
    %1507 = vmatpush1.bf16.xpose.msra.mxu0 0
    %1508 = vmatprep.subr.bf16.mxu0 0
    %1509 = vmatpush1.bf16.xpose.msra.mxu0 0
    %1510 = vmatprep.subr.bf16.mxu0 0
    %1511 = vmatpush1.bf16.xpose.msra.mxu0 0
    %1512 = vmatprep.subr.bf16.mxu0 0
    %1513 = vmatpush1.bf16.xpose.msra.mxu0 0
    %1514 = vmatprep.subr.bf16.mxu0 0
    %1515 = vmatpush1.bf16.xpose.msra.mxu0 0
    %1516 = vmatprep.subr.bf16.mxu0 0
    %1517 = vmatpush1.bf16.xpose.msra.mxu0 0
    %1518 = vmatprep.subr.bf16.mxu0 0
    %1519 = vmatpush1.bf16.xpose.msra.mxu0 0
    %1520 = vmatprep.subr.bf16.mxu0 0
    %1521 = vmatpush1.bf16.xpose.msra.mxu0 0
    %1522 = vmatprep.subr.bf16.mxu0 0
    %1523 = vmatpush1.bf16.xpose.msra.mxu0 0
    %1524 = vmatprep.mubr.bf16.mxu0 0
    %1525 = vmatmul.mubr.bf16.gmra.mrb[0].mxu0 %v1487
    %v1526 = vpop.f32.mrb[0].mxu0
    %v1527 = vadd.f32 0.0, %v1526
    %v1528 = vpop.f32.mrb[0].mxu0
    %v1529 = vpop.f32.mrb[0].mxu0
    %v1530 = vpop.f32.mrb[0].mxu0
    %1531 = vdwg.mxu0
    %v1532 = vmul.f32 %v1478, 0.17677669
    %v1533 = vmul.f32 %v1527, 0.17677669
    %v1534 = vsel %vm278, %v1532, -inf
    %1535 = vmax.xlane.f32.xlu0 %v1534
    %v1536 = vpop.xlane.xlu0 %1535
    %v1537 = vsel %vm278, %v1533, -inf
    %1538 = vmax.xlane.f32.xlu0 %v1537
    %v1539 = vpop.xlane.xlu0 %1538
    %v1540 = vsub.f32 %v1532, %v1536
    %v1541 = vsub.f32 %v1533, %v1539
    %v1542 = vmul.f32 %v1540, 1.442695
    %v1543 = vpow.pop %v1542
    %v1544 = vmul.f32 %v1541, 1.442695
    %v1545 = vpow.pop %v1544
    %v1546 = vsel %vm278, %v1543, 0.0
    %1547 = vadd.xlane.f32.xlu0 %v1546
    %v1548 = vpop.xlane.xlu0 %1547
    %v1549 = vsel %vm278, %v1545, 0.0
    %1550 = vadd.xlane.f32.xlu0 %v1549
    %v1551 = vpop.xlane.xlu0 %1550
    %v1552 = vrcp.pop %v1548
    %v1553 = vrcp.pop %v1551
    %v1554 = vmul.f32 %v1543, %v1552
    %v1555 = vmul.f32 %v1545, %v1553
    %v1556 = vcombine.high %v1554, 0.0
    %v1558 = vunpack.c.l.s4 1983009808
    %v1559 = vunpack.c.0.s8 %v1558
    %v1560 = vlaneseq
    %v1561 = vshrl.u32 %v1560, 7
    %v1562 = vsub.s32 %v1559, %v1561
    %v1563 = vrot.slane %v1554, %v1562
    %v1565 = vunpack.c.l.s4 1983009808
    %v1566 = vunpack.c.0.s8 %v1565
    %v1567 = vlaneseq
    %v1568 = vshrl.u32 %v1567, 7
    %v1569 = vsub.s32 %v1566, %v1568
    %v1570 = vrot.slane %v1556, %v1569
    %v1571 = vcombine.high %v1555, 0.0
    %v1573 = vunpack.c.l.s4 1983009808
    %v1574 = vunpack.c.0.s8 %v1573
    %v1575 = vlaneseq
    %v1576 = vshrl.u32 %v1575, 7
    %v1577 = vsub.s32 %v1574, %v1576
    %v1578 = vrot.slane %v1555, %v1577
    %v1580 = vunpack.c.l.s4 1983009808
    %v1581 = vunpack.c.0.s8 %v1580
    %v1582 = vlaneseq
    %v1583 = vshrl.u32 %v1582, 7
    %v1584 = vsub.s32 %v1581, %v1583
    %v1585 = vrot.slane %v1571, %v1584
    %v1586 = vcombine.low %v1563, %v1578
    %v1587 = vcombine.high %v1563, %v1578
    %v1589 = vunpack.c.l.s4 1934713408
    %v1590 = vunpack.c.0.s8 %v1589
    %v1591 = vlaneseq
    %v1592 = vshrl.u32 %v1591, 7
    %v1593 = vsub.s32 %v1590, %v1592
    %v1594 = vrot.slane %v1586, %v1593
    %v1596 = vunpack.c.l.s4 1934713408
    %v1597 = vunpack.c.0.s8 %v1596
    %v1598 = vlaneseq
    %v1599 = vshrl.u32 %v1598, 7
    %v1600 = vsub.s32 %v1597, %v1599
    %v1601 = vrot.slane %v1587, %v1600
    %v1602 = vcombine.low %v1570, %v1585
    %v1603 = vcombine.high %v1570, %v1585
    %v1605 = vunpack.c.l.s4 1934713408
    %v1606 = vunpack.c.0.s8 %v1605
    %v1607 = vlaneseq
    %v1608 = vshrl.u32 %v1607, 7
    %v1609 = vsub.s32 %v1606, %v1608
    %v1610 = vrot.slane %v1602, %v1609
    %v1612 = vunpack.c.l.s4 1934713408
    %v1613 = vunpack.c.0.s8 %v1612
    %v1614 = vlaneseq
    %v1615 = vshrl.u32 %v1614, 7
    %v1616 = vsub.s32 %v1613, %v1615
    %v1617 = vrot.slane %v1603, %v1616
    %v1618 = vcombine.high %v1594, 0.0
    %v1619 = vcombine.high %v1601, 0.0
    %v1620 = vcombine.high %v1610, 0.0
    %v1621 = vcombine.high %v1617, 0.0
    %1623 = vrot.lane.b32.xlu0 %v1618, 8
    %v1624 = vpop.permute.xlu0 %1623
    %1627 = vrot.lane.b32.xlu0 %v1601, 16
    %v1628 = vpop.permute.xlu0 %1627
    %1631 = vrot.lane.b32.xlu0 %v1619, 24
    %v1632 = vpop.permute.xlu0 %1631
    %1635 = vrot.lane.b32.xlu0 %v1610, 32
    %v1636 = vpop.permute.xlu0 %1635
    %1639 = vrot.lane.b32.xlu0 %v1620, 40
    %v1640 = vpop.permute.xlu0 %1639
    %1643 = vrot.lane.b32.xlu0 %v1617, 48
    %v1644 = vpop.permute.xlu0 %1643
    %1647 = vrot.lane.b32.xlu0 %v1621, 56
    %v1648 = vpop.permute.xlu0 %1647
    %v1650 = vsel %vm278, %v1594, %v1624
    %v1651 = vsel %vm396, %v1650, %v1628
    %v1652 = vsel %vm398, %v1651, %v1632
    %v1653 = vsel %vm180, %v1652, %v1636
    %v1654 = vsel %vm401, %v1653, %v1640
    %v1655 = vsel %vm403, %v1654, %v1644
    %v1656 = vsel %vm405, %v1655, %v1648
    %s1657 = scalar_lea.vmem [#allocation4], 4
    %1658 = vst.msk [vmem:[%s1657] sm:$0x3] %vm407, %v1656
    %v1659 = vpack.c.bf16 %v1554, %v1554
    %v1660 = vpack.c.bf16 %v1555, %v1555
    %v1661 = vpack.c.bf16 %v1426, %v1426
    %v1662 = vpack.c.bf16 %v1430, %v1430
    %v1664 = vsel %vm278, %v1659, 0
    %v1667 = vsel %vm416, %v1661, 0
    %1669 = vmatprep.subr.bf16.mxu0 0
    %1670 = vmatpush1.bf16.msra.mxu0 %v1667
    %1671 = vmatprep.subr.bf16.mxu0 0
    %1672 = vmatpush1.bf16.msra.mxu0 0
    %1673 = vmatprep.subr.bf16.mxu0 0
    %1674 = vmatpush1.bf16.msra.mxu0 0
    %1675 = vmatprep.subr.bf16.mxu0 0
    %1676 = vmatpush1.bf16.msra.mxu0 0
    %1677 = vmatprep.subr.bf16.mxu0 0
    %1678 = vmatpush1.bf16.msra.mxu0 0
    %1679 = vmatprep.subr.bf16.mxu0 0
    %1680 = vmatpush1.bf16.msra.mxu0 0
    %1681 = vmatprep.subr.bf16.mxu0 0
    %1682 = vmatpush1.bf16.msra.mxu0 0
    %1683 = vmatprep.subr.bf16.mxu0 0
    %1684 = vmatpush1.bf16.msra.mxu0 0
    %1685 = vmatprep.subr.bf16.mxu0 0
    %1686 = vmatpush1.bf16.msra.mxu0 0
    %1687 = vmatprep.subr.bf16.mxu0 0
    %1688 = vmatpush1.bf16.msra.mxu0 0
    %1689 = vmatprep.subr.bf16.mxu0 0
    %1690 = vmatpush1.bf16.msra.mxu0 0
    %1691 = vmatprep.subr.bf16.mxu0 0
    %1692 = vmatpush1.bf16.msra.mxu0 0
    %1693 = vmatprep.subr.bf16.mxu0 0
    %1694 = vmatpush1.bf16.msra.mxu0 0
    %1695 = vmatprep.subr.bf16.mxu0 0
    %1696 = vmatpush1.bf16.msra.mxu0 0
    %1697 = vmatprep.subr.bf16.mxu0 0
    %1698 = vmatpush1.bf16.msra.mxu0 0
    %1699 = vmatprep.subr.bf16.mxu0 0
    %1700 = vmatpush1.bf16.msra.mxu0 0
    %1701 = vmatprep.mubr.bf16.mxu0 0
    %1702 = vmatmul.mubr.bf16.gmra.mrb[0].mxu0 %v1664
    %v1703 = vpop.f32.mrb[0].mxu0
    %v1704 = vadd.f32 0.0, %v1703
    %v1705 = vpop.f32.mrb[0].mxu0
    %v1706 = vpop.f32.mrb[0].mxu0
    %v1707 = vpop.f32.mrb[0].mxu0
    %1708 = vdwg.mxu0
    %v1710 = vsel %vm278, %v1660, 0
    %v1713 = vsel %vm416, %v1662, 0
    %1715 = vmatprep.subr.bf16.mxu0 0
    %1716 = vmatpush1.bf16.msra.mxu0 %v1713
    %1717 = vmatprep.subr.bf16.mxu0 0
    %1718 = vmatpush1.bf16.msra.mxu0 0
    %1719 = vmatprep.subr.bf16.mxu0 0
    %1720 = vmatpush1.bf16.msra.mxu0 0
    %1721 = vmatprep.subr.bf16.mxu0 0
    %1722 = vmatpush1.bf16.msra.mxu0 0
    %1723 = vmatprep.subr.bf16.mxu0 0
    %1724 = vmatpush1.bf16.msra.mxu0 0
    %1725 = vmatprep.subr.bf16.mxu0 0
    %1726 = vmatpush1.bf16.msra.mxu0 0
    %1727 = vmatprep.subr.bf16.mxu0 0
    %1728 = vmatpush1.bf16.msra.mxu0 0
    %1729 = vmatprep.subr.bf16.mxu0 0
    %1730 = vmatpush1.bf16.msra.mxu0 0
    %1731 = vmatprep.subr.bf16.mxu0 0
    %1732 = vmatpush1.bf16.msra.mxu0 0
    %1733 = vmatprep.subr.bf16.mxu0 0
    %1734 = vmatpush1.bf16.msra.mxu0 0
    %1735 = vmatprep.subr.bf16.mxu0 0
    %1736 = vmatpush1.bf16.msra.mxu0 0
    %1737 = vmatprep.subr.bf16.mxu0 0
    %1738 = vmatpush1.bf16.msra.mxu0 0
    %1739 = vmatprep.subr.bf16.mxu0 0
    %1740 = vmatpush1.bf16.msra.mxu0 0
    %1741 = vmatprep.subr.bf16.mxu0 0
    %1742 = vmatpush1.bf16.msra.mxu0 0
    %1743 = vmatprep.subr.bf16.mxu0 0
    %1744 = vmatpush1.bf16.msra.mxu0 0
    %1745 = vmatprep.subr.bf16.mxu0 0
    %1746 = vmatpush1.bf16.msra.mxu0 0
    %1747 = vmatprep.mubr.bf16.mxu0 0
    %1748 = vmatmul.mubr.bf16.gmra.mrb[0].mxu0 %v1710
    %v1749 = vpop.f32.mrb[0].mxu0
    %v1750 = vadd.f32 0.0, %v1749
    %v1751 = vpop.f32.mrb[0].mxu0
    %v1752 = vpop.f32.mrb[0].mxu0
    %v1753 = vpop.f32.mrb[0].mxu0
    %1754 = vdwg.mxu0
    %v1755 = vpack.c.bf16 %v1750, %v1704
    %s1756 = scalar_lea.vmem %s2, 32
    %v1757 = vld [vmem:[%s1756] sm:$0xf]
    %v1758 = vld [vmem:[%s1756 + $0x4] sm:$0xf]
    %v1759 = vld [vmem:[%s1756 + $0x8] sm:$0xf]
    %v1760 = vld [vmem:[%s1756 + $0xc] sm:$0xf]
    %v1765 = vunpack.c.l.b16 %v1757
    %v1766 = vunpack.c.l.b16 %v1758
    %v1767 = vunpack.c.l.b16 %v1759
    %v1768 = vunpack.c.l.b16 %v1760
    %v1769 = vpack.c.b16 %v1766, %v1765
    %v1770 = vpack.c.b16 %v1768, %v1767
    %v1774 = vsel %vm180, %v1755, 0
    %1776 = vmatprep.subr.bf16.mxu0 0
    %1777 = vmatpush1.bf16.msra.mxu0 %v1769
    %1778 = vmatprep.subr.bf16.mxu0 0
    %1779 = vmatpush1.bf16.msra.mxu0 %v1770
    %1780 = vmatprep.subr.bf16.mxu0 0
    %1781 = vmatpush1.bf16.msra.mxu0 0
    %1782 = vmatprep.subr.bf16.mxu0 0
    %1783 = vmatpush1.bf16.msra.mxu0 0
    %1784 = vmatprep.subr.bf16.mxu0 0
    %1785 = vmatpush1.bf16.msra.mxu0 0
    %1786 = vmatprep.subr.bf16.mxu0 0
    %1787 = vmatpush1.bf16.msra.mxu0 0
    %1788 = vmatprep.subr.bf16.mxu0 0
    %1789 = vmatpush1.bf16.msra.mxu0 0
    %1790 = vmatprep.subr.bf16.mxu0 0
    %1791 = vmatpush1.bf16.msra.mxu0 0
    %1792 = vmatprep.subr.bf16.mxu0 0
    %1793 = vmatpush1.bf16.msra.mxu0 0
    %1794 = vmatprep.subr.bf16.mxu0 0
    %1795 = vmatpush1.bf16.msra.mxu0 0
    %1796 = vmatprep.subr.bf16.mxu0 0
    %1797 = vmatpush1.bf16.msra.mxu0 0
    %1798 = vmatprep.subr.bf16.mxu0 0
    %1799 = vmatpush1.bf16.msra.mxu0 0
    %1800 = vmatprep.subr.bf16.mxu0 0
    %1801 = vmatpush1.bf16.msra.mxu0 0
    %1802 = vmatprep.subr.bf16.mxu0 0
    %1803 = vmatpush1.bf16.msra.mxu0 0
    %1804 = vmatprep.subr.bf16.mxu0 0
    %1805 = vmatpush1.bf16.msra.mxu0 0
    %1806 = vmatprep.subr.bf16.mxu0 0
    %1807 = vmatpush1.bf16.msra.mxu0 0
    %1808 = vmatprep.mubr.bf16.mxu0 0
    %1809 = vmatmul.mubr.bf16.gmra.mrb[0].mxu0 %v1774
    %v1810 = vpop.f32.mrb[0].mxu0
    %v1811 = vadd.f32 0.0, %v1810
    %v1812 = vpop.f32.mrb[0].mxu0
    %v1813 = vpop.f32.mrb[0].mxu0
    %v1814 = vadd.f32 0.0, %v1813
    %v1815 = vpop.f32.mrb[0].mxu0
    %1816 = vdwg.mxu0
    %v1817 = vlaneseq
    %v1818 = vshrl.u32 %v1817, 7
    %v1819 = vsub.s32 0, %v1818
    %v1820 = vrot.slane %v1294, %v1819
    %v1821 = vadd.f32 %v1820, %v1811
    %v1822 = vadd.f32 %v1820, %v1814
    %1823 = vrot.lane.b32.xlu0 %v1432, 96
    %v1824 = vpop.permute.xlu0 %1823
    %1825 = vrot.lane.b32.xlu0 %v1432, 32
    %v1826 = vpop.permute.xlu0 %1825
    %v1828 = vsel %vm180, %v1824, 0
    %v1831 = vsel %vm180, %v1826, 0
    %1833 = vmatprep.subr.bf16.mxu0 0
    %1834 = vmatpush1.bf16.xpose.msra.mxu0 %v1831
    %1835 = vmatprep.subr.bf16.mxu0 0
    %1836 = vmatpush1.bf16.xpose.msra.mxu0 0
    %1837 = vmatprep.subr.bf16.mxu0 0
    %1838 = vmatpush1.bf16.xpose.msra.mxu0 0
    %1839 = vmatprep.subr.bf16.mxu0 0
    %1840 = vmatpush1.bf16.xpose.msra.mxu0 0
    %1841 = vmatprep.subr.bf16.mxu0 0
    %1842 = vmatpush1.bf16.xpose.msra.mxu0 0
    %1843 = vmatprep.subr.bf16.mxu0 0
    %1844 = vmatpush1.bf16.xpose.msra.mxu0 0
    %1845 = vmatprep.subr.bf16.mxu0 0
    %1846 = vmatpush1.bf16.xpose.msra.mxu0 0
    %1847 = vmatprep.subr.bf16.mxu0 0
    %1848 = vmatpush1.bf16.xpose.msra.mxu0 0
    %1849 = vmatprep.subr.bf16.mxu0 0
    %1850 = vmatpush1.bf16.xpose.msra.mxu0 0
    %1851 = vmatprep.subr.bf16.mxu0 0
    %1852 = vmatpush1.bf16.xpose.msra.mxu0 0
    %1853 = vmatprep.subr.bf16.mxu0 0
    %1854 = vmatpush1.bf16.xpose.msra.mxu0 0
    %1855 = vmatprep.subr.bf16.mxu0 0
    %1856 = vmatpush1.bf16.xpose.msra.mxu0 0
    %1857 = vmatprep.subr.bf16.mxu0 0
    %1858 = vmatpush1.bf16.xpose.msra.mxu0 0
    %1859 = vmatprep.subr.bf16.mxu0 0
    %1860 = vmatpush1.bf16.xpose.msra.mxu0 0
    %1861 = vmatprep.subr.bf16.mxu0 0
    %1862 = vmatpush1.bf16.xpose.msra.mxu0 0
    %1863 = vmatprep.subr.bf16.mxu0 0
    %1864 = vmatpush1.bf16.xpose.msra.mxu0 0
    %1865 = vmatprep.mubr.bf16.mxu0 0
    %1866 = vmatmul.mubr.bf16.gmra.mrb[0].mxu0 %v1828
    %v1867 = vpop.f32.mrb[0].mxu0
    %v1868 = vadd.f32 0.0, %v1867
    %v1869 = vpop.f32.mrb[0].mxu0
    %v1870 = vpop.f32.mrb[0].mxu0
    %v1871 = vpop.f32.mrb[0].mxu0
    %1872 = vdwg.mxu0
    %1873 = vrot.lane.b32.xlu0 %v1433, 96
    %v1874 = vpop.permute.xlu0 %1873
    %1875 = vrot.lane.b32.xlu0 %v1433, 32
    %v1876 = vpop.permute.xlu0 %1875
    %v1878 = vsel %vm180, %v1874, 0
    %v1881 = vsel %vm180, %v1876, 0
    %1883 = vmatprep.subr.bf16.mxu0 0
    %1884 = vmatpush1.bf16.xpose.msra.mxu0 %v1881
    %1885 = vmatprep.subr.bf16.mxu0 0
    %1886 = vmatpush1.bf16.xpose.msra.mxu0 0
    %1887 = vmatprep.subr.bf16.mxu0 0
    %1888 = vmatpush1.bf16.xpose.msra.mxu0 0
    %1889 = vmatprep.subr.bf16.mxu0 0
    %1890 = vmatpush1.bf16.xpose.msra.mxu0 0
    %1891 = vmatprep.subr.bf16.mxu0 0
    %1892 = vmatpush1.bf16.xpose.msra.mxu0 0
    %1893 = vmatprep.subr.bf16.mxu0 0
    %1894 = vmatpush1.bf16.xpose.msra.mxu0 0
    %1895 = vmatprep.subr.bf16.mxu0 0
    %1896 = vmatpush1.bf16.xpose.msra.mxu0 0
    %1897 = vmatprep.subr.bf16.mxu0 0
    %1898 = vmatpush1.bf16.xpose.msra.mxu0 0
    %1899 = vmatprep.subr.bf16.mxu0 0
    %1900 = vmatpush1.bf16.xpose.msra.mxu0 0
    %1901 = vmatprep.subr.bf16.mxu0 0
    %1902 = vmatpush1.bf16.xpose.msra.mxu0 0
    %1903 = vmatprep.subr.bf16.mxu0 0
    %1904 = vmatpush1.bf16.xpose.msra.mxu0 0
    %1905 = vmatprep.subr.bf16.mxu0 0
    %1906 = vmatpush1.bf16.xpose.msra.mxu0 0
    %1907 = vmatprep.subr.bf16.mxu0 0
    %1908 = vmatpush1.bf16.xpose.msra.mxu0 0
    %1909 = vmatprep.subr.bf16.mxu0 0
    %1910 = vmatpush1.bf16.xpose.msra.mxu0 0
    %1911 = vmatprep.subr.bf16.mxu0 0
    %1912 = vmatpush1.bf16.xpose.msra.mxu0 0
    %1913 = vmatprep.subr.bf16.mxu0 0
    %1914 = vmatpush1.bf16.xpose.msra.mxu0 0
    %1915 = vmatprep.mubr.bf16.mxu0 0
    %1916 = vmatmul.mubr.bf16.gmra.mrb[0].mxu0 %v1878
    %v1917 = vpop.f32.mrb[0].mxu0
    %v1918 = vadd.f32 0.0, %v1917
    %v1919 = vpop.f32.mrb[0].mxu0
    %v1920 = vpop.f32.mrb[0].mxu0
    %v1921 = vpop.f32.mrb[0].mxu0
    %1922 = vdwg.mxu0
    %v1923 = vmul.f32 %v1868, 0.17677669
    %v1924 = vmul.f32 %v1918, 0.17677669
    %v1925 = vsel %vm278, %v1923, -inf
    %1926 = vmax.xlane.f32.xlu0 %v1925
    %v1927 = vpop.xlane.xlu0 %1926
    %v1928 = vsel %vm278, %v1924, -inf
    %1929 = vmax.xlane.f32.xlu0 %v1928
    %v1930 = vpop.xlane.xlu0 %1929
    %v1931 = vsub.f32 %v1923, %v1927
    %v1932 = vsub.f32 %v1924, %v1930
    %v1933 = vmul.f32 %v1931, 1.442695
    %v1934 = vpow.pop %v1933
    %v1935 = vmul.f32 %v1932, 1.442695
    %v1936 = vpow.pop %v1935
    %v1937 = vsel %vm278, %v1934, 0.0
    %1938 = vadd.xlane.f32.xlu0 %v1937
    %v1939 = vpop.xlane.xlu0 %1938
    %v1940 = vsel %vm278, %v1936, 0.0
    %1941 = vadd.xlane.f32.xlu0 %v1940
    %v1942 = vpop.xlane.xlu0 %1941
    %v1943 = vrcp.pop %v1939
    %v1944 = vrcp.pop %v1942
    %v1945 = vmul.f32 %v1934, %v1943
    %v1946 = vmul.f32 %v1936, %v1944
    %v1947 = vcombine.high %v1945, 0.0
    %v1949 = vunpack.c.l.s4 1983009808
    %v1950 = vunpack.c.0.s8 %v1949
    %v1951 = vlaneseq
    %v1952 = vshrl.u32 %v1951, 7
    %v1953 = vsub.s32 %v1950, %v1952
    %v1954 = vrot.slane %v1945, %v1953
    %v1956 = vunpack.c.l.s4 1983009808
    %v1957 = vunpack.c.0.s8 %v1956
    %v1958 = vlaneseq
    %v1959 = vshrl.u32 %v1958, 7
    %v1960 = vsub.s32 %v1957, %v1959
    %v1961 = vrot.slane %v1947, %v1960
    %v1962 = vcombine.high %v1946, 0.0
    %v1964 = vunpack.c.l.s4 1983009808
    %v1965 = vunpack.c.0.s8 %v1964
    %v1966 = vlaneseq
    %v1967 = vshrl.u32 %v1966, 7
    %v1968 = vsub.s32 %v1965, %v1967
    %v1969 = vrot.slane %v1946, %v1968
    %v1971 = vunpack.c.l.s4 1983009808
    %v1972 = vunpack.c.0.s8 %v1971
    %v1973 = vlaneseq
    %v1974 = vshrl.u32 %v1973, 7
    %v1975 = vsub.s32 %v1972, %v1974
    %v1976 = vrot.slane %v1962, %v1975
    %v1977 = vcombine.low %v1954, %v1969
    %v1978 = vcombine.high %v1954, %v1969
    %v1980 = vunpack.c.l.s4 1934713408
    %v1981 = vunpack.c.0.s8 %v1980
    %v1982 = vlaneseq
    %v1983 = vshrl.u32 %v1982, 7
    %v1984 = vsub.s32 %v1981, %v1983
    %v1985 = vrot.slane %v1977, %v1984
    %v1987 = vunpack.c.l.s4 1934713408
    %v1988 = vunpack.c.0.s8 %v1987
    %v1989 = vlaneseq
    %v1990 = vshrl.u32 %v1989, 7
    %v1991 = vsub.s32 %v1988, %v1990
    %v1992 = vrot.slane %v1978, %v1991
    %v1993 = vcombine.low %v1961, %v1976
    %v1994 = vcombine.high %v1961, %v1976
    %v1996 = vunpack.c.l.s4 1934713408
    %v1997 = vunpack.c.0.s8 %v1996
    %v1998 = vlaneseq
    %v1999 = vshrl.u32 %v1998, 7
    %v2000 = vsub.s32 %v1997, %v1999
    %v2001 = vrot.slane %v1993, %v2000
    %v2003 = vunpack.c.l.s4 1934713408
    %v2004 = vunpack.c.0.s8 %v2003
    %v2005 = vlaneseq
    %v2006 = vshrl.u32 %v2005, 7
    %v2007 = vsub.s32 %v2004, %v2006
    %v2008 = vrot.slane %v1994, %v2007
    %v2009 = vcombine.high %v1985, 0.0
    %v2010 = vcombine.high %v1992, 0.0
    %v2011 = vcombine.high %v2001, 0.0
    %v2012 = vcombine.high %v2008, 0.0
    %2014 = vrot.lane.b32.xlu0 %v2009, 8
    %v2015 = vpop.permute.xlu0 %2014
    %2018 = vrot.lane.b32.xlu0 %v1992, 16
    %v2019 = vpop.permute.xlu0 %2018
    %2022 = vrot.lane.b32.xlu0 %v2010, 24
    %v2023 = vpop.permute.xlu0 %2022
    %2026 = vrot.lane.b32.xlu0 %v2001, 32
    %v2027 = vpop.permute.xlu0 %2026
    %2030 = vrot.lane.b32.xlu0 %v2011, 40
    %v2031 = vpop.permute.xlu0 %2030
    %2034 = vrot.lane.b32.xlu0 %v2008, 48
    %v2035 = vpop.permute.xlu0 %2034
    %2038 = vrot.lane.b32.xlu0 %v2012, 56
    %v2039 = vpop.permute.xlu0 %2038
    %v2041 = vsel %vm278, %v1985, %v2015
    %v2042 = vsel %vm396, %v2041, %v2019
    %v2043 = vsel %vm398, %v2042, %v2023
    %v2044 = vsel %vm180, %v2043, %v2027
    %v2045 = vsel %vm401, %v2044, %v2031
    %v2046 = vsel %vm403, %v2045, %v2035
    %v2047 = vsel %vm405, %v2046, %v2039
    %s2048 = scalar_lea.vmem [#allocation4], 6
    %2049 = vst.msk [vmem:[%s2048] sm:$0x3] %vm407, %v2047
    %v2050 = vpack.c.bf16 %v1945, %v1945
    %v2051 = vpack.c.bf16 %v1946, %v1946
    %2053 = vrot.lane.b32.xlu0 %v1661, 96
    %v2054 = vpop.permute.xlu0 %2053
    %v2056 = vsel %vm278, %v2050, 0
    %v2059 = vsel %vm416, %v2054, 0
    %2061 = vmatprep.subr.bf16.mxu0 0
    %2062 = vmatpush1.bf16.msra.mxu0 %v2059
    %2063 = vmatprep.subr.bf16.mxu0 0
    %2064 = vmatpush1.bf16.msra.mxu0 0
    %2065 = vmatprep.subr.bf16.mxu0 0
    %2066 = vmatpush1.bf16.msra.mxu0 0
    %2067 = vmatprep.subr.bf16.mxu0 0
    %2068 = vmatpush1.bf16.msra.mxu0 0
    %2069 = vmatprep.subr.bf16.mxu0 0
    %2070 = vmatpush1.bf16.msra.mxu0 0
    %2071 = vmatprep.subr.bf16.mxu0 0
    %2072 = vmatpush1.bf16.msra.mxu0 0
    %2073 = vmatprep.subr.bf16.mxu0 0
    %2074 = vmatpush1.bf16.msra.mxu0 0
    %2075 = vmatprep.subr.bf16.mxu0 0
    %2076 = vmatpush1.bf16.msra.mxu0 0
    %2077 = vmatprep.subr.bf16.mxu0 0
    %2078 = vmatpush1.bf16.msra.mxu0 0
    %2079 = vmatprep.subr.bf16.mxu0 0
    %2080 = vmatpush1.bf16.msra.mxu0 0
    %2081 = vmatprep.subr.bf16.mxu0 0
    %2082 = vmatpush1.bf16.msra.mxu0 0
    %2083 = vmatprep.subr.bf16.mxu0 0
    %2084 = vmatpush1.bf16.msra.mxu0 0
    %2085 = vmatprep.subr.bf16.mxu0 0
    %2086 = vmatpush1.bf16.msra.mxu0 0
    %2087 = vmatprep.subr.bf16.mxu0 0
    %2088 = vmatpush1.bf16.msra.mxu0 0
    %2089 = vmatprep.subr.bf16.mxu0 0
    %2090 = vmatpush1.bf16.msra.mxu0 0
    %2091 = vmatprep.subr.bf16.mxu0 0
    %2092 = vmatpush1.bf16.msra.mxu0 0
    %2093 = vmatprep.mubr.bf16.mxu0 0
    %2094 = vmatmul.mubr.bf16.gmra.mrb[0].mxu0 %v2056
    %v2095 = vpop.f32.mrb[0].mxu0
    %v2096 = vadd.f32 0.0, %v2095
    %v2097 = vpop.f32.mrb[0].mxu0
    %v2098 = vpop.f32.mrb[0].mxu0
    %v2099 = vpop.f32.mrb[0].mxu0
    %2100 = vdwg.mxu0
    %2102 = vrot.lane.b32.xlu0 %v1662, 96
    %v2103 = vpop.permute.xlu0 %2102
    %v2105 = vsel %vm278, %v2051, 0
    %v2108 = vsel %vm416, %v2103, 0
    %2110 = vmatprep.subr.bf16.mxu0 0
    %2111 = vmatpush1.bf16.msra.mxu0 %v2108
    %2112 = vmatprep.subr.bf16.mxu0 0
    %2113 = vmatpush1.bf16.msra.mxu0 0
    %2114 = vmatprep.subr.bf16.mxu0 0
    %2115 = vmatpush1.bf16.msra.mxu0 0
    %2116 = vmatprep.subr.bf16.mxu0 0
    %2117 = vmatpush1.bf16.msra.mxu0 0
    %2118 = vmatprep.subr.bf16.mxu0 0
    %2119 = vmatpush1.bf16.msra.mxu0 0
    %2120 = vmatprep.subr.bf16.mxu0 0
    %2121 = vmatpush1.bf16.msra.mxu0 0
    %2122 = vmatprep.subr.bf16.mxu0 0
    %2123 = vmatpush1.bf16.msra.mxu0 0
    %2124 = vmatprep.subr.bf16.mxu0 0
    %2125 = vmatpush1.bf16.msra.mxu0 0
    %2126 = vmatprep.subr.bf16.mxu0 0
    %2127 = vmatpush1.bf16.msra.mxu0 0
    %2128 = vmatprep.subr.bf16.mxu0 0
    %2129 = vmatpush1.bf16.msra.mxu0 0
    %2130 = vmatprep.subr.bf16.mxu0 0
    %2131 = vmatpush1.bf16.msra.mxu0 0
    %2132 = vmatprep.subr.bf16.mxu0 0
    %2133 = vmatpush1.bf16.msra.mxu0 0
    %2134 = vmatprep.subr.bf16.mxu0 0
    %2135 = vmatpush1.bf16.msra.mxu0 0
    %2136 = vmatprep.subr.bf16.mxu0 0
    %2137 = vmatpush1.bf16.msra.mxu0 0
    %2138 = vmatprep.subr.bf16.mxu0 0
    %2139 = vmatpush1.bf16.msra.mxu0 0
    %2140 = vmatprep.subr.bf16.mxu0 0
    %2141 = vmatpush1.bf16.msra.mxu0 0
    %2142 = vmatprep.mubr.bf16.mxu0 0
    %2143 = vmatmul.mubr.bf16.gmra.mrb[0].mxu0 %v2105
    %v2144 = vpop.f32.mrb[0].mxu0
    %v2145 = vadd.f32 0.0, %v2144
    %v2146 = vpop.f32.mrb[0].mxu0
    %v2147 = vpop.f32.mrb[0].mxu0
    %v2148 = vpop.f32.mrb[0].mxu0
    %2149 = vdwg.mxu0
    %v2150 = vpack.c.bf16 %v2145, %v2096
    %v2151 = vld [vmem:[%s1756 + $0x10] sm:$0xf]
    %v2152 = vld [vmem:[%s1756 + $0x14] sm:$0xf]
    %v2153 = vld [vmem:[%s1756 + $0x18] sm:$0xf]
    %v2154 = vld [vmem:[%s1756 + $0x1c] sm:$0xf]
    %v2159 = vunpack.c.l.b16 %v2151
    %v2160 = vunpack.c.l.b16 %v2152
    %v2161 = vunpack.c.l.b16 %v2153
    %v2162 = vunpack.c.l.b16 %v2154
    %v2163 = vpack.c.b16 %v2160, %v2159
    %v2164 = vpack.c.b16 %v2162, %v2161
    %v2168 = vsel %vm180, %v2150, 0
    %2170 = vmatprep.subr.bf16.mxu0 0
    %2171 = vmatpush1.bf16.msra.mxu0 %v2163
    %2172 = vmatprep.subr.bf16.mxu0 0
    %2173 = vmatpush1.bf16.msra.mxu0 %v2164
    %2174 = vmatprep.subr.bf16.mxu0 0
    %2175 = vmatpush1.bf16.msra.mxu0 0
    %2176 = vmatprep.subr.bf16.mxu0 0
    %2177 = vmatpush1.bf16.msra.mxu0 0
    %2178 = vmatprep.subr.bf16.mxu0 0
    %2179 = vmatpush1.bf16.msra.mxu0 0
    %2180 = vmatprep.subr.bf16.mxu0 0
    %2181 = vmatpush1.bf16.msra.mxu0 0
    %2182 = vmatprep.subr.bf16.mxu0 0
    %2183 = vmatpush1.bf16.msra.mxu0 0
    %2184 = vmatprep.subr.bf16.mxu0 0
    %2185 = vmatpush1.bf16.msra.mxu0 0
    %2186 = vmatprep.subr.bf16.mxu0 0
    %2187 = vmatpush1.bf16.msra.mxu0 0
    %2188 = vmatprep.subr.bf16.mxu0 0
    %2189 = vmatpush1.bf16.msra.mxu0 0
    %2190 = vmatprep.subr.bf16.mxu0 0
    %2191 = vmatpush1.bf16.msra.mxu0 0
    %2192 = vmatprep.subr.bf16.mxu0 0
    %2193 = vmatpush1.bf16.msra.mxu0 0
    %2194 = vmatprep.subr.bf16.mxu0 0
    %2195 = vmatpush1.bf16.msra.mxu0 0
    %2196 = vmatprep.subr.bf16.mxu0 0
    %2197 = vmatpush1.bf16.msra.mxu0 0
    %2198 = vmatprep.subr.bf16.mxu0 0
    %2199 = vmatpush1.bf16.msra.mxu0 0
    %2200 = vmatprep.subr.bf16.mxu0 0
    %2201 = vmatpush1.bf16.msra.mxu0 0
    %2202 = vmatprep.mubr.bf16.mxu0 0
    %2203 = vmatmul.mubr.bf16.gmra.mrb[0].mxu0 %v2168
    %v2204 = vpop.f32.mrb[0].mxu0
    %v2205 = vadd.f32 0.0, %v2204
    %v2206 = vpop.f32.mrb[0].mxu0
    %v2207 = vpop.f32.mrb[0].mxu0
    %v2208 = vadd.f32 0.0, %v2207
    %v2209 = vpop.f32.mrb[0].mxu0
    %2210 = vdwg.mxu0
    %v2211 = vadd.f32 %v1821, %v2205
    %v2212 = vadd.f32 %v1822, %v2208
    %v2213 = vadd.f32 %v1288, %v2211
    %v2214 = vadd.f32 %v1289, %v2212
    %v2215 = vsel %vm40, %v2213, 0.0
    %2216 = vadd.xlane.f32.xlu0 %v2215
    %v2217 = vpop.xlane.xlu0 %2216
    %v2218 = vsel %vm40, %v2214, 0.0
    %2219 = vadd.xlane.f32.xlu0 %v2218
    %v2220 = vpop.xlane.xlu0 %2219
    %v2221 = vmul.f32 %v2217, %v47
    %v2222 = vmul.f32 %v2220, %v47
    %v2223 = vsub.f32 %v2213, %v2221
    %v2224 = vsub.f32 %v2214, %v2222
    %v2225 = vmul.f32 %v2223, %v2223
    %v2226 = vmul.f32 %v2224, %v2224
    %v2227 = vsel %vm40, %v2225, 0.0
    %2228 = vadd.xlane.f32.xlu0 %v2227
    %v2229 = vpop.xlane.xlu0 %2228
    %v2230 = vsel %vm40, %v2226, 0.0
    %2231 = vadd.xlane.f32.xlu0 %v2230
    %v2232 = vpop.xlane.xlu0 %2231
    %v2233 = vmul.f32 %v2229, %v47
    %v2234 = vmul.f32 %v2232, %v47
    %v2235 = vadd.f32 %v2233, 1e-05
    %v2236 = vadd.f32 %v2234, 1e-05
    %v2237 = vrsqrt.pop %v2235
    %v2238 = vrsqrt.pop %v2236
    %v2239 = vmul.f32 %v2223, %v2237
    %v2240 = vmul.f32 %v2224, %v2238
    %v2241 = vlaneseq
    %v2242 = vshrl.u32 %v2241, 7
    %v2243 = vsub.s32 0, %v2242
    %v2244 = vrot.slane %v1292, %v2243
    %v2245 = vmul.f32 %v2239, %v2244
    %v2246 = vmul.f32 %v2240, %v2244
    %v2247 = vlaneseq
    %v2248 = vshrl.u32 %v2247, 7
    %v2249 = vsub.s32 0, %v2248
    %v2250 = vrot.slane %v1293, %v2249
    %v2251 = vadd.f32 %v2245, %v2250
    %v2252 = vadd.f32 %v2246, %v2250
    %v2253 = vpack.c.bf16 %v2252, %v2251
    %s2254 = scalar_lea.vmem %s3, 64
    %v2255 = vld [vmem:[%s2254] sm:$0xff]
    %v2256 = vld [vmem:[%s2254 + $0x8] sm:$0xff]
    %v2257 = vld [vmem:[%s2254 + $0x10] sm:$0xff]
    %v2258 = vld [vmem:[%s2254 + $0x18] sm:$0xff]
    %v2259 = vld [vmem:[%s2254 + $0x20] sm:$0xff]
    %v2260 = vld [vmem:[%s2254 + $0x28] sm:$0xff]
    %v2261 = vld [vmem:[%s2254 + $0x30] sm:$0xff]
    %v2262 = vld [vmem:[%s2254 + $0x38] sm:$0xff]
    %v2264 = vlaneseq
    %v2265 = vshrl.u32 %v2264, 7
    %v2266 = vsub.s32 0, %v2265
    %v2267 = vrot.slane %v1297, %v2266
    %v2268 = vlaneseq
    %v2269 = vshrl.u32 %v2268, 7
    %v2270 = vsub.s32 1, %v2269
    %v2271 = vrot.slane %v1297, %v2270
    %v2282 = vunpack.c.l.b16 %v2255
    %v2283 = vunpack.c.h.b16 %v2255
    %v2284 = vunpack.c.l.b16 %v2256
    %v2285 = vunpack.c.h.b16 %v2256
    %v2286 = vunpack.c.l.b16 %v2257
    %v2287 = vunpack.c.h.b16 %v2257
    %v2288 = vunpack.c.l.b16 %v2258
    %v2289 = vunpack.c.h.b16 %v2258
    %v2290 = vunpack.c.l.b16 %v2259
    %v2291 = vunpack.c.h.b16 %v2259
    %v2292 = vunpack.c.l.b16 %v2260
    %v2293 = vunpack.c.h.b16 %v2260
    %v2294 = vunpack.c.l.b16 %v2261
    %v2295 = vunpack.c.h.b16 %v2261
    %v2296 = vunpack.c.l.b16 %v2262
    %v2297 = vunpack.c.h.b16 %v2262
    %v2298 = vpack.c.b16 %v2284, %v2282
    %v2299 = vpack.c.b16 %v2285, %v2283
    %v2300 = vpack.c.b16 %v2288, %v2286
    %v2301 = vpack.c.b16 %v2289, %v2287
    %v2302 = vpack.c.b16 %v2292, %v2290
    %v2303 = vpack.c.b16 %v2293, %v2291
    %v2304 = vpack.c.b16 %v2296, %v2294
    %v2305 = vpack.c.b16 %v2297, %v2295
    %v2315 = vsel %vm40, %v2253, 0
    %2317 = vmatprep.subr.bf16.mxu0 %v2299
    %2318 = vmatpush1.bf16.msra.mxu0 %v2298
    %2319 = vmatprep.subr.bf16.mxu0 %v2301
    %2320 = vmatpush1.bf16.msra.mxu0 %v2300
    %2321 = vmatprep.subr.bf16.mxu0 %v2303
    %2322 = vmatpush1.bf16.msra.mxu0 %v2302
    %2323 = vmatprep.subr.bf16.mxu0 %v2305
    %2324 = vmatpush1.bf16.msra.mxu0 %v2304
    %2325 = vmatprep.subr.bf16.mxu0 0
    %2326 = vmatpush1.bf16.msra.mxu0 0
    %2327 = vmatprep.subr.bf16.mxu0 0
    %2328 = vmatpush1.bf16.msra.mxu0 0
    %2329 = vmatprep.subr.bf16.mxu0 0
    %2330 = vmatpush1.bf16.msra.mxu0 0
    %2331 = vmatprep.subr.bf16.mxu0 0
    %2332 = vmatpush1.bf16.msra.mxu0 0
    %2333 = vmatprep.subr.bf16.mxu0 0
    %2334 = vmatpush1.bf16.msra.mxu0 0
    %2335 = vmatprep.subr.bf16.mxu0 0
    %2336 = vmatpush1.bf16.msra.mxu0 0
    %2337 = vmatprep.subr.bf16.mxu0 0
    %2338 = vmatpush1.bf16.msra.mxu0 0
    %2339 = vmatprep.subr.bf16.mxu0 0
    %2340 = vmatpush1.bf16.msra.mxu0 0
    %2341 = vmatprep.subr.bf16.mxu0 0
    %2342 = vmatpush1.bf16.msra.mxu0 0
    %2343 = vmatprep.subr.bf16.mxu0 0
    %2344 = vmatpush1.bf16.msra.mxu0 0
    %2345 = vmatprep.subr.bf16.mxu0 0
    %2346 = vmatpush1.bf16.msra.mxu0 0
    %2347 = vmatprep.subr.bf16.mxu0 0
    %2348 = vmatpush1.bf16.msra.mxu0 0
    %2349 = vmatprep.mubr.bf16.mxu0 0
    %2350 = vmatmul.mubr.bf16.gmra.mrb[0].mxu0 %v2315
    %v2351 = vpop.f32.mrb[0].mxu0
    %v2352 = vadd.f32 %v2267, %v2351
    %v2353 = vpop.f32.mrb[0].mxu0
    %v2354 = vadd.f32 %v2271, %v2353
    %v2355 = vpop.f32.mrb[0].mxu0
    %v2356 = vadd.f32 %v2267, %v2355
    %v2357 = vpop.f32.mrb[0].mxu0
    %v2358 = vadd.f32 %v2271, %v2357
    %2359 = vdwg.mxu0
    %v2360 = vmax.f32 %v2352, 0.0
    %v2361 = vmax.f32 %v2354, 0.0
    %v2362 = vmax.f32 %v2356, 0.0
    %v2363 = vmax.f32 %v2358, 0.0
    %v2364 = vpack.c.bf16 %v2362, %v2360
    %v2365 = vpack.c.bf16 %v2363, %v2361
    %s2366 = scalar_lea.vmem %s4, 128
    %v2367 = vld [vmem:[%s2366] sm:$0xf]
    %v2368 = vld [vmem:[%s2366 + $0x4] sm:$0xf]
    %v2369 = vld [vmem:[%s2366 + $0x8] sm:$0xf]
    %v2370 = vld [vmem:[%s2366 + $0xc] sm:$0xf]
    %v2371 = vld [vmem:[%s2366 + $0x10] sm:$0xf]
    %v2372 = vld [vmem:[%s2366 + $0x14] sm:$0xf]
    %v2373 = vld [vmem:[%s2366 + $0x18] sm:$0xf]
    %v2374 = vld [vmem:[%s2366 + $0x1c] sm:$0xf]
    %v2375 = vld [vmem:[%s2366 + $0x20] sm:$0xf]
    %v2376 = vld [vmem:[%s2366 + $0x24] sm:$0xf]
    %v2377 = vld [vmem:[%s2366 + $0x28] sm:$0xf]
    %v2378 = vld [vmem:[%s2366 + $0x2c] sm:$0xf]
    %v2379 = vld [vmem:[%s2366 + $0x30] sm:$0xf]
    %v2380 = vld [vmem:[%s2366 + $0x34] sm:$0xf]
    %v2381 = vld [vmem:[%s2366 + $0x38] sm:$0xf]
    %v2382 = vld [vmem:[%s2366 + $0x3c] sm:$0xf]
    %v2383 = vld [vmem:[%s2366 + $0x40] sm:$0xf]
    %v2384 = vld [vmem:[%s2366 + $0x44] sm:$0xf]
    %v2385 = vld [vmem:[%s2366 + $0x48] sm:$0xf]
    %v2386 = vld [vmem:[%s2366 + $0x4c] sm:$0xf]
    %v2387 = vld [vmem:[%s2366 + $0x50] sm:$0xf]
    %v2388 = vld [vmem:[%s2366 + $0x54] sm:$0xf]
    %v2389 = vld [vmem:[%s2366 + $0x58] sm:$0xf]
    %v2390 = vld [vmem:[%s2366 + $0x5c] sm:$0xf]
    %v2391 = vld [vmem:[%s2366 + $0x60] sm:$0xf]
    %v2392 = vld [vmem:[%s2366 + $0x64] sm:$0xf]
    %v2393 = vld [vmem:[%s2366 + $0x68] sm:$0xf]
    %v2394 = vld [vmem:[%s2366 + $0x6c] sm:$0xf]
    %v2395 = vld [vmem:[%s2366 + $0x70] sm:$0xf]
    %v2396 = vld [vmem:[%s2366 + $0x74] sm:$0xf]
    %v2397 = vld [vmem:[%s2366 + $0x78] sm:$0xf]
    %v2398 = vld [vmem:[%s2366 + $0x7c] sm:$0xf]
    %v2399 = vlaneseq
    %v2400 = vshrl.u32 %v2399, 7
    %v2401 = vsub.s32 0, %v2400
    %v2402 = vrot.slane %v1295, %v2401
    %v2435 = vunpack.c.l.b16 %v2367
    %v2436 = vunpack.c.l.b16 %v2368
    %v2437 = vunpack.c.l.b16 %v2369
    %v2438 = vunpack.c.l.b16 %v2370
    %v2439 = vunpack.c.l.b16 %v2371
    %v2440 = vunpack.c.l.b16 %v2372
    %v2441 = vunpack.c.l.b16 %v2373
    %v2442 = vunpack.c.l.b16 %v2374
    %v2443 = vunpack.c.l.b16 %v2375
    %v2444 = vunpack.c.l.b16 %v2376
    %v2445 = vunpack.c.l.b16 %v2377
    %v2446 = vunpack.c.l.b16 %v2378
    %v2447 = vunpack.c.l.b16 %v2379
    %v2448 = vunpack.c.l.b16 %v2380
    %v2449 = vunpack.c.l.b16 %v2381
    %v2450 = vunpack.c.l.b16 %v2382
    %v2451 = vunpack.c.l.b16 %v2383
    %v2452 = vunpack.c.l.b16 %v2384
    %v2453 = vunpack.c.l.b16 %v2385
    %v2454 = vunpack.c.l.b16 %v2386
    %v2455 = vunpack.c.l.b16 %v2387
    %v2456 = vunpack.c.l.b16 %v2388
    %v2457 = vunpack.c.l.b16 %v2389
    %v2458 = vunpack.c.l.b16 %v2390
    %v2459 = vunpack.c.l.b16 %v2391
    %v2460 = vunpack.c.l.b16 %v2392
    %v2461 = vunpack.c.l.b16 %v2393
    %v2462 = vunpack.c.l.b16 %v2394
    %v2463 = vunpack.c.l.b16 %v2395
    %v2464 = vunpack.c.l.b16 %v2396
    %v2465 = vunpack.c.l.b16 %v2397
    %v2466 = vunpack.c.l.b16 %v2398
    %v2467 = vpack.c.b16 %v2436, %v2435
    %v2468 = vpack.c.b16 %v2438, %v2437
    %v2469 = vpack.c.b16 %v2440, %v2439
    %v2470 = vpack.c.b16 %v2442, %v2441
    %v2471 = vpack.c.b16 %v2444, %v2443
    %v2472 = vpack.c.b16 %v2446, %v2445
    %v2473 = vpack.c.b16 %v2448, %v2447
    %v2474 = vpack.c.b16 %v2450, %v2449
    %v2475 = vpack.c.b16 %v2452, %v2451
    %v2476 = vpack.c.b16 %v2454, %v2453
    %v2477 = vpack.c.b16 %v2456, %v2455
    %v2478 = vpack.c.b16 %v2458, %v2457
    %v2479 = vpack.c.b16 %v2460, %v2459
    %v2480 = vpack.c.b16 %v2462, %v2461
    %v2481 = vpack.c.b16 %v2464, %v2463
    %v2482 = vpack.c.b16 %v2466, %v2465
    %2499 = vmatprep.subr.bf16.mxu0 0
    %2500 = vmatpush1.bf16.msra.mxu0 %v2467
    %2501 = vmatprep.subr.bf16.mxu0 0
    %2502 = vmatpush1.bf16.msra.mxu0 %v2468
    %2503 = vmatprep.subr.bf16.mxu0 0
    %2504 = vmatpush1.bf16.msra.mxu0 %v2469
    %2505 = vmatprep.subr.bf16.mxu0 0
    %2506 = vmatpush1.bf16.msra.mxu0 %v2470
    %2507 = vmatprep.subr.bf16.mxu0 0
    %2508 = vmatpush1.bf16.msra.mxu0 %v2471
    %2509 = vmatprep.subr.bf16.mxu0 0
    %2510 = vmatpush1.bf16.msra.mxu0 %v2472
    %2511 = vmatprep.subr.bf16.mxu0 0
    %2512 = vmatpush1.bf16.msra.mxu0 %v2473
    %2513 = vmatprep.subr.bf16.mxu0 0
    %2514 = vmatpush1.bf16.msra.mxu0 %v2474
    %2515 = vmatprep.subr.bf16.mxu0 0
    %2516 = vmatpush1.bf16.msra.mxu0 %v2475
    %2517 = vmatprep.subr.bf16.mxu0 0
    %2518 = vmatpush1.bf16.msra.mxu0 %v2476
    %2519 = vmatprep.subr.bf16.mxu0 0
    %2520 = vmatpush1.bf16.msra.mxu0 %v2477
    %2521 = vmatprep.subr.bf16.mxu0 0
    %2522 = vmatpush1.bf16.msra.mxu0 %v2478
    %2523 = vmatprep.subr.bf16.mxu0 0
    %2524 = vmatpush1.bf16.msra.mxu0 %v2479
    %2525 = vmatprep.subr.bf16.mxu0 0
    %2526 = vmatpush1.bf16.msra.mxu0 %v2480
    %2527 = vmatprep.subr.bf16.mxu0 0
    %2528 = vmatpush1.bf16.msra.mxu0 %v2481
    %2529 = vmatprep.subr.bf16.mxu0 0
    %2530 = vmatpush1.bf16.msra.mxu0 %v2482
    %2531 = vmatprep.mubr.bf16.mxu0 %v2365
    %2532 = vmatmul.mubr.bf16.gmra.mrb[0].mxu0 %v2364
    %v2533 = vpop.f32.mrb[0].mxu0
    %v2534 = vadd.f32 %v2402, %v2533
    %v2535 = vpop.f32.mrb[0].mxu0
    %v2536 = vpop.f32.mrb[0].mxu0
    %v2537 = vadd.f32 %v2402, %v2536
    %v2538 = vpop.f32.mrb[0].mxu0
    %2539 = vdwg.mxu0
    %v2540 = vadd.f32 %v2213, %v2534
    %v2541 = vadd.f32 %v2214, %v2537
    %v2542 = vld [vmem:[%s5 + $0xc] sm:$0x1]
    %v2543 = vld [vmem:[%s5 + $0xd] sm:$0x1]
    %v2544 = vld [vmem:[%s5 + $0xe] sm:$0x1]
    %v2545 = vld [vmem:[%s5 + $0xf] sm:$0x1]
    %v2546 = vld [vmem:[%s5 + $0x10] sm:$0x1]
    %v2547 = vld [vmem:[%s5 + $0x11] sm:$0x1]
    %s2548 = scalar_lea.vmem %s6, 2
    %v2549 = vld [vmem:[%s2548] ss:$4 sm:$0x3]
    %v2550 = vsel %vm40, %v2540, 0.0
    %2551 = vadd.xlane.f32.xlu0 %v2550
    %v2552 = vpop.xlane.xlu0 %2551
    %v2553 = vsel %vm40, %v2541, 0.0
    %2554 = vadd.xlane.f32.xlu0 %v2553
    %v2555 = vpop.xlane.xlu0 %2554
    %v2556 = vmul.f32 %v2552, %v47
    %v2557 = vmul.f32 %v2555, %v47
    %v2558 = vsub.f32 %v2540, %v2556
    %v2559 = vsub.f32 %v2541, %v2557
    %v2560 = vmul.f32 %v2558, %v2558
    %v2561 = vmul.f32 %v2559, %v2559
    %v2562 = vsel %vm40, %v2560, 0.0
    %2563 = vadd.xlane.f32.xlu0 %v2562
    %v2564 = vpop.xlane.xlu0 %2563
    %v2565 = vsel %vm40, %v2561, 0.0
    %2566 = vadd.xlane.f32.xlu0 %v2565
    %v2567 = vpop.xlane.xlu0 %2566
    %v2568 = vmul.f32 %v2564, %v47
    %v2569 = vmul.f32 %v2567, %v47
    %v2570 = vadd.f32 %v2568, 1e-05
    %v2571 = vadd.f32 %v2569, 1e-05
    %v2572 = vrsqrt.pop %v2570
    %v2573 = vrsqrt.pop %v2571
    %v2574 = vmul.f32 %v2558, %v2572
    %v2575 = vmul.f32 %v2559, %v2573
    %v2576 = vlaneseq
    %v2577 = vshrl.u32 %v2576, 7
    %v2578 = vsub.s32 0, %v2577
    %v2579 = vrot.slane %v2542, %v2578
    %v2580 = vmul.f32 %v2574, %v2579
    %v2581 = vmul.f32 %v2575, %v2579
    %v2582 = vlaneseq
    %v2583 = vshrl.u32 %v2582, 7
    %v2584 = vsub.s32 0, %v2583
    %v2585 = vrot.slane %v2543, %v2584
    %v2586 = vadd.f32 %v2580, %v2585
    %v2587 = vadd.f32 %v2581, %v2585
    %v2588 = vpack.c.bf16 %v2587, %v2586
    %s2589 = scalar_lea.vmem %s1, 128
    %v2590 = vld [vmem:[%s2589] sm:$0xff]
    %v2591 = vld [vmem:[%s2589 + $0x8] sm:$0xff]
    %v2592 = vld [vmem:[%s2589 + $0x10] sm:$0xff]
    %v2593 = vld [vmem:[%s2589 + $0x18] sm:$0xff]
    %v2594 = vld [vmem:[%s2589 + $0x20] sm:$0xff]
    %v2595 = vld [vmem:[%s2589 + $0x28] sm:$0xff]
    %v2596 = vld [vmem:[%s2589 + $0x30] sm:$0xff]
    %v2597 = vld [vmem:[%s2589 + $0x38] sm:$0xff]
    %v2606 = vunpack.c.l.b16 %v2590
    %v2607 = vunpack.c.h.b16 %v2590
    %v2608 = vunpack.c.l.b16 %v2591
    %v2609 = vunpack.c.h.b16 %v2591
    %v2610 = vunpack.c.l.b16 %v2592
    %v2611 = vunpack.c.h.b16 %v2592
    %v2612 = vunpack.c.l.b16 %v2593
    %v2613 = vunpack.c.h.b16 %v2593
    %v2614 = vunpack.c.l.b16 %v2594
    %v2615 = vunpack.c.h.b16 %v2594
    %v2616 = vunpack.c.l.b16 %v2595
    %v2617 = vunpack.c.h.b16 %v2595
    %v2618 = vunpack.c.l.b16 %v2596
    %v2619 = vunpack.c.h.b16 %v2596
    %v2620 = vunpack.c.l.b16 %v2597
    %v2621 = vunpack.c.h.b16 %v2597
    %v2622 = vpack.c.b16 %v2608, %v2606
    %v2623 = vpack.c.b16 %v2609, %v2607
    %v2624 = vpack.c.b16 %v2612, %v2610
    %v2625 = vpack.c.b16 %v2613, %v2611
    %v2626 = vpack.c.b16 %v2616, %v2614
    %v2627 = vpack.c.b16 %v2617, %v2615
    %v2628 = vpack.c.b16 %v2620, %v2618
    %v2629 = vpack.c.b16 %v2621, %v2619
    %v2639 = vsel %vm40, %v2588, 0
    %2641 = vmatprep.subr.bf16.mxu0 %v2623
    %2642 = vmatpush1.bf16.msra.mxu0 %v2622
    %2643 = vmatprep.subr.bf16.mxu0 %v2625
    %2644 = vmatpush1.bf16.msra.mxu0 %v2624
    %2645 = vmatprep.subr.bf16.mxu0 %v2627
    %2646 = vmatpush1.bf16.msra.mxu0 %v2626
    %2647 = vmatprep.subr.bf16.mxu0 %v2629
    %2648 = vmatpush1.bf16.msra.mxu0 %v2628
    %2649 = vmatprep.subr.bf16.mxu0 0
    %2650 = vmatpush1.bf16.msra.mxu0 0
    %2651 = vmatprep.subr.bf16.mxu0 0
    %2652 = vmatpush1.bf16.msra.mxu0 0
    %2653 = vmatprep.subr.bf16.mxu0 0
    %2654 = vmatpush1.bf16.msra.mxu0 0
    %2655 = vmatprep.subr.bf16.mxu0 0
    %2656 = vmatpush1.bf16.msra.mxu0 0
    %2657 = vmatprep.subr.bf16.mxu0 0
    %2658 = vmatpush1.bf16.msra.mxu0 0
    %2659 = vmatprep.subr.bf16.mxu0 0
    %2660 = vmatpush1.bf16.msra.mxu0 0
    %2661 = vmatprep.subr.bf16.mxu0 0
    %2662 = vmatpush1.bf16.msra.mxu0 0
    %2663 = vmatprep.subr.bf16.mxu0 0
    %2664 = vmatpush1.bf16.msra.mxu0 0
    %2665 = vmatprep.subr.bf16.mxu0 0
    %2666 = vmatpush1.bf16.msra.mxu0 0
    %2667 = vmatprep.subr.bf16.mxu0 0
    %2668 = vmatpush1.bf16.msra.mxu0 0
    %2669 = vmatprep.subr.bf16.mxu0 0
    %2670 = vmatpush1.bf16.msra.mxu0 0
    %2671 = vmatprep.subr.bf16.mxu0 0
    %2672 = vmatpush1.bf16.msra.mxu0 0
    %2673 = vmatprep.mubr.bf16.mxu0 0
    %2674 = vmatmul.mubr.bf16.gmra.mrb[0].mxu0 %v2639
    %v2675 = vpop.f32.mrb[0].mxu0
    %v2676 = vadd.f32 0.0, %v2675
    %v2677 = vpop.f32.mrb[0].mxu0
    %v2678 = vadd.f32 0.0, %v2677
    %v2679 = vpop.f32.mrb[0].mxu0
    %v2680 = vadd.f32 0.0, %v2679
    %v2681 = vpop.f32.mrb[0].mxu0
    %v2682 = vadd.f32 0.0, %v2681
    %2683 = vdwg.mxu0
    %v2684 = vpack.c.bf16 %v2676, %v2676
    %v2685 = vpack.c.bf16 %v2680, %v2680
    %2687 = vrot.lane.b32.xlu0 %v2684, 64
    %v2688 = vpop.permute.xlu0 %2687
    %v2690 = vsel %vm180, %v2684, 0
    %v2693 = vsel %vm180, %v2688, 0
    %2695 = vmatprep.subr.bf16.mxu0 0
    %2696 = vmatpush1.bf16.xpose.msra.mxu0 %v2693
    %2697 = vmatprep.subr.bf16.mxu0 0
    %2698 = vmatpush1.bf16.xpose.msra.mxu0 0
    %2699 = vmatprep.subr.bf16.mxu0 0
    %2700 = vmatpush1.bf16.xpose.msra.mxu0 0
    %2701 = vmatprep.subr.bf16.mxu0 0
    %2702 = vmatpush1.bf16.xpose.msra.mxu0 0
    %2703 = vmatprep.subr.bf16.mxu0 0
    %2704 = vmatpush1.bf16.xpose.msra.mxu0 0
    %2705 = vmatprep.subr.bf16.mxu0 0
    %2706 = vmatpush1.bf16.xpose.msra.mxu0 0
    %2707 = vmatprep.subr.bf16.mxu0 0
    %2708 = vmatpush1.bf16.xpose.msra.mxu0 0
    %2709 = vmatprep.subr.bf16.mxu0 0
    %2710 = vmatpush1.bf16.xpose.msra.mxu0 0
    %2711 = vmatprep.subr.bf16.mxu0 0
    %2712 = vmatpush1.bf16.xpose.msra.mxu0 0
    %2713 = vmatprep.subr.bf16.mxu0 0
    %2714 = vmatpush1.bf16.xpose.msra.mxu0 0
    %2715 = vmatprep.subr.bf16.mxu0 0
    %2716 = vmatpush1.bf16.xpose.msra.mxu0 0
    %2717 = vmatprep.subr.bf16.mxu0 0
    %2718 = vmatpush1.bf16.xpose.msra.mxu0 0
    %2719 = vmatprep.subr.bf16.mxu0 0
    %2720 = vmatpush1.bf16.xpose.msra.mxu0 0
    %2721 = vmatprep.subr.bf16.mxu0 0
    %2722 = vmatpush1.bf16.xpose.msra.mxu0 0
    %2723 = vmatprep.subr.bf16.mxu0 0
    %2724 = vmatpush1.bf16.xpose.msra.mxu0 0
    %2725 = vmatprep.subr.bf16.mxu0 0
    %2726 = vmatpush1.bf16.xpose.msra.mxu0 0
    %2727 = vmatprep.mubr.bf16.mxu0 0
    %2728 = vmatmul.mubr.bf16.gmra.mrb[0].mxu0 %v2690
    %v2729 = vpop.f32.mrb[0].mxu0
    %v2730 = vadd.f32 0.0, %v2729
    %v2731 = vpop.f32.mrb[0].mxu0
    %v2732 = vpop.f32.mrb[0].mxu0
    %v2733 = vpop.f32.mrb[0].mxu0
    %2734 = vdwg.mxu0
    %2736 = vrot.lane.b32.xlu0 %v2685, 64
    %v2737 = vpop.permute.xlu0 %2736
    %v2739 = vsel %vm180, %v2685, 0
    %v2742 = vsel %vm180, %v2737, 0
    %2744 = vmatprep.subr.bf16.mxu0 0
    %2745 = vmatpush1.bf16.xpose.msra.mxu0 %v2742
    %2746 = vmatprep.subr.bf16.mxu0 0
    %2747 = vmatpush1.bf16.xpose.msra.mxu0 0
    %2748 = vmatprep.subr.bf16.mxu0 0
    %2749 = vmatpush1.bf16.xpose.msra.mxu0 0
    %2750 = vmatprep.subr.bf16.mxu0 0
    %2751 = vmatpush1.bf16.xpose.msra.mxu0 0
    %2752 = vmatprep.subr.bf16.mxu0 0
    %2753 = vmatpush1.bf16.xpose.msra.mxu0 0
    %2754 = vmatprep.subr.bf16.mxu0 0
    %2755 = vmatpush1.bf16.xpose.msra.mxu0 0
    %2756 = vmatprep.subr.bf16.mxu0 0
    %2757 = vmatpush1.bf16.xpose.msra.mxu0 0
    %2758 = vmatprep.subr.bf16.mxu0 0
    %2759 = vmatpush1.bf16.xpose.msra.mxu0 0
    %2760 = vmatprep.subr.bf16.mxu0 0
    %2761 = vmatpush1.bf16.xpose.msra.mxu0 0
    %2762 = vmatprep.subr.bf16.mxu0 0
    %2763 = vmatpush1.bf16.xpose.msra.mxu0 0
    %2764 = vmatprep.subr.bf16.mxu0 0
    %2765 = vmatpush1.bf16.xpose.msra.mxu0 0
    %2766 = vmatprep.subr.bf16.mxu0 0
    %2767 = vmatpush1.bf16.xpose.msra.mxu0 0
    %2768 = vmatprep.subr.bf16.mxu0 0
    %2769 = vmatpush1.bf16.xpose.msra.mxu0 0
    %2770 = vmatprep.subr.bf16.mxu0 0
    %2771 = vmatpush1.bf16.xpose.msra.mxu0 0
    %2772 = vmatprep.subr.bf16.mxu0 0
    %2773 = vmatpush1.bf16.xpose.msra.mxu0 0
    %2774 = vmatprep.subr.bf16.mxu0 0
    %2775 = vmatpush1.bf16.xpose.msra.mxu0 0
    %2776 = vmatprep.mubr.bf16.mxu0 0
    %2777 = vmatmul.mubr.bf16.gmra.mrb[0].mxu0 %v2739
    %v2778 = vpop.f32.mrb[0].mxu0
    %v2779 = vadd.f32 0.0, %v2778
    %v2780 = vpop.f32.mrb[0].mxu0
    %v2781 = vpop.f32.mrb[0].mxu0
    %v2782 = vpop.f32.mrb[0].mxu0
    %2783 = vdwg.mxu0
    %v2784 = vmul.f32 %v2730, 0.17677669
    %v2785 = vmul.f32 %v2779, 0.17677669
    %v2786 = vsel %vm278, %v2784, -inf
    %2787 = vmax.xlane.f32.xlu0 %v2786
    %v2788 = vpop.xlane.xlu0 %2787
    %v2789 = vsel %vm278, %v2785, -inf
    %2790 = vmax.xlane.f32.xlu0 %v2789
    %v2791 = vpop.xlane.xlu0 %2790
    %v2792 = vsub.f32 %v2784, %v2788
    %v2793 = vsub.f32 %v2785, %v2791
    %v2794 = vmul.f32 %v2792, 1.442695
    %v2795 = vpow.pop %v2794
    %v2796 = vmul.f32 %v2793, 1.442695
    %v2797 = vpow.pop %v2796
    %v2798 = vsel %vm278, %v2795, 0.0
    %2799 = vadd.xlane.f32.xlu0 %v2798
    %v2800 = vpop.xlane.xlu0 %2799
    %v2801 = vsel %vm278, %v2797, 0.0
    %2802 = vadd.xlane.f32.xlu0 %v2801
    %v2803 = vpop.xlane.xlu0 %2802
    %v2804 = vrcp.pop %v2800
    %v2805 = vrcp.pop %v2803
    %v2806 = vmul.f32 %v2795, %v2804
    %v2807 = vmul.f32 %v2797, %v2805
    %v2808 = vcombine.high %v2806, 0.0
    %v2810 = vunpack.c.l.s4 1983009808
    %v2811 = vunpack.c.0.s8 %v2810
    %v2812 = vlaneseq
    %v2813 = vshrl.u32 %v2812, 7
    %v2814 = vsub.s32 %v2811, %v2813
    %v2815 = vrot.slane %v2806, %v2814
    %v2817 = vunpack.c.l.s4 1983009808
    %v2818 = vunpack.c.0.s8 %v2817
    %v2819 = vlaneseq
    %v2820 = vshrl.u32 %v2819, 7
    %v2821 = vsub.s32 %v2818, %v2820
    %v2822 = vrot.slane %v2808, %v2821
    %v2823 = vcombine.high %v2807, 0.0
    %v2825 = vunpack.c.l.s4 1983009808
    %v2826 = vunpack.c.0.s8 %v2825
    %v2827 = vlaneseq
    %v2828 = vshrl.u32 %v2827, 7
    %v2829 = vsub.s32 %v2826, %v2828
    %v2830 = vrot.slane %v2807, %v2829
    %v2832 = vunpack.c.l.s4 1983009808
    %v2833 = vunpack.c.0.s8 %v2832
    %v2834 = vlaneseq
    %v2835 = vshrl.u32 %v2834, 7
    %v2836 = vsub.s32 %v2833, %v2835
    %v2837 = vrot.slane %v2823, %v2836
    %v2838 = vcombine.low %v2815, %v2830
    %v2839 = vcombine.high %v2815, %v2830
    %v2841 = vunpack.c.l.s4 1934713408
    %v2842 = vunpack.c.0.s8 %v2841
    %v2843 = vlaneseq
    %v2844 = vshrl.u32 %v2843, 7
    %v2845 = vsub.s32 %v2842, %v2844
    %v2846 = vrot.slane %v2838, %v2845
    %v2848 = vunpack.c.l.s4 1934713408
    %v2849 = vunpack.c.0.s8 %v2848
    %v2850 = vlaneseq
    %v2851 = vshrl.u32 %v2850, 7
    %v2852 = vsub.s32 %v2849, %v2851
    %v2853 = vrot.slane %v2839, %v2852
    %v2854 = vcombine.low %v2822, %v2837
    %v2855 = vcombine.high %v2822, %v2837
    %v2857 = vunpack.c.l.s4 1934713408
    %v2858 = vunpack.c.0.s8 %v2857
    %v2859 = vlaneseq
    %v2860 = vshrl.u32 %v2859, 7
    %v2861 = vsub.s32 %v2858, %v2860
    %v2862 = vrot.slane %v2854, %v2861
    %v2864 = vunpack.c.l.s4 1934713408
    %v2865 = vunpack.c.0.s8 %v2864
    %v2866 = vlaneseq
    %v2867 = vshrl.u32 %v2866, 7
    %v2868 = vsub.s32 %v2865, %v2867
    %v2869 = vrot.slane %v2855, %v2868
    %v2870 = vcombine.high %v2846, 0.0
    %v2871 = vcombine.high %v2853, 0.0
    %v2872 = vcombine.high %v2862, 0.0
    %v2873 = vcombine.high %v2869, 0.0
    %2875 = vrot.lane.b32.xlu0 %v2870, 8
    %v2876 = vpop.permute.xlu0 %2875
    %2879 = vrot.lane.b32.xlu0 %v2853, 16
    %v2880 = vpop.permute.xlu0 %2879
    %2883 = vrot.lane.b32.xlu0 %v2871, 24
    %v2884 = vpop.permute.xlu0 %2883
    %2887 = vrot.lane.b32.xlu0 %v2862, 32
    %v2888 = vpop.permute.xlu0 %2887
    %2891 = vrot.lane.b32.xlu0 %v2872, 40
    %v2892 = vpop.permute.xlu0 %2891
    %2895 = vrot.lane.b32.xlu0 %v2869, 48
    %v2896 = vpop.permute.xlu0 %2895
    %2899 = vrot.lane.b32.xlu0 %v2873, 56
    %v2900 = vpop.permute.xlu0 %2899
    %v2902 = vsel %vm278, %v2846, %v2876
    %v2903 = vsel %vm396, %v2902, %v2880
    %v2904 = vsel %vm398, %v2903, %v2884
    %v2905 = vsel %vm180, %v2904, %v2888
    %v2906 = vsel %vm401, %v2905, %v2892
    %v2907 = vsel %vm403, %v2906, %v2896
    %v2908 = vsel %vm405, %v2907, %v2900
    %s2909 = scalar_lea.vmem [#allocation4], 8
    %2910 = vst.msk [vmem:[%s2909] sm:$0x3] %vm407, %v2908
    %v2911 = vpack.c.bf16 %v2806, %v2806
    %v2912 = vpack.c.bf16 %v2807, %v2807
    %v2913 = vpack.c.bf16 %v2678, %v2678
    %v2914 = vpack.c.bf16 %v2682, %v2682
    %v2916 = vsel %vm278, %v2911, 0
    %v2919 = vsel %vm416, %v2913, 0
    %2921 = vmatprep.subr.bf16.mxu0 0
    %2922 = vmatpush1.bf16.msra.mxu0 %v2919
    %2923 = vmatprep.subr.bf16.mxu0 0
    %2924 = vmatpush1.bf16.msra.mxu0 0
    %2925 = vmatprep.subr.bf16.mxu0 0
    %2926 = vmatpush1.bf16.msra.mxu0 0
    %2927 = vmatprep.subr.bf16.mxu0 0
    %2928 = vmatpush1.bf16.msra.mxu0 0
    %2929 = vmatprep.subr.bf16.mxu0 0
    %2930 = vmatpush1.bf16.msra.mxu0 0
    %2931 = vmatprep.subr.bf16.mxu0 0
    %2932 = vmatpush1.bf16.msra.mxu0 0
    %2933 = vmatprep.subr.bf16.mxu0 0
    %2934 = vmatpush1.bf16.msra.mxu0 0
    %2935 = vmatprep.subr.bf16.mxu0 0
    %2936 = vmatpush1.bf16.msra.mxu0 0
    %2937 = vmatprep.subr.bf16.mxu0 0
    %2938 = vmatpush1.bf16.msra.mxu0 0
    %2939 = vmatprep.subr.bf16.mxu0 0
    %2940 = vmatpush1.bf16.msra.mxu0 0
    %2941 = vmatprep.subr.bf16.mxu0 0
    %2942 = vmatpush1.bf16.msra.mxu0 0
    %2943 = vmatprep.subr.bf16.mxu0 0
    %2944 = vmatpush1.bf16.msra.mxu0 0
    %2945 = vmatprep.subr.bf16.mxu0 0
    %2946 = vmatpush1.bf16.msra.mxu0 0
    %2947 = vmatprep.subr.bf16.mxu0 0
    %2948 = vmatpush1.bf16.msra.mxu0 0
    %2949 = vmatprep.subr.bf16.mxu0 0
    %2950 = vmatpush1.bf16.msra.mxu0 0
    %2951 = vmatprep.subr.bf16.mxu0 0
    %2952 = vmatpush1.bf16.msra.mxu0 0
    %2953 = vmatprep.mubr.bf16.mxu0 0
    %2954 = vmatmul.mubr.bf16.gmra.mrb[0].mxu0 %v2916
    %v2955 = vpop.f32.mrb[0].mxu0
    %v2956 = vadd.f32 0.0, %v2955
    %v2957 = vpop.f32.mrb[0].mxu0
    %v2958 = vpop.f32.mrb[0].mxu0
    %v2959 = vpop.f32.mrb[0].mxu0
    %2960 = vdwg.mxu0
    %v2962 = vsel %vm278, %v2912, 0
    %v2965 = vsel %vm416, %v2914, 0
    %2967 = vmatprep.subr.bf16.mxu0 0
    %2968 = vmatpush1.bf16.msra.mxu0 %v2965
    %2969 = vmatprep.subr.bf16.mxu0 0
    %2970 = vmatpush1.bf16.msra.mxu0 0
    %2971 = vmatprep.subr.bf16.mxu0 0
    %2972 = vmatpush1.bf16.msra.mxu0 0
    %2973 = vmatprep.subr.bf16.mxu0 0
    %2974 = vmatpush1.bf16.msra.mxu0 0
    %2975 = vmatprep.subr.bf16.mxu0 0
    %2976 = vmatpush1.bf16.msra.mxu0 0
    %2977 = vmatprep.subr.bf16.mxu0 0
    %2978 = vmatpush1.bf16.msra.mxu0 0
    %2979 = vmatprep.subr.bf16.mxu0 0
    %2980 = vmatpush1.bf16.msra.mxu0 0
    %2981 = vmatprep.subr.bf16.mxu0 0
    %2982 = vmatpush1.bf16.msra.mxu0 0
    %2983 = vmatprep.subr.bf16.mxu0 0
    %2984 = vmatpush1.bf16.msra.mxu0 0
    %2985 = vmatprep.subr.bf16.mxu0 0
    %2986 = vmatpush1.bf16.msra.mxu0 0
    %2987 = vmatprep.subr.bf16.mxu0 0
    %2988 = vmatpush1.bf16.msra.mxu0 0
    %2989 = vmatprep.subr.bf16.mxu0 0
    %2990 = vmatpush1.bf16.msra.mxu0 0
    %2991 = vmatprep.subr.bf16.mxu0 0
    %2992 = vmatpush1.bf16.msra.mxu0 0
    %2993 = vmatprep.subr.bf16.mxu0 0
    %2994 = vmatpush1.bf16.msra.mxu0 0
    %2995 = vmatprep.subr.bf16.mxu0 0
    %2996 = vmatpush1.bf16.msra.mxu0 0
    %2997 = vmatprep.subr.bf16.mxu0 0
    %2998 = vmatpush1.bf16.msra.mxu0 0
    %2999 = vmatprep.mubr.bf16.mxu0 0
    %3000 = vmatmul.mubr.bf16.gmra.mrb[0].mxu0 %v2962
    %v3001 = vpop.f32.mrb[0].mxu0
    %v3002 = vadd.f32 0.0, %v3001
    %v3003 = vpop.f32.mrb[0].mxu0
    %v3004 = vpop.f32.mrb[0].mxu0
    %v3005 = vpop.f32.mrb[0].mxu0
    %3006 = vdwg.mxu0
    %v3007 = vpack.c.bf16 %v3002, %v2956
    %s3008 = scalar_lea.vmem %s2, 64
    %v3009 = vld [vmem:[%s3008] sm:$0xf]
    %v3010 = vld [vmem:[%s3008 + $0x4] sm:$0xf]
    %v3011 = vld [vmem:[%s3008 + $0x8] sm:$0xf]
    %v3012 = vld [vmem:[%s3008 + $0xc] sm:$0xf]
    %v3017 = vunpack.c.l.b16 %v3009
    %v3018 = vunpack.c.l.b16 %v3010
    %v3019 = vunpack.c.l.b16 %v3011
    %v3020 = vunpack.c.l.b16 %v3012
    %v3021 = vpack.c.b16 %v3018, %v3017
    %v3022 = vpack.c.b16 %v3020, %v3019
    %v3026 = vsel %vm180, %v3007, 0
    %3028 = vmatprep.subr.bf16.mxu0 0
    %3029 = vmatpush1.bf16.msra.mxu0 %v3021
    %3030 = vmatprep.subr.bf16.mxu0 0
    %3031 = vmatpush1.bf16.msra.mxu0 %v3022
    %3032 = vmatprep.subr.bf16.mxu0 0
    %3033 = vmatpush1.bf16.msra.mxu0 0
    %3034 = vmatprep.subr.bf16.mxu0 0
    %3035 = vmatpush1.bf16.msra.mxu0 0
    %3036 = vmatprep.subr.bf16.mxu0 0
    %3037 = vmatpush1.bf16.msra.mxu0 0
    %3038 = vmatprep.subr.bf16.mxu0 0
    %3039 = vmatpush1.bf16.msra.mxu0 0
    %3040 = vmatprep.subr.bf16.mxu0 0
    %3041 = vmatpush1.bf16.msra.mxu0 0
    %3042 = vmatprep.subr.bf16.mxu0 0
    %3043 = vmatpush1.bf16.msra.mxu0 0
    %3044 = vmatprep.subr.bf16.mxu0 0
    %3045 = vmatpush1.bf16.msra.mxu0 0
    %3046 = vmatprep.subr.bf16.mxu0 0
    %3047 = vmatpush1.bf16.msra.mxu0 0
    %3048 = vmatprep.subr.bf16.mxu0 0
    %3049 = vmatpush1.bf16.msra.mxu0 0
    %3050 = vmatprep.subr.bf16.mxu0 0
    %3051 = vmatpush1.bf16.msra.mxu0 0
    %3052 = vmatprep.subr.bf16.mxu0 0
    %3053 = vmatpush1.bf16.msra.mxu0 0
    %3054 = vmatprep.subr.bf16.mxu0 0
    %3055 = vmatpush1.bf16.msra.mxu0 0
    %3056 = vmatprep.subr.bf16.mxu0 0
    %3057 = vmatpush1.bf16.msra.mxu0 0
    %3058 = vmatprep.subr.bf16.mxu0 0
    %3059 = vmatpush1.bf16.msra.mxu0 0
    %3060 = vmatprep.mubr.bf16.mxu0 0
    %3061 = vmatmul.mubr.bf16.gmra.mrb[0].mxu0 %v3026
    %v3062 = vpop.f32.mrb[0].mxu0
    %v3063 = vadd.f32 0.0, %v3062
    %v3064 = vpop.f32.mrb[0].mxu0
    %v3065 = vpop.f32.mrb[0].mxu0
    %v3066 = vadd.f32 0.0, %v3065
    %v3067 = vpop.f32.mrb[0].mxu0
    %3068 = vdwg.mxu0
    %v3069 = vlaneseq
    %v3070 = vshrl.u32 %v3069, 7
    %v3071 = vsub.s32 0, %v3070
    %v3072 = vrot.slane %v2546, %v3071
    %v3073 = vadd.f32 %v3072, %v3063
    %v3074 = vadd.f32 %v3072, %v3066
    %3075 = vrot.lane.b32.xlu0 %v2684, 96
    %v3076 = vpop.permute.xlu0 %3075
    %3077 = vrot.lane.b32.xlu0 %v2684, 32
    %v3078 = vpop.permute.xlu0 %3077
    %v3080 = vsel %vm180, %v3076, 0
    %v3083 = vsel %vm180, %v3078, 0
    %3085 = vmatprep.subr.bf16.mxu0 0
    %3086 = vmatpush1.bf16.xpose.msra.mxu0 %v3083
    %3087 = vmatprep.subr.bf16.mxu0 0
    %3088 = vmatpush1.bf16.xpose.msra.mxu0 0
    %3089 = vmatprep.subr.bf16.mxu0 0
    %3090 = vmatpush1.bf16.xpose.msra.mxu0 0
    %3091 = vmatprep.subr.bf16.mxu0 0
    %3092 = vmatpush1.bf16.xpose.msra.mxu0 0
    %3093 = vmatprep.subr.bf16.mxu0 0
    %3094 = vmatpush1.bf16.xpose.msra.mxu0 0
    %3095 = vmatprep.subr.bf16.mxu0 0
    %3096 = vmatpush1.bf16.xpose.msra.mxu0 0
    %3097 = vmatprep.subr.bf16.mxu0 0
    %3098 = vmatpush1.bf16.xpose.msra.mxu0 0
    %3099 = vmatprep.subr.bf16.mxu0 0
    %3100 = vmatpush1.bf16.xpose.msra.mxu0 0
    %3101 = vmatprep.subr.bf16.mxu0 0
    %3102 = vmatpush1.bf16.xpose.msra.mxu0 0
    %3103 = vmatprep.subr.bf16.mxu0 0
    %3104 = vmatpush1.bf16.xpose.msra.mxu0 0
    %3105 = vmatprep.subr.bf16.mxu0 0
    %3106 = vmatpush1.bf16.xpose.msra.mxu0 0
    %3107 = vmatprep.subr.bf16.mxu0 0
    %3108 = vmatpush1.bf16.xpose.msra.mxu0 0
    %3109 = vmatprep.subr.bf16.mxu0 0
    %3110 = vmatpush1.bf16.xpose.msra.mxu0 0
    %3111 = vmatprep.subr.bf16.mxu0 0
    %3112 = vmatpush1.bf16.xpose.msra.mxu0 0
    %3113 = vmatprep.subr.bf16.mxu0 0
    %3114 = vmatpush1.bf16.xpose.msra.mxu0 0
    %3115 = vmatprep.subr.bf16.mxu0 0
    %3116 = vmatpush1.bf16.xpose.msra.mxu0 0
    %3117 = vmatprep.mubr.bf16.mxu0 0
    %3118 = vmatmul.mubr.bf16.gmra.mrb[0].mxu0 %v3080
    %v3119 = vpop.f32.mrb[0].mxu0
    %v3120 = vadd.f32 0.0, %v3119
    %v3121 = vpop.f32.mrb[0].mxu0
    %v3122 = vpop.f32.mrb[0].mxu0
    %v3123 = vpop.f32.mrb[0].mxu0
    %3124 = vdwg.mxu0
    %3125 = vrot.lane.b32.xlu0 %v2685, 96
    %v3126 = vpop.permute.xlu0 %3125
    %3127 = vrot.lane.b32.xlu0 %v2685, 32
    %v3128 = vpop.permute.xlu0 %3127
    %v3130 = vsel %vm180, %v3126, 0
    %v3133 = vsel %vm180, %v3128, 0
    %3135 = vmatprep.subr.bf16.mxu0 0
    %3136 = vmatpush1.bf16.xpose.msra.mxu0 %v3133
    %3137 = vmatprep.subr.bf16.mxu0 0
    %3138 = vmatpush1.bf16.xpose.msra.mxu0 0
    %3139 = vmatprep.subr.bf16.mxu0 0
    %3140 = vmatpush1.bf16.xpose.msra.mxu0 0
    %3141 = vmatprep.subr.bf16.mxu0 0
    %3142 = vmatpush1.bf16.xpose.msra.mxu0 0
    %3143 = vmatprep.subr.bf16.mxu0 0
    %3144 = vmatpush1.bf16.xpose.msra.mxu0 0
    %3145 = vmatprep.subr.bf16.mxu0 0
    %3146 = vmatpush1.bf16.xpose.msra.mxu0 0
    %3147 = vmatprep.subr.bf16.mxu0 0
    %3148 = vmatpush1.bf16.xpose.msra.mxu0 0
    %3149 = vmatprep.subr.bf16.mxu0 0
    %3150 = vmatpush1.bf16.xpose.msra.mxu0 0
    %3151 = vmatprep.subr.bf16.mxu0 0
    %3152 = vmatpush1.bf16.xpose.msra.mxu0 0
    %3153 = vmatprep.subr.bf16.mxu0 0
    %3154 = vmatpush1.bf16.xpose.msra.mxu0 0
    %3155 = vmatprep.subr.bf16.mxu0 0
    %3156 = vmatpush1.bf16.xpose.msra.mxu0 0
    %3157 = vmatprep.subr.bf16.mxu0 0
    %3158 = vmatpush1.bf16.xpose.msra.mxu0 0
    %3159 = vmatprep.subr.bf16.mxu0 0
    %3160 = vmatpush1.bf16.xpose.msra.mxu0 0
    %3161 = vmatprep.subr.bf16.mxu0 0
    %3162 = vmatpush1.bf16.xpose.msra.mxu0 0
    %3163 = vmatprep.subr.bf16.mxu0 0
    %3164 = vmatpush1.bf16.xpose.msra.mxu0 0
    %3165 = vmatprep.subr.bf16.mxu0 0
    %3166 = vmatpush1.bf16.xpose.msra.mxu0 0
    %3167 = vmatprep.mubr.bf16.mxu0 0
    %3168 = vmatmul.mubr.bf16.gmra.mrb[0].mxu0 %v3130
    %v3169 = vpop.f32.mrb[0].mxu0
    %v3170 = vadd.f32 0.0, %v3169
    %v3171 = vpop.f32.mrb[0].mxu0
    %v3172 = vpop.f32.mrb[0].mxu0
    %v3173 = vpop.f32.mrb[0].mxu0
    %3174 = vdwg.mxu0
    %v3175 = vmul.f32 %v3120, 0.17677669
    %v3176 = vmul.f32 %v3170, 0.17677669
    %v3177 = vsel %vm278, %v3175, -inf
    %3178 = vmax.xlane.f32.xlu0 %v3177
    %v3179 = vpop.xlane.xlu0 %3178
    %v3180 = vsel %vm278, %v3176, -inf
    %3181 = vmax.xlane.f32.xlu0 %v3180
    %v3182 = vpop.xlane.xlu0 %3181
    %v3183 = vsub.f32 %v3175, %v3179
    %v3184 = vsub.f32 %v3176, %v3182
    %v3185 = vmul.f32 %v3183, 1.442695
    %v3186 = vpow.pop %v3185
    %v3187 = vmul.f32 %v3184, 1.442695
    %v3188 = vpow.pop %v3187
    %v3189 = vsel %vm278, %v3186, 0.0
    %3190 = vadd.xlane.f32.xlu0 %v3189
    %v3191 = vpop.xlane.xlu0 %3190
    %v3192 = vsel %vm278, %v3188, 0.0
    %3193 = vadd.xlane.f32.xlu0 %v3192
    %v3194 = vpop.xlane.xlu0 %3193
    %v3195 = vrcp.pop %v3191
    %v3196 = vrcp.pop %v3194
    %v3197 = vmul.f32 %v3186, %v3195
    %v3198 = vmul.f32 %v3188, %v3196
    %v3199 = vcombine.high %v3197, 0.0
    %v3201 = vunpack.c.l.s4 1983009808
    %v3202 = vunpack.c.0.s8 %v3201
    %v3203 = vlaneseq
    %v3204 = vshrl.u32 %v3203, 7
    %v3205 = vsub.s32 %v3202, %v3204
    %v3206 = vrot.slane %v3197, %v3205
    %v3208 = vunpack.c.l.s4 1983009808
    %v3209 = vunpack.c.0.s8 %v3208
    %v3210 = vlaneseq
    %v3211 = vshrl.u32 %v3210, 7
    %v3212 = vsub.s32 %v3209, %v3211
    %v3213 = vrot.slane %v3199, %v3212
    %v3214 = vcombine.high %v3198, 0.0
    %v3216 = vunpack.c.l.s4 1983009808
    %v3217 = vunpack.c.0.s8 %v3216
    %v3218 = vlaneseq
    %v3219 = vshrl.u32 %v3218, 7
    %v3220 = vsub.s32 %v3217, %v3219
    %v3221 = vrot.slane %v3198, %v3220
    %v3223 = vunpack.c.l.s4 1983009808
    %v3224 = vunpack.c.0.s8 %v3223
    %v3225 = vlaneseq
    %v3226 = vshrl.u32 %v3225, 7
    %v3227 = vsub.s32 %v3224, %v3226
    %v3228 = vrot.slane %v3214, %v3227
    %v3229 = vcombine.low %v3206, %v3221
    %v3230 = vcombine.high %v3206, %v3221
    %v3232 = vunpack.c.l.s4 1934713408
    %v3233 = vunpack.c.0.s8 %v3232
    %v3234 = vlaneseq
    %v3235 = vshrl.u32 %v3234, 7
    %v3236 = vsub.s32 %v3233, %v3235
    %v3237 = vrot.slane %v3229, %v3236
    %v3239 = vunpack.c.l.s4 1934713408
    %v3240 = vunpack.c.0.s8 %v3239
    %v3241 = vlaneseq
    %v3242 = vshrl.u32 %v3241, 7
    %v3243 = vsub.s32 %v3240, %v3242
    %v3244 = vrot.slane %v3230, %v3243
    %v3245 = vcombine.low %v3213, %v3228
    %v3246 = vcombine.high %v3213, %v3228
    %v3248 = vunpack.c.l.s4 1934713408
    %v3249 = vunpack.c.0.s8 %v3248
    %v3250 = vlaneseq
    %v3251 = vshrl.u32 %v3250, 7
    %v3252 = vsub.s32 %v3249, %v3251
    %v3253 = vrot.slane %v3245, %v3252
    %v3255 = vunpack.c.l.s4 1934713408
    %v3256 = vunpack.c.0.s8 %v3255
    %v3257 = vlaneseq
    %v3258 = vshrl.u32 %v3257, 7
    %v3259 = vsub.s32 %v3256, %v3258
    %v3260 = vrot.slane %v3246, %v3259
    %v3261 = vcombine.high %v3237, 0.0
    %v3262 = vcombine.high %v3244, 0.0
    %v3263 = vcombine.high %v3253, 0.0
    %v3264 = vcombine.high %v3260, 0.0
    %3266 = vrot.lane.b32.xlu0 %v3261, 8
    %v3267 = vpop.permute.xlu0 %3266
    %3270 = vrot.lane.b32.xlu0 %v3244, 16
    %v3271 = vpop.permute.xlu0 %3270
    %3274 = vrot.lane.b32.xlu0 %v3262, 24
    %v3275 = vpop.permute.xlu0 %3274
    %3278 = vrot.lane.b32.xlu0 %v3253, 32
    %v3279 = vpop.permute.xlu0 %3278
    %3282 = vrot.lane.b32.xlu0 %v3263, 40
    %v3283 = vpop.permute.xlu0 %3282
    %3286 = vrot.lane.b32.xlu0 %v3260, 48
    %v3287 = vpop.permute.xlu0 %3286
    %3290 = vrot.lane.b32.xlu0 %v3264, 56
    %v3291 = vpop.permute.xlu0 %3290
    %v3293 = vsel %vm278, %v3237, %v3267
    %v3294 = vsel %vm396, %v3293, %v3271
    %v3295 = vsel %vm398, %v3294, %v3275
    %v3296 = vsel %vm180, %v3295, %v3279
    %v3297 = vsel %vm401, %v3296, %v3283
    %v3298 = vsel %vm403, %v3297, %v3287
    %v3299 = vsel %vm405, %v3298, %v3291
    %s3300 = scalar_lea.vmem [#allocation4], 10
    %3301 = vst.msk [vmem:[%s3300] sm:$0x3] %vm407, %v3299
    %v3302 = vpack.c.bf16 %v3197, %v3197
    %v3303 = vpack.c.bf16 %v3198, %v3198
    %3305 = vrot.lane.b32.xlu0 %v2913, 96
    %v3306 = vpop.permute.xlu0 %3305
    %v3308 = vsel %vm278, %v3302, 0
    %v3311 = vsel %vm416, %v3306, 0
    %3313 = vmatprep.subr.bf16.mxu0 0
    %3314 = vmatpush1.bf16.msra.mxu0 %v3311
    %3315 = vmatprep.subr.bf16.mxu0 0
    %3316 = vmatpush1.bf16.msra.mxu0 0
    %3317 = vmatprep.subr.bf16.mxu0 0
    %3318 = vmatpush1.bf16.msra.mxu0 0
    %3319 = vmatprep.subr.bf16.mxu0 0
    %3320 = vmatpush1.bf16.msra.mxu0 0
    %3321 = vmatprep.subr.bf16.mxu0 0
    %3322 = vmatpush1.bf16.msra.mxu0 0
    %3323 = vmatprep.subr.bf16.mxu0 0
    %3324 = vmatpush1.bf16.msra.mxu0 0
    %3325 = vmatprep.subr.bf16.mxu0 0
    %3326 = vmatpush1.bf16.msra.mxu0 0
    %3327 = vmatprep.subr.bf16.mxu0 0
    %3328 = vmatpush1.bf16.msra.mxu0 0
    %3329 = vmatprep.subr.bf16.mxu0 0
    %3330 = vmatpush1.bf16.msra.mxu0 0
    %3331 = vmatprep.subr.bf16.mxu0 0
    %3332 = vmatpush1.bf16.msra.mxu0 0
    %3333 = vmatprep.subr.bf16.mxu0 0
    %3334 = vmatpush1.bf16.msra.mxu0 0
    %3335 = vmatprep.subr.bf16.mxu0 0
    %3336 = vmatpush1.bf16.msra.mxu0 0
    %3337 = vmatprep.subr.bf16.mxu0 0
    %3338 = vmatpush1.bf16.msra.mxu0 0
    %3339 = vmatprep.subr.bf16.mxu0 0
    %3340 = vmatpush1.bf16.msra.mxu0 0
    %3341 = vmatprep.subr.bf16.mxu0 0
    %3342 = vmatpush1.bf16.msra.mxu0 0
    %3343 = vmatprep.subr.bf16.mxu0 0
    %3344 = vmatpush1.bf16.msra.mxu0 0
    %3345 = vmatprep.mubr.bf16.mxu0 0
    %3346 = vmatmul.mubr.bf16.gmra.mrb[0].mxu0 %v3308
    %v3347 = vpop.f32.mrb[0].mxu0
    %v3348 = vadd.f32 0.0, %v3347
    %v3349 = vpop.f32.mrb[0].mxu0
    %v3350 = vpop.f32.mrb[0].mxu0
    %v3351 = vpop.f32.mrb[0].mxu0
    %3352 = vdwg.mxu0
    %3354 = vrot.lane.b32.xlu0 %v2914, 96
    %v3355 = vpop.permute.xlu0 %3354
    %v3357 = vsel %vm278, %v3303, 0
    %v3360 = vsel %vm416, %v3355, 0
    %3362 = vmatprep.subr.bf16.mxu0 0
    %3363 = vmatpush1.bf16.msra.mxu0 %v3360
    %3364 = vmatprep.subr.bf16.mxu0 0
    %3365 = vmatpush1.bf16.msra.mxu0 0
    %3366 = vmatprep.subr.bf16.mxu0 0
    %3367 = vmatpush1.bf16.msra.mxu0 0
    %3368 = vmatprep.subr.bf16.mxu0 0
    %3369 = vmatpush1.bf16.msra.mxu0 0
    %3370 = vmatprep.subr.bf16.mxu0 0
    %3371 = vmatpush1.bf16.msra.mxu0 0
    %3372 = vmatprep.subr.bf16.mxu0 0
    %3373 = vmatpush1.bf16.msra.mxu0 0
    %3374 = vmatprep.subr.bf16.mxu0 0
    %3375 = vmatpush1.bf16.msra.mxu0 0
    %3376 = vmatprep.subr.bf16.mxu0 0
    %3377 = vmatpush1.bf16.msra.mxu0 0
    %3378 = vmatprep.subr.bf16.mxu0 0
    %3379 = vmatpush1.bf16.msra.mxu0 0
    %3380 = vmatprep.subr.bf16.mxu0 0
    %3381 = vmatpush1.bf16.msra.mxu0 0
    %3382 = vmatprep.subr.bf16.mxu0 0
    %3383 = vmatpush1.bf16.msra.mxu0 0
    %3384 = vmatprep.subr.bf16.mxu0 0
    %3385 = vmatpush1.bf16.msra.mxu0 0
    %3386 = vmatprep.subr.bf16.mxu0 0
    %3387 = vmatpush1.bf16.msra.mxu0 0
    %3388 = vmatprep.subr.bf16.mxu0 0
    %3389 = vmatpush1.bf16.msra.mxu0 0
    %3390 = vmatprep.subr.bf16.mxu0 0
    %3391 = vmatpush1.bf16.msra.mxu0 0
    %3392 = vmatprep.subr.bf16.mxu0 0
    %3393 = vmatpush1.bf16.msra.mxu0 0
    %3394 = vmatprep.mubr.bf16.mxu0 0
    %3395 = vmatmul.mubr.bf16.gmra.mrb[0].mxu0 %v3357
    %v3396 = vpop.f32.mrb[0].mxu0
    %v3397 = vadd.f32 0.0, %v3396
    %v3398 = vpop.f32.mrb[0].mxu0
    %v3399 = vpop.f32.mrb[0].mxu0
    %v3400 = vpop.f32.mrb[0].mxu0
    %3401 = vdwg.mxu0
    %v3402 = vpack.c.bf16 %v3397, %v3348
    %v3403 = vld [vmem:[%s3008 + $0x10] sm:$0xf]
    %v3404 = vld [vmem:[%s3008 + $0x14] sm:$0xf]
    %v3405 = vld [vmem:[%s3008 + $0x18] sm:$0xf]
    %v3406 = vld [vmem:[%s3008 + $0x1c] sm:$0xf]
    %v3411 = vunpack.c.l.b16 %v3403
    %v3412 = vunpack.c.l.b16 %v3404
    %v3413 = vunpack.c.l.b16 %v3405
    %v3414 = vunpack.c.l.b16 %v3406
    %v3415 = vpack.c.b16 %v3412, %v3411
    %v3416 = vpack.c.b16 %v3414, %v3413
    %v3420 = vsel %vm180, %v3402, 0
    %3422 = vmatprep.subr.bf16.mxu0 0
    %3423 = vmatpush1.bf16.msra.mxu0 %v3415
    %3424 = vmatprep.subr.bf16.mxu0 0
    %3425 = vmatpush1.bf16.msra.mxu0 %v3416
    %3426 = vmatprep.subr.bf16.mxu0 0
    %3427 = vmatpush1.bf16.msra.mxu0 0
    %3428 = vmatprep.subr.bf16.mxu0 0
    %3429 = vmatpush1.bf16.msra.mxu0 0
    %3430 = vmatprep.subr.bf16.mxu0 0
    %3431 = vmatpush1.bf16.msra.mxu0 0
    %3432 = vmatprep.subr.bf16.mxu0 0
    %3433 = vmatpush1.bf16.msra.mxu0 0
    %3434 = vmatprep.subr.bf16.mxu0 0
    %3435 = vmatpush1.bf16.msra.mxu0 0
    %3436 = vmatprep.subr.bf16.mxu0 0
    %3437 = vmatpush1.bf16.msra.mxu0 0
    %3438 = vmatprep.subr.bf16.mxu0 0
    %3439 = vmatpush1.bf16.msra.mxu0 0
    %3440 = vmatprep.subr.bf16.mxu0 0
    %3441 = vmatpush1.bf16.msra.mxu0 0
    %3442 = vmatprep.subr.bf16.mxu0 0
    %3443 = vmatpush1.bf16.msra.mxu0 0
    %3444 = vmatprep.subr.bf16.mxu0 0
    %3445 = vmatpush1.bf16.msra.mxu0 0
    %3446 = vmatprep.subr.bf16.mxu0 0
    %3447 = vmatpush1.bf16.msra.mxu0 0
    %3448 = vmatprep.subr.bf16.mxu0 0
    %3449 = vmatpush1.bf16.msra.mxu0 0
    %3450 = vmatprep.subr.bf16.mxu0 0
    %3451 = vmatpush1.bf16.msra.mxu0 0
    %3452 = vmatprep.subr.bf16.mxu0 0
    %3453 = vmatpush1.bf16.msra.mxu0 0
    %3454 = vmatprep.mubr.bf16.mxu0 0
    %3455 = vmatmul.mubr.bf16.gmra.mrb[0].mxu0 %v3420
    %v3456 = vpop.f32.mrb[0].mxu0
    %v3457 = vadd.f32 0.0, %v3456
    %v3458 = vpop.f32.mrb[0].mxu0
    %v3459 = vpop.f32.mrb[0].mxu0
    %v3460 = vadd.f32 0.0, %v3459
    %v3461 = vpop.f32.mrb[0].mxu0
    %3462 = vdwg.mxu0
    %v3463 = vadd.f32 %v3073, %v3457
    %v3464 = vadd.f32 %v3074, %v3460
    %v3465 = vadd.f32 %v2540, %v3463
    %v3466 = vadd.f32 %v2541, %v3464
    %v3467 = vsel %vm40, %v3465, 0.0
    %3468 = vadd.xlane.f32.xlu0 %v3467
    %v3469 = vpop.xlane.xlu0 %3468
    %v3470 = vsel %vm40, %v3466, 0.0
    %3471 = vadd.xlane.f32.xlu0 %v3470
    %v3472 = vpop.xlane.xlu0 %3471
    %v3473 = vmul.f32 %v3469, %v47
    %v3474 = vmul.f32 %v3472, %v47
    %v3475 = vsub.f32 %v3465, %v3473
    %v3476 = vsub.f32 %v3466, %v3474
    %v3477 = vmul.f32 %v3475, %v3475
    %v3478 = vmul.f32 %v3476, %v3476
    %v3479 = vsel %vm40, %v3477, 0.0
    %3480 = vadd.xlane.f32.xlu0 %v3479
    %v3481 = vpop.xlane.xlu0 %3480
    %v3482 = vsel %vm40, %v3478, 0.0
    %3483 = vadd.xlane.f32.xlu0 %v3482
    %v3484 = vpop.xlane.xlu0 %3483
    %v3485 = vmul.f32 %v3481, %v47
    %v3486 = vmul.f32 %v3484, %v47
    %v3487 = vadd.f32 %v3485, 1e-05
    %v3488 = vadd.f32 %v3486, 1e-05
    %v3489 = vrsqrt.pop %v3487
    %v3490 = vrsqrt.pop %v3488
    %v3491 = vmul.f32 %v3475, %v3489
    %v3492 = vmul.f32 %v3476, %v3490
    %v3493 = vlaneseq
    %v3494 = vshrl.u32 %v3493, 7
    %v3495 = vsub.s32 0, %v3494
    %v3496 = vrot.slane %v2544, %v3495
    %v3497 = vmul.f32 %v3491, %v3496
    %v3498 = vmul.f32 %v3492, %v3496
    %v3499 = vlaneseq
    %v3500 = vshrl.u32 %v3499, 7
    %v3501 = vsub.s32 0, %v3500
    %v3502 = vrot.slane %v2545, %v3501
    %v3503 = vadd.f32 %v3497, %v3502
    %v3504 = vadd.f32 %v3498, %v3502
    %v3505 = vpack.c.bf16 %v3504, %v3503
    %s3506 = scalar_lea.vmem %s3, 128
    %v3507 = vld [vmem:[%s3506] sm:$0xff]
    %v3508 = vld [vmem:[%s3506 + $0x8] sm:$0xff]
    %v3509 = vld [vmem:[%s3506 + $0x10] sm:$0xff]
    %v3510 = vld [vmem:[%s3506 + $0x18] sm:$0xff]
    %v3511 = vld [vmem:[%s3506 + $0x20] sm:$0xff]
    %v3512 = vld [vmem:[%s3506 + $0x28] sm:$0xff]
    %v3513 = vld [vmem:[%s3506 + $0x30] sm:$0xff]
    %v3514 = vld [vmem:[%s3506 + $0x38] sm:$0xff]
    %v3516 = vlaneseq
    %v3517 = vshrl.u32 %v3516, 7
    %v3518 = vsub.s32 0, %v3517
    %v3519 = vrot.slane %v2549, %v3518
    %v3520 = vlaneseq
    %v3521 = vshrl.u32 %v3520, 7
    %v3522 = vsub.s32 1, %v3521
    %v3523 = vrot.slane %v2549, %v3522
    %v3534 = vunpack.c.l.b16 %v3507
    %v3535 = vunpack.c.h.b16 %v3507
    %v3536 = vunpack.c.l.b16 %v3508
    %v3537 = vunpack.c.h.b16 %v3508
    %v3538 = vunpack.c.l.b16 %v3509
    %v3539 = vunpack.c.h.b16 %v3509
    %v3540 = vunpack.c.l.b16 %v3510
    %v3541 = vunpack.c.h.b16 %v3510
    %v3542 = vunpack.c.l.b16 %v3511
    %v3543 = vunpack.c.h.b16 %v3511
    %v3544 = vunpack.c.l.b16 %v3512
    %v3545 = vunpack.c.h.b16 %v3512
    %v3546 = vunpack.c.l.b16 %v3513
    %v3547 = vunpack.c.h.b16 %v3513
    %v3548 = vunpack.c.l.b16 %v3514
    %v3549 = vunpack.c.h.b16 %v3514
    %v3550 = vpack.c.b16 %v3536, %v3534
    %v3551 = vpack.c.b16 %v3537, %v3535
    %v3552 = vpack.c.b16 %v3540, %v3538
    %v3553 = vpack.c.b16 %v3541, %v3539
    %v3554 = vpack.c.b16 %v3544, %v3542
    %v3555 = vpack.c.b16 %v3545, %v3543
    %v3556 = vpack.c.b16 %v3548, %v3546
    %v3557 = vpack.c.b16 %v3549, %v3547
    %v3567 = vsel %vm40, %v3505, 0
    %3569 = vmatprep.subr.bf16.mxu0 %v3551
    %3570 = vmatpush1.bf16.msra.mxu0 %v3550
    %3571 = vmatprep.subr.bf16.mxu0 %v3553
    %3572 = vmatpush1.bf16.msra.mxu0 %v3552
    %3573 = vmatprep.subr.bf16.mxu0 %v3555
    %3574 = vmatpush1.bf16.msra.mxu0 %v3554
    %3575 = vmatprep.subr.bf16.mxu0 %v3557
    %3576 = vmatpush1.bf16.msra.mxu0 %v3556
    %3577 = vmatprep.subr.bf16.mxu0 0
    %3578 = vmatpush1.bf16.msra.mxu0 0
    %3579 = vmatprep.subr.bf16.mxu0 0
    %3580 = vmatpush1.bf16.msra.mxu0 0
    %3581 = vmatprep.subr.bf16.mxu0 0
    %3582 = vmatpush1.bf16.msra.mxu0 0
    %3583 = vmatprep.subr.bf16.mxu0 0
    %3584 = vmatpush1.bf16.msra.mxu0 0
    %3585 = vmatprep.subr.bf16.mxu0 0
    %3586 = vmatpush1.bf16.msra.mxu0 0
    %3587 = vmatprep.subr.bf16.mxu0 0
    %3588 = vmatpush1.bf16.msra.mxu0 0
    %3589 = vmatprep.subr.bf16.mxu0 0
    %3590 = vmatpush1.bf16.msra.mxu0 0
    %3591 = vmatprep.subr.bf16.mxu0 0
    %3592 = vmatpush1.bf16.msra.mxu0 0
    %3593 = vmatprep.subr.bf16.mxu0 0
    %3594 = vmatpush1.bf16.msra.mxu0 0
    %3595 = vmatprep.subr.bf16.mxu0 0
    %3596 = vmatpush1.bf16.msra.mxu0 0
    %3597 = vmatprep.subr.bf16.mxu0 0
    %3598 = vmatpush1.bf16.msra.mxu0 0
    %3599 = vmatprep.subr.bf16.mxu0 0
    %3600 = vmatpush1.bf16.msra.mxu0 0
    %3601 = vmatprep.mubr.bf16.mxu0 0
    %3602 = vmatmul.mubr.bf16.gmra.mrb[0].mxu0 %v3567
    %v3603 = vpop.f32.mrb[0].mxu0
    %v3604 = vadd.f32 %v3519, %v3603
    %v3605 = vpop.f32.mrb[0].mxu0
    %v3606 = vadd.f32 %v3523, %v3605
    %v3607 = vpop.f32.mrb[0].mxu0
    %v3608 = vadd.f32 %v3519, %v3607
    %v3609 = vpop.f32.mrb[0].mxu0
    %v3610 = vadd.f32 %v3523, %v3609
    %3611 = vdwg.mxu0
    %v3612 = vmax.f32 %v3604, 0.0
    %v3613 = vmax.f32 %v3606, 0.0
    %v3614 = vmax.f32 %v3608, 0.0
    %v3615 = vmax.f32 %v3610, 0.0
    %v3616 = vpack.c.bf16 %v3614, %v3612
    %v3617 = vpack.c.bf16 %v3615, %v3613
    %s3618 = scalar_lea.vmem %s4, 256
    %v3619 = vld [vmem:[%s3618] sm:$0xf]
    %v3620 = vld [vmem:[%s3618 + $0x4] sm:$0xf]
    %v3621 = vld [vmem:[%s3618 + $0x8] sm:$0xf]
    %v3622 = vld [vmem:[%s3618 + $0xc] sm:$0xf]
    %v3623 = vld [vmem:[%s3618 + $0x10] sm:$0xf]
    %v3624 = vld [vmem:[%s3618 + $0x14] sm:$0xf]
    %v3625 = vld [vmem:[%s3618 + $0x18] sm:$0xf]
    %v3626 = vld [vmem:[%s3618 + $0x1c] sm:$0xf]
    %v3627 = vld [vmem:[%s3618 + $0x20] sm:$0xf]
    %v3628 = vld [vmem:[%s3618 + $0x24] sm:$0xf]
    %v3629 = vld [vmem:[%s3618 + $0x28] sm:$0xf]
    %v3630 = vld [vmem:[%s3618 + $0x2c] sm:$0xf]
    %v3631 = vld [vmem:[%s3618 + $0x30] sm:$0xf]
    %v3632 = vld [vmem:[%s3618 + $0x34] sm:$0xf]
    %v3633 = vld [vmem:[%s3618 + $0x38] sm:$0xf]
    %v3634 = vld [vmem:[%s3618 + $0x3c] sm:$0xf]
    %v3635 = vld [vmem:[%s3618 + $0x40] sm:$0xf]
    %v3636 = vld [vmem:[%s3618 + $0x44] sm:$0xf]
    %v3637 = vld [vmem:[%s3618 + $0x48] sm:$0xf]
    %v3638 = vld [vmem:[%s3618 + $0x4c] sm:$0xf]
    %v3639 = vld [vmem:[%s3618 + $0x50] sm:$0xf]
    %v3640 = vld [vmem:[%s3618 + $0x54] sm:$0xf]
    %v3641 = vld [vmem:[%s3618 + $0x58] sm:$0xf]
    %v3642 = vld [vmem:[%s3618 + $0x5c] sm:$0xf]
    %v3643 = vld [vmem:[%s3618 + $0x60] sm:$0xf]
    %v3644 = vld [vmem:[%s3618 + $0x64] sm:$0xf]
    %v3645 = vld [vmem:[%s3618 + $0x68] sm:$0xf]
    %v3646 = vld [vmem:[%s3618 + $0x6c] sm:$0xf]
    %v3647 = vld [vmem:[%s3618 + $0x70] sm:$0xf]
    %v3648 = vld [vmem:[%s3618 + $0x74] sm:$0xf]
    %v3649 = vld [vmem:[%s3618 + $0x78] sm:$0xf]
    %v3650 = vld [vmem:[%s3618 + $0x7c] sm:$0xf]
    %v3651 = vlaneseq
    %v3652 = vshrl.u32 %v3651, 7
    %v3653 = vsub.s32 0, %v3652
    %v3654 = vrot.slane %v2547, %v3653
    %v3687 = vunpack.c.l.b16 %v3619
    %v3688 = vunpack.c.l.b16 %v3620
    %v3689 = vunpack.c.l.b16 %v3621
    %v3690 = vunpack.c.l.b16 %v3622
    %v3691 = vunpack.c.l.b16 %v3623
    %v3692 = vunpack.c.l.b16 %v3624
    %v3693 = vunpack.c.l.b16 %v3625
    %v3694 = vunpack.c.l.b16 %v3626
    %v3695 = vunpack.c.l.b16 %v3627
    %v3696 = vunpack.c.l.b16 %v3628
    %v3697 = vunpack.c.l.b16 %v3629
    %v3698 = vunpack.c.l.b16 %v3630
    %v3699 = vunpack.c.l.b16 %v3631
    %v3700 = vunpack.c.l.b16 %v3632
    %v3701 = vunpack.c.l.b16 %v3633
    %v3702 = vunpack.c.l.b16 %v3634
    %v3703 = vunpack.c.l.b16 %v3635
    %v3704 = vunpack.c.l.b16 %v3636
    %v3705 = vunpack.c.l.b16 %v3637
    %v3706 = vunpack.c.l.b16 %v3638
    %v3707 = vunpack.c.l.b16 %v3639
    %v3708 = vunpack.c.l.b16 %v3640
    %v3709 = vunpack.c.l.b16 %v3641
    %v3710 = vunpack.c.l.b16 %v3642
    %v3711 = vunpack.c.l.b16 %v3643
    %v3712 = vunpack.c.l.b16 %v3644
    %v3713 = vunpack.c.l.b16 %v3645
    %v3714 = vunpack.c.l.b16 %v3646
    %v3715 = vunpack.c.l.b16 %v3647
    %v3716 = vunpack.c.l.b16 %v3648
    %v3717 = vunpack.c.l.b16 %v3649
    %v3718 = vunpack.c.l.b16 %v3650
    %v3719 = vpack.c.b16 %v3688, %v3687
    %v3720 = vpack.c.b16 %v3690, %v3689
    %v3721 = vpack.c.b16 %v3692, %v3691
    %v3722 = vpack.c.b16 %v3694, %v3693
    %v3723 = vpack.c.b16 %v3696, %v3695
    %v3724 = vpack.c.b16 %v3698, %v3697
    %v3725 = vpack.c.b16 %v3700, %v3699
    %v3726 = vpack.c.b16 %v3702, %v3701
    %v3727 = vpack.c.b16 %v3704, %v3703
    %v3728 = vpack.c.b16 %v3706, %v3705
    %v3729 = vpack.c.b16 %v3708, %v3707
    %v3730 = vpack.c.b16 %v3710, %v3709
    %v3731 = vpack.c.b16 %v3712, %v3711
    %v3732 = vpack.c.b16 %v3714, %v3713
    %v3733 = vpack.c.b16 %v3716, %v3715
    %v3734 = vpack.c.b16 %v3718, %v3717
    %3751 = vmatprep.subr.bf16.mxu0 0
    %3752 = vmatpush1.bf16.msra.mxu0 %v3719
    %3753 = vmatprep.subr.bf16.mxu0 0
    %3754 = vmatpush1.bf16.msra.mxu0 %v3720
    %3755 = vmatprep.subr.bf16.mxu0 0
    %3756 = vmatpush1.bf16.msra.mxu0 %v3721
    %3757 = vmatprep.subr.bf16.mxu0 0
    %3758 = vmatpush1.bf16.msra.mxu0 %v3722
    %3759 = vmatprep.subr.bf16.mxu0 0
    %3760 = vmatpush1.bf16.msra.mxu0 %v3723
    %3761 = vmatprep.subr.bf16.mxu0 0
    %3762 = vmatpush1.bf16.msra.mxu0 %v3724
    %3763 = vmatprep.subr.bf16.mxu0 0
    %3764 = vmatpush1.bf16.msra.mxu0 %v3725
    %3765 = vmatprep.subr.bf16.mxu0 0
    %3766 = vmatpush1.bf16.msra.mxu0 %v3726
    %3767 = vmatprep.subr.bf16.mxu0 0
    %3768 = vmatpush1.bf16.msra.mxu0 %v3727
    %3769 = vmatprep.subr.bf16.mxu0 0
    %3770 = vmatpush1.bf16.msra.mxu0 %v3728
    %3771 = vmatprep.subr.bf16.mxu0 0
    %3772 = vmatpush1.bf16.msra.mxu0 %v3729
    %3773 = vmatprep.subr.bf16.mxu0 0
    %3774 = vmatpush1.bf16.msra.mxu0 %v3730
    %3775 = vmatprep.subr.bf16.mxu0 0
    %3776 = vmatpush1.bf16.msra.mxu0 %v3731
    %3777 = vmatprep.subr.bf16.mxu0 0
    %3778 = vmatpush1.bf16.msra.mxu0 %v3732
    %3779 = vmatprep.subr.bf16.mxu0 0
    %3780 = vmatpush1.bf16.msra.mxu0 %v3733
    %3781 = vmatprep.subr.bf16.mxu0 0
    %3782 = vmatpush1.bf16.msra.mxu0 %v3734
    %3783 = vmatprep.mubr.bf16.mxu0 %v3617
    %3784 = vmatmul.mubr.bf16.gmra.mrb[0].mxu0 %v3616
    %v3785 = vpop.f32.mrb[0].mxu0
    %v3786 = vadd.f32 %v3654, %v3785
    %v3787 = vpop.f32.mrb[0].mxu0
    %v3788 = vpop.f32.mrb[0].mxu0
    %v3789 = vadd.f32 %v3654, %v3788
    %v3790 = vpop.f32.mrb[0].mxu0
    %3791 = vdwg.mxu0
    %v3792 = vadd.f32 %v3465, %v3786
    %v3793 = vadd.f32 %v3466, %v3789
    %v3794 = vld [vmem:[%s5 + $0x12] sm:$0x1]
    %v3795 = vld [vmem:[%s5 + $0x13] sm:$0x1]
    %v3796 = vld [vmem:[%s5 + $0x14] sm:$0x1]
    %v3797 = vld [vmem:[%s5 + $0x15] sm:$0x1]
    %v3798 = vld [vmem:[%s5 + $0x16] sm:$0x1]
    %v3799 = vld [vmem:[%s5 + $0x17] sm:$0x1]
    %s3800 = scalar_lea.vmem %s6, 3
    %v3801 = vld [vmem:[%s3800] ss:$4 sm:$0x3]
    %v3802 = vsel %vm40, %v3792, 0.0
    %3803 = vadd.xlane.f32.xlu0 %v3802
    %v3804 = vpop.xlane.xlu0 %3803
    %v3805 = vsel %vm40, %v3793, 0.0
    %3806 = vadd.xlane.f32.xlu0 %v3805
    %v3807 = vpop.xlane.xlu0 %3806
    %v3808 = vmul.f32 %v3804, %v47
    %v3809 = vmul.f32 %v3807, %v47
    %v3810 = vsub.f32 %v3792, %v3808
    %v3811 = vsub.f32 %v3793, %v3809
    %v3812 = vmul.f32 %v3810, %v3810
    %v3813 = vmul.f32 %v3811, %v3811
    %v3814 = vsel %vm40, %v3812, 0.0
    %3815 = vadd.xlane.f32.xlu0 %v3814
    %v3816 = vpop.xlane.xlu0 %3815
    %v3817 = vsel %vm40, %v3813, 0.0
    %3818 = vadd.xlane.f32.xlu0 %v3817
    %v3819 = vpop.xlane.xlu0 %3818
    %v3820 = vmul.f32 %v3816, %v47
    %v3821 = vmul.f32 %v3819, %v47
    %v3822 = vadd.f32 %v3820, 1e-05
    %v3823 = vadd.f32 %v3821, 1e-05
    %v3824 = vrsqrt.pop %v3822
    %v3825 = vrsqrt.pop %v3823
    %v3826 = vmul.f32 %v3810, %v3824
    %v3827 = vmul.f32 %v3811, %v3825
    %v3828 = vlaneseq
    %v3829 = vshrl.u32 %v3828, 7
    %v3830 = vsub.s32 0, %v3829
    %v3831 = vrot.slane %v3794, %v3830
    %v3832 = vmul.f32 %v3826, %v3831
    %v3833 = vmul.f32 %v3827, %v3831
    %v3834 = vlaneseq
    %v3835 = vshrl.u32 %v3834, 7
    %v3836 = vsub.s32 0, %v3835
    %v3837 = vrot.slane %v3795, %v3836
    %v3838 = vadd.f32 %v3832, %v3837
    %v3839 = vadd.f32 %v3833, %v3837
    %v3840 = vpack.c.bf16 %v3839, %v3838
    %s3841 = scalar_lea.vmem %s1, 192
    %v3842 = vld [vmem:[%s3841] sm:$0xff]
    %v3843 = vld [vmem:[%s3841 + $0x8] sm:$0xff]
    %v3844 = vld [vmem:[%s3841 + $0x10] sm:$0xff]
    %v3845 = vld [vmem:[%s3841 + $0x18] sm:$0xff]
    %v3846 = vld [vmem:[%s3841 + $0x20] sm:$0xff]
    %v3847 = vld [vmem:[%s3841 + $0x28] sm:$0xff]
    %v3848 = vld [vmem:[%s3841 + $0x30] sm:$0xff]
    %v3849 = vld [vmem:[%s3841 + $0x38] sm:$0xff]
    %v3858 = vunpack.c.l.b16 %v3842
    %v3859 = vunpack.c.h.b16 %v3842
    %v3860 = vunpack.c.l.b16 %v3843
    %v3861 = vunpack.c.h.b16 %v3843
    %v3862 = vunpack.c.l.b16 %v3844
    %v3863 = vunpack.c.h.b16 %v3844
    %v3864 = vunpack.c.l.b16 %v3845
    %v3865 = vunpack.c.h.b16 %v3845
    %v3866 = vunpack.c.l.b16 %v3846
    %v3867 = vunpack.c.h.b16 %v3846
    %v3868 = vunpack.c.l.b16 %v3847
    %v3869 = vunpack.c.h.b16 %v3847
    %v3870 = vunpack.c.l.b16 %v3848
    %v3871 = vunpack.c.h.b16 %v3848
    %v3872 = vunpack.c.l.b16 %v3849
    %v3873 = vunpack.c.h.b16 %v3849
    %v3874 = vpack.c.b16 %v3860, %v3858
    %v3875 = vpack.c.b16 %v3861, %v3859
    %v3876 = vpack.c.b16 %v3864, %v3862
    %v3877 = vpack.c.b16 %v3865, %v3863
    %v3878 = vpack.c.b16 %v3868, %v3866
    %v3879 = vpack.c.b16 %v3869, %v3867
    %v3880 = vpack.c.b16 %v3872, %v3870
    %v3881 = vpack.c.b16 %v3873, %v3871
    %v3891 = vsel %vm40, %v3840, 0
    %3893 = vmatprep.subr.bf16.mxu0 %v3875
    %3894 = vmatpush1.bf16.msra.mxu0 %v3874
    %3895 = vmatprep.subr.bf16.mxu0 %v3877
    %3896 = vmatpush1.bf16.msra.mxu0 %v3876
    %3897 = vmatprep.subr.bf16.mxu0 %v3879
    %3898 = vmatpush1.bf16.msra.mxu0 %v3878
    %3899 = vmatprep.subr.bf16.mxu0 %v3881
    %3900 = vmatpush1.bf16.msra.mxu0 %v3880
    %3901 = vmatprep.subr.bf16.mxu0 0
    %3902 = vmatpush1.bf16.msra.mxu0 0
    %3903 = vmatprep.subr.bf16.mxu0 0
    %3904 = vmatpush1.bf16.msra.mxu0 0
    %3905 = vmatprep.subr.bf16.mxu0 0
    %3906 = vmatpush1.bf16.msra.mxu0 0
    %3907 = vmatprep.subr.bf16.mxu0 0
    %3908 = vmatpush1.bf16.msra.mxu0 0
    %3909 = vmatprep.subr.bf16.mxu0 0
    %3910 = vmatpush1.bf16.msra.mxu0 0
    %3911 = vmatprep.subr.bf16.mxu0 0
    %3912 = vmatpush1.bf16.msra.mxu0 0
    %3913 = vmatprep.subr.bf16.mxu0 0
    %3914 = vmatpush1.bf16.msra.mxu0 0
    %3915 = vmatprep.subr.bf16.mxu0 0
    %3916 = vmatpush1.bf16.msra.mxu0 0
    %3917 = vmatprep.subr.bf16.mxu0 0
    %3918 = vmatpush1.bf16.msra.mxu0 0
    %3919 = vmatprep.subr.bf16.mxu0 0
    %3920 = vmatpush1.bf16.msra.mxu0 0
    %3921 = vmatprep.subr.bf16.mxu0 0
    %3922 = vmatpush1.bf16.msra.mxu0 0
    %3923 = vmatprep.subr.bf16.mxu0 0
    %3924 = vmatpush1.bf16.msra.mxu0 0
    %3925 = vmatprep.mubr.bf16.mxu0 0
    %3926 = vmatmul.mubr.bf16.gmra.mrb[0].mxu0 %v3891
    %v3927 = vpop.f32.mrb[0].mxu0
    %v3928 = vadd.f32 0.0, %v3927
    %v3929 = vpop.f32.mrb[0].mxu0
    %v3930 = vadd.f32 0.0, %v3929
    %v3931 = vpop.f32.mrb[0].mxu0
    %v3932 = vadd.f32 0.0, %v3931
    %v3933 = vpop.f32.mrb[0].mxu0
    %v3934 = vadd.f32 0.0, %v3933
    %3935 = vdwg.mxu0
    %v3936 = vpack.c.bf16 %v3928, %v3928
    %v3937 = vpack.c.bf16 %v3932, %v3932
    %3939 = vrot.lane.b32.xlu0 %v3936, 64
    %v3940 = vpop.permute.xlu0 %3939
    %v3942 = vsel %vm180, %v3936, 0
    %v3945 = vsel %vm180, %v3940, 0
    %3947 = vmatprep.subr.bf16.mxu0 0
    %3948 = vmatpush1.bf16.xpose.msra.mxu0 %v3945
    %3949 = vmatprep.subr.bf16.mxu0 0
    %3950 = vmatpush1.bf16.xpose.msra.mxu0 0
    %3951 = vmatprep.subr.bf16.mxu0 0
    %3952 = vmatpush1.bf16.xpose.msra.mxu0 0
    %3953 = vmatprep.subr.bf16.mxu0 0
    %3954 = vmatpush1.bf16.xpose.msra.mxu0 0
    %3955 = vmatprep.subr.bf16.mxu0 0
    %3956 = vmatpush1.bf16.xpose.msra.mxu0 0
    %3957 = vmatprep.subr.bf16.mxu0 0
    %3958 = vmatpush1.bf16.xpose.msra.mxu0 0
    %3959 = vmatprep.subr.bf16.mxu0 0
    %3960 = vmatpush1.bf16.xpose.msra.mxu0 0
    %3961 = vmatprep.subr.bf16.mxu0 0
    %3962 = vmatpush1.bf16.xpose.msra.mxu0 0
    %3963 = vmatprep.subr.bf16.mxu0 0
    %3964 = vmatpush1.bf16.xpose.msra.mxu0 0
    %3965 = vmatprep.subr.bf16.mxu0 0
    %3966 = vmatpush1.bf16.xpose.msra.mxu0 0
    %3967 = vmatprep.subr.bf16.mxu0 0
    %3968 = vmatpush1.bf16.xpose.msra.mxu0 0
    %3969 = vmatprep.subr.bf16.mxu0 0
    %3970 = vmatpush1.bf16.xpose.msra.mxu0 0
    %3971 = vmatprep.subr.bf16.mxu0 0
    %3972 = vmatpush1.bf16.xpose.msra.mxu0 0
    %3973 = vmatprep.subr.bf16.mxu0 0
    %3974 = vmatpush1.bf16.xpose.msra.mxu0 0
    %3975 = vmatprep.subr.bf16.mxu0 0
    %3976 = vmatpush1.bf16.xpose.msra.mxu0 0
    %3977 = vmatprep.subr.bf16.mxu0 0
    %3978 = vmatpush1.bf16.xpose.msra.mxu0 0
    %3979 = vmatprep.mubr.bf16.mxu0 0
    %3980 = vmatmul.mubr.bf16.gmra.mrb[0].mxu0 %v3942
    %v3981 = vpop.f32.mrb[0].mxu0
    %v3982 = vadd.f32 0.0, %v3981
    %v3983 = vpop.f32.mrb[0].mxu0
    %v3984 = vpop.f32.mrb[0].mxu0
    %v3985 = vpop.f32.mrb[0].mxu0
    %3986 = vdwg.mxu0
    %3988 = vrot.lane.b32.xlu0 %v3937, 64
    %v3989 = vpop.permute.xlu0 %3988
    %v3991 = vsel %vm180, %v3937, 0
    %v3994 = vsel %vm180, %v3989, 0
    %3996 = vmatprep.subr.bf16.mxu0 0
    %3997 = vmatpush1.bf16.xpose.msra.mxu0 %v3994
    %3998 = vmatprep.subr.bf16.mxu0 0
    %3999 = vmatpush1.bf16.xpose.msra.mxu0 0
    %4000 = vmatprep.subr.bf16.mxu0 0
    %4001 = vmatpush1.bf16.xpose.msra.mxu0 0
    %4002 = vmatprep.subr.bf16.mxu0 0
    %4003 = vmatpush1.bf16.xpose.msra.mxu0 0
    %4004 = vmatprep.subr.bf16.mxu0 0
    %4005 = vmatpush1.bf16.xpose.msra.mxu0 0
    %4006 = vmatprep.subr.bf16.mxu0 0
    %4007 = vmatpush1.bf16.xpose.msra.mxu0 0
    %4008 = vmatprep.subr.bf16.mxu0 0
    %4009 = vmatpush1.bf16.xpose.msra.mxu0 0
    %4010 = vmatprep.subr.bf16.mxu0 0
    %4011 = vmatpush1.bf16.xpose.msra.mxu0 0
    %4012 = vmatprep.subr.bf16.mxu0 0
    %4013 = vmatpush1.bf16.xpose.msra.mxu0 0
    %4014 = vmatprep.subr.bf16.mxu0 0
    %4015 = vmatpush1.bf16.xpose.msra.mxu0 0
    %4016 = vmatprep.subr.bf16.mxu0 0
    %4017 = vmatpush1.bf16.xpose.msra.mxu0 0
    %4018 = vmatprep.subr.bf16.mxu0 0
    %4019 = vmatpush1.bf16.xpose.msra.mxu0 0
    %4020 = vmatprep.subr.bf16.mxu0 0
    %4021 = vmatpush1.bf16.xpose.msra.mxu0 0
    %4022 = vmatprep.subr.bf16.mxu0 0
    %4023 = vmatpush1.bf16.xpose.msra.mxu0 0
    %4024 = vmatprep.subr.bf16.mxu0 0
    %4025 = vmatpush1.bf16.xpose.msra.mxu0 0
    %4026 = vmatprep.subr.bf16.mxu0 0
    %4027 = vmatpush1.bf16.xpose.msra.mxu0 0
    %4028 = vmatprep.mubr.bf16.mxu0 0
    %4029 = vmatmul.mubr.bf16.gmra.mrb[0].mxu0 %v3991
    %v4030 = vpop.f32.mrb[0].mxu0
    %v4031 = vadd.f32 0.0, %v4030
    %v4032 = vpop.f32.mrb[0].mxu0
    %v4033 = vpop.f32.mrb[0].mxu0
    %v4034 = vpop.f32.mrb[0].mxu0
    %4035 = vdwg.mxu0
    %v4036 = vmul.f32 %v3982, 0.17677669
    %v4037 = vmul.f32 %v4031, 0.17677669
    %v4038 = vsel %vm278, %v4036, -inf
    %4039 = vmax.xlane.f32.xlu0 %v4038
    %v4040 = vpop.xlane.xlu0 %4039
    %v4041 = vsel %vm278, %v4037, -inf
    %4042 = vmax.xlane.f32.xlu0 %v4041
    %v4043 = vpop.xlane.xlu0 %4042
    %v4044 = vsub.f32 %v4036, %v4040
    %v4045 = vsub.f32 %v4037, %v4043
    %v4046 = vmul.f32 %v4044, 1.442695
    %v4047 = vpow.pop %v4046
    %v4048 = vmul.f32 %v4045, 1.442695
    %v4049 = vpow.pop %v4048
    %v4050 = vsel %vm278, %v4047, 0.0
    %4051 = vadd.xlane.f32.xlu0 %v4050
    %v4052 = vpop.xlane.xlu0 %4051
    %v4053 = vsel %vm278, %v4049, 0.0
    %4054 = vadd.xlane.f32.xlu0 %v4053
    %v4055 = vpop.xlane.xlu0 %4054
    %v4056 = vrcp.pop %v4052
    %v4057 = vrcp.pop %v4055
    %v4058 = vmul.f32 %v4047, %v4056
    %v4059 = vmul.f32 %v4049, %v4057
    %v4060 = vcombine.high %v4058, 0.0
    %v4062 = vunpack.c.l.s4 1983009808
    %v4063 = vunpack.c.0.s8 %v4062
    %v4064 = vlaneseq
    %v4065 = vshrl.u32 %v4064, 7
    %v4066 = vsub.s32 %v4063, %v4065
    %v4067 = vrot.slane %v4058, %v4066
    %v4069 = vunpack.c.l.s4 1983009808
    %v4070 = vunpack.c.0.s8 %v4069
    %v4071 = vlaneseq
    %v4072 = vshrl.u32 %v4071, 7
    %v4073 = vsub.s32 %v4070, %v4072
    %v4074 = vrot.slane %v4060, %v4073
    %v4075 = vcombine.high %v4059, 0.0
    %v4077 = vunpack.c.l.s4 1983009808
    %v4078 = vunpack.c.0.s8 %v4077
    %v4079 = vlaneseq
    %v4080 = vshrl.u32 %v4079, 7
    %v4081 = vsub.s32 %v4078, %v4080
    %v4082 = vrot.slane %v4059, %v4081
    %v4084 = vunpack.c.l.s4 1983009808
    %v4085 = vunpack.c.0.s8 %v4084
    %v4086 = vlaneseq
    %v4087 = vshrl.u32 %v4086, 7
    %v4088 = vsub.s32 %v4085, %v4087
    %v4089 = vrot.slane %v4075, %v4088
    %v4090 = vcombine.low %v4067, %v4082
    %v4091 = vcombine.high %v4067, %v4082
    %v4093 = vunpack.c.l.s4 1934713408
    %v4094 = vunpack.c.0.s8 %v4093
    %v4095 = vlaneseq
    %v4096 = vshrl.u32 %v4095, 7
    %v4097 = vsub.s32 %v4094, %v4096
    %v4098 = vrot.slane %v4090, %v4097
    %v4100 = vunpack.c.l.s4 1934713408
    %v4101 = vunpack.c.0.s8 %v4100
    %v4102 = vlaneseq
    %v4103 = vshrl.u32 %v4102, 7
    %v4104 = vsub.s32 %v4101, %v4103
    %v4105 = vrot.slane %v4091, %v4104
    %v4106 = vcombine.low %v4074, %v4089
    %v4107 = vcombine.high %v4074, %v4089
    %v4109 = vunpack.c.l.s4 1934713408
    %v4110 = vunpack.c.0.s8 %v4109
    %v4111 = vlaneseq
    %v4112 = vshrl.u32 %v4111, 7
    %v4113 = vsub.s32 %v4110, %v4112
    %v4114 = vrot.slane %v4106, %v4113
    %v4116 = vunpack.c.l.s4 1934713408
    %v4117 = vunpack.c.0.s8 %v4116
    %v4118 = vlaneseq
    %v4119 = vshrl.u32 %v4118, 7
    %v4120 = vsub.s32 %v4117, %v4119
    %v4121 = vrot.slane %v4107, %v4120
    %v4122 = vcombine.high %v4098, 0.0
    %v4123 = vcombine.high %v4105, 0.0
    %v4124 = vcombine.high %v4114, 0.0
    %v4125 = vcombine.high %v4121, 0.0
    %4127 = vrot.lane.b32.xlu0 %v4122, 8
    %v4128 = vpop.permute.xlu0 %4127
    %4131 = vrot.lane.b32.xlu0 %v4105, 16
    %v4132 = vpop.permute.xlu0 %4131
    %4135 = vrot.lane.b32.xlu0 %v4123, 24
    %v4136 = vpop.permute.xlu0 %4135
    %4139 = vrot.lane.b32.xlu0 %v4114, 32
    %v4140 = vpop.permute.xlu0 %4139
    %4143 = vrot.lane.b32.xlu0 %v4124, 40
    %v4144 = vpop.permute.xlu0 %4143
    %4147 = vrot.lane.b32.xlu0 %v4121, 48
    %v4148 = vpop.permute.xlu0 %4147
    %4151 = vrot.lane.b32.xlu0 %v4125, 56
    %v4152 = vpop.permute.xlu0 %4151
    %v4154 = vsel %vm278, %v4098, %v4128
    %v4155 = vsel %vm396, %v4154, %v4132
    %v4156 = vsel %vm398, %v4155, %v4136
    %v4157 = vsel %vm180, %v4156, %v4140
    %v4158 = vsel %vm401, %v4157, %v4144
    %v4159 = vsel %vm403, %v4158, %v4148
    %v4160 = vsel %vm405, %v4159, %v4152
    %s4161 = scalar_lea.vmem [#allocation4], 12
    %4162 = vst.msk [vmem:[%s4161] sm:$0x3] %vm407, %v4160
    %v4163 = vpack.c.bf16 %v4058, %v4058
    %v4164 = vpack.c.bf16 %v4059, %v4059
    %v4165 = vpack.c.bf16 %v3930, %v3930
    %v4166 = vpack.c.bf16 %v3934, %v3934
    %v4168 = vsel %vm278, %v4163, 0
    %v4171 = vsel %vm416, %v4165, 0
    %4173 = vmatprep.subr.bf16.mxu0 0
    %4174 = vmatpush1.bf16.msra.mxu0 %v4171
    %4175 = vmatprep.subr.bf16.mxu0 0
    %4176 = vmatpush1.bf16.msra.mxu0 0
    %4177 = vmatprep.subr.bf16.mxu0 0
    %4178 = vmatpush1.bf16.msra.mxu0 0
    %4179 = vmatprep.subr.bf16.mxu0 0
    %4180 = vmatpush1.bf16.msra.mxu0 0
    %4181 = vmatprep.subr.bf16.mxu0 0
    %4182 = vmatpush1.bf16.msra.mxu0 0
    %4183 = vmatprep.subr.bf16.mxu0 0
    %4184 = vmatpush1.bf16.msra.mxu0 0
    %4185 = vmatprep.subr.bf16.mxu0 0
    %4186 = vmatpush1.bf16.msra.mxu0 0
    %4187 = vmatprep.subr.bf16.mxu0 0
    %4188 = vmatpush1.bf16.msra.mxu0 0
    %4189 = vmatprep.subr.bf16.mxu0 0
    %4190 = vmatpush1.bf16.msra.mxu0 0
    %4191 = vmatprep.subr.bf16.mxu0 0
    %4192 = vmatpush1.bf16.msra.mxu0 0
    %4193 = vmatprep.subr.bf16.mxu0 0
    %4194 = vmatpush1.bf16.msra.mxu0 0
    %4195 = vmatprep.subr.bf16.mxu0 0
    %4196 = vmatpush1.bf16.msra.mxu0 0
    %4197 = vmatprep.subr.bf16.mxu0 0
    %4198 = vmatpush1.bf16.msra.mxu0 0
    %4199 = vmatprep.subr.bf16.mxu0 0
    %4200 = vmatpush1.bf16.msra.mxu0 0
    %4201 = vmatprep.subr.bf16.mxu0 0
    %4202 = vmatpush1.bf16.msra.mxu0 0
    %4203 = vmatprep.subr.bf16.mxu0 0
    %4204 = vmatpush1.bf16.msra.mxu0 0
    %4205 = vmatprep.mubr.bf16.mxu0 0
    %4206 = vmatmul.mubr.bf16.gmra.mrb[0].mxu0 %v4168
    %v4207 = vpop.f32.mrb[0].mxu0
    %v4208 = vadd.f32 0.0, %v4207
    %v4209 = vpop.f32.mrb[0].mxu0
    %v4210 = vpop.f32.mrb[0].mxu0
    %v4211 = vpop.f32.mrb[0].mxu0
    %4212 = vdwg.mxu0
    %v4214 = vsel %vm278, %v4164, 0
    %v4217 = vsel %vm416, %v4166, 0
    %4219 = vmatprep.subr.bf16.mxu0 0
    %4220 = vmatpush1.bf16.msra.mxu0 %v4217
    %4221 = vmatprep.subr.bf16.mxu0 0
    %4222 = vmatpush1.bf16.msra.mxu0 0
    %4223 = vmatprep.subr.bf16.mxu0 0
    %4224 = vmatpush1.bf16.msra.mxu0 0
    %4225 = vmatprep.subr.bf16.mxu0 0
    %4226 = vmatpush1.bf16.msra.mxu0 0
    %4227 = vmatprep.subr.bf16.mxu0 0
    %4228 = vmatpush1.bf16.msra.mxu0 0
    %4229 = vmatprep.subr.bf16.mxu0 0
    %4230 = vmatpush1.bf16.msra.mxu0 0
    %4231 = vmatprep.subr.bf16.mxu0 0
    %4232 = vmatpush1.bf16.msra.mxu0 0
    %4233 = vmatprep.subr.bf16.mxu0 0
    %4234 = vmatpush1.bf16.msra.mxu0 0
    %4235 = vmatprep.subr.bf16.mxu0 0
    %4236 = vmatpush1.bf16.msra.mxu0 0
    %4237 = vmatprep.subr.bf16.mxu0 0
    %4238 = vmatpush1.bf16.msra.mxu0 0
    %4239 = vmatprep.subr.bf16.mxu0 0
    %4240 = vmatpush1.bf16.msra.mxu0 0
    %4241 = vmatprep.subr.bf16.mxu0 0
    %4242 = vmatpush1.bf16.msra.mxu0 0
    %4243 = vmatprep.subr.bf16.mxu0 0
    %4244 = vmatpush1.bf16.msra.mxu0 0
    %4245 = vmatprep.subr.bf16.mxu0 0
    %4246 = vmatpush1.bf16.msra.mxu0 0
    %4247 = vmatprep.subr.bf16.mxu0 0
    %4248 = vmatpush1.bf16.msra.mxu0 0
    %4249 = vmatprep.subr.bf16.mxu0 0
    %4250 = vmatpush1.bf16.msra.mxu0 0
    %4251 = vmatprep.mubr.bf16.mxu0 0
    %4252 = vmatmul.mubr.bf16.gmra.mrb[0].mxu0 %v4214
    %v4253 = vpop.f32.mrb[0].mxu0
    %v4254 = vadd.f32 0.0, %v4253
    %v4255 = vpop.f32.mrb[0].mxu0
    %v4256 = vpop.f32.mrb[0].mxu0
    %v4257 = vpop.f32.mrb[0].mxu0
    %4258 = vdwg.mxu0
    %v4259 = vpack.c.bf16 %v4254, %v4208
    %s4260 = scalar_lea.vmem %s2, 96
    %v4261 = vld [vmem:[%s4260] sm:$0xf]
    %v4262 = vld [vmem:[%s4260 + $0x4] sm:$0xf]
    %v4263 = vld [vmem:[%s4260 + $0x8] sm:$0xf]
    %v4264 = vld [vmem:[%s4260 + $0xc] sm:$0xf]
    %v4269 = vunpack.c.l.b16 %v4261
    %v4270 = vunpack.c.l.b16 %v4262
    %v4271 = vunpack.c.l.b16 %v4263
    %v4272 = vunpack.c.l.b16 %v4264
    %v4273 = vpack.c.b16 %v4270, %v4269
    %v4274 = vpack.c.b16 %v4272, %v4271
    %v4278 = vsel %vm180, %v4259, 0
    %4280 = vmatprep.subr.bf16.mxu0 0
    %4281 = vmatpush1.bf16.msra.mxu0 %v4273
    %4282 = vmatprep.subr.bf16.mxu0 0
    %4283 = vmatpush1.bf16.msra.mxu0 %v4274
    %4284 = vmatprep.subr.bf16.mxu0 0
    %4285 = vmatpush1.bf16.msra.mxu0 0
    %4286 = vmatprep.subr.bf16.mxu0 0
    %4287 = vmatpush1.bf16.msra.mxu0 0
    %4288 = vmatprep.subr.bf16.mxu0 0
    %4289 = vmatpush1.bf16.msra.mxu0 0
    %4290 = vmatprep.subr.bf16.mxu0 0
    %4291 = vmatpush1.bf16.msra.mxu0 0
    %4292 = vmatprep.subr.bf16.mxu0 0
    %4293 = vmatpush1.bf16.msra.mxu0 0
    %4294 = vmatprep.subr.bf16.mxu0 0
    %4295 = vmatpush1.bf16.msra.mxu0 0
    %4296 = vmatprep.subr.bf16.mxu0 0
    %4297 = vmatpush1.bf16.msra.mxu0 0
    %4298 = vmatprep.subr.bf16.mxu0 0
    %4299 = vmatpush1.bf16.msra.mxu0 0
    %4300 = vmatprep.subr.bf16.mxu0 0
    %4301 = vmatpush1.bf16.msra.mxu0 0
    %4302 = vmatprep.subr.bf16.mxu0 0
    %4303 = vmatpush1.bf16.msra.mxu0 0
    %4304 = vmatprep.subr.bf16.mxu0 0
    %4305 = vmatpush1.bf16.msra.mxu0 0
    %4306 = vmatprep.subr.bf16.mxu0 0
    %4307 = vmatpush1.bf16.msra.mxu0 0
    %4308 = vmatprep.subr.bf16.mxu0 0
    %4309 = vmatpush1.bf16.msra.mxu0 0
    %4310 = vmatprep.subr.bf16.mxu0 0
    %4311 = vmatpush1.bf16.msra.mxu0 0
    %4312 = vmatprep.mubr.bf16.mxu0 0
    %4313 = vmatmul.mubr.bf16.gmra.mrb[0].mxu0 %v4278
    %v4314 = vpop.f32.mrb[0].mxu0
    %v4315 = vadd.f32 0.0, %v4314
    %v4316 = vpop.f32.mrb[0].mxu0
    %v4317 = vpop.f32.mrb[0].mxu0
    %v4318 = vadd.f32 0.0, %v4317
    %v4319 = vpop.f32.mrb[0].mxu0
    %4320 = vdwg.mxu0
    %v4321 = vlaneseq
    %v4322 = vshrl.u32 %v4321, 7
    %v4323 = vsub.s32 0, %v4322
    %v4324 = vrot.slane %v3798, %v4323
    %v4325 = vadd.f32 %v4324, %v4315
    %v4326 = vadd.f32 %v4324, %v4318
    %4327 = vrot.lane.b32.xlu0 %v3936, 96
    %v4328 = vpop.permute.xlu0 %4327
    %4329 = vrot.lane.b32.xlu0 %v3936, 32
    %v4330 = vpop.permute.xlu0 %4329
    %v4332 = vsel %vm180, %v4328, 0
    %v4335 = vsel %vm180, %v4330, 0
    %4337 = vmatprep.subr.bf16.mxu0 0
    %4338 = vmatpush1.bf16.xpose.msra.mxu0 %v4335
    %4339 = vmatprep.subr.bf16.mxu0 0
    %4340 = vmatpush1.bf16.xpose.msra.mxu0 0
    %4341 = vmatprep.subr.bf16.mxu0 0
    %4342 = vmatpush1.bf16.xpose.msra.mxu0 0
    %4343 = vmatprep.subr.bf16.mxu0 0
    %4344 = vmatpush1.bf16.xpose.msra.mxu0 0
    %4345 = vmatprep.subr.bf16.mxu0 0
    %4346 = vmatpush1.bf16.xpose.msra.mxu0 0
    %4347 = vmatprep.subr.bf16.mxu0 0
    %4348 = vmatpush1.bf16.xpose.msra.mxu0 0
    %4349 = vmatprep.subr.bf16.mxu0 0
    %4350 = vmatpush1.bf16.xpose.msra.mxu0 0
    %4351 = vmatprep.subr.bf16.mxu0 0
    %4352 = vmatpush1.bf16.xpose.msra.mxu0 0
    %4353 = vmatprep.subr.bf16.mxu0 0
    %4354 = vmatpush1.bf16.xpose.msra.mxu0 0
    %4355 = vmatprep.subr.bf16.mxu0 0
    %4356 = vmatpush1.bf16.xpose.msra.mxu0 0
    %4357 = vmatprep.subr.bf16.mxu0 0
    %4358 = vmatpush1.bf16.xpose.msra.mxu0 0
    %4359 = vmatprep.subr.bf16.mxu0 0
    %4360 = vmatpush1.bf16.xpose.msra.mxu0 0
    %4361 = vmatprep.subr.bf16.mxu0 0
    %4362 = vmatpush1.bf16.xpose.msra.mxu0 0
    %4363 = vmatprep.subr.bf16.mxu0 0
    %4364 = vmatpush1.bf16.xpose.msra.mxu0 0
    %4365 = vmatprep.subr.bf16.mxu0 0
    %4366 = vmatpush1.bf16.xpose.msra.mxu0 0
    %4367 = vmatprep.subr.bf16.mxu0 0
    %4368 = vmatpush1.bf16.xpose.msra.mxu0 0
    %4369 = vmatprep.mubr.bf16.mxu0 0
    %4370 = vmatmul.mubr.bf16.gmra.mrb[0].mxu0 %v4332
    %v4371 = vpop.f32.mrb[0].mxu0
    %v4372 = vadd.f32 0.0, %v4371
    %v4373 = vpop.f32.mrb[0].mxu0
    %v4374 = vpop.f32.mrb[0].mxu0
    %v4375 = vpop.f32.mrb[0].mxu0
    %4376 = vdwg.mxu0
    %4377 = vrot.lane.b32.xlu0 %v3937, 96
    %v4378 = vpop.permute.xlu0 %4377
    %4379 = vrot.lane.b32.xlu0 %v3937, 32
    %v4380 = vpop.permute.xlu0 %4379
    %v4382 = vsel %vm180, %v4378, 0
    %v4385 = vsel %vm180, %v4380, 0
    %4387 = vmatprep.subr.bf16.mxu0 0
    %4388 = vmatpush1.bf16.xpose.msra.mxu0 %v4385
    %4389 = vmatprep.subr.bf16.mxu0 0
    %4390 = vmatpush1.bf16.xpose.msra.mxu0 0
    %4391 = vmatprep.subr.bf16.mxu0 0
    %4392 = vmatpush1.bf16.xpose.msra.mxu0 0
    %4393 = vmatprep.subr.bf16.mxu0 0
    %4394 = vmatpush1.bf16.xpose.msra.mxu0 0
    %4395 = vmatprep.subr.bf16.mxu0 0
    %4396 = vmatpush1.bf16.xpose.msra.mxu0 0
    %4397 = vmatprep.subr.bf16.mxu0 0
    %4398 = vmatpush1.bf16.xpose.msra.mxu0 0
    %4399 = vmatprep.subr.bf16.mxu0 0
    %4400 = vmatpush1.bf16.xpose.msra.mxu0 0
    %4401 = vmatprep.subr.bf16.mxu0 0
    %4402 = vmatpush1.bf16.xpose.msra.mxu0 0
    %4403 = vmatprep.subr.bf16.mxu0 0
    %4404 = vmatpush1.bf16.xpose.msra.mxu0 0
    %4405 = vmatprep.subr.bf16.mxu0 0
    %4406 = vmatpush1.bf16.xpose.msra.mxu0 0
    %4407 = vmatprep.subr.bf16.mxu0 0
    %4408 = vmatpush1.bf16.xpose.msra.mxu0 0
    %4409 = vmatprep.subr.bf16.mxu0 0
    %4410 = vmatpush1.bf16.xpose.msra.mxu0 0
    %4411 = vmatprep.subr.bf16.mxu0 0
    %4412 = vmatpush1.bf16.xpose.msra.mxu0 0
    %4413 = vmatprep.subr.bf16.mxu0 0
    %4414 = vmatpush1.bf16.xpose.msra.mxu0 0
    %4415 = vmatprep.subr.bf16.mxu0 0
    %4416 = vmatpush1.bf16.xpose.msra.mxu0 0
    %4417 = vmatprep.subr.bf16.mxu0 0
    %4418 = vmatpush1.bf16.xpose.msra.mxu0 0
    %4419 = vmatprep.mubr.bf16.mxu0 0
    %4420 = vmatmul.mubr.bf16.gmra.mrb[0].mxu0 %v4382
    %v4421 = vpop.f32.mrb[0].mxu0
    %v4422 = vadd.f32 0.0, %v4421
    %v4423 = vpop.f32.mrb[0].mxu0
    %v4424 = vpop.f32.mrb[0].mxu0
    %v4425 = vpop.f32.mrb[0].mxu0
    %4426 = vdwg.mxu0
    %v4427 = vmul.f32 %v4372, 0.17677669
    %v4428 = vmul.f32 %v4422, 0.17677669
    %v4429 = vsel %vm278, %v4427, -inf
    %4430 = vmax.xlane.f32.xlu0 %v4429
    %v4431 = vpop.xlane.xlu0 %4430
    %v4432 = vsel %vm278, %v4428, -inf
    %4433 = vmax.xlane.f32.xlu0 %v4432
    %v4434 = vpop.xlane.xlu0 %4433
    %v4435 = vsub.f32 %v4427, %v4431
    %v4436 = vsub.f32 %v4428, %v4434
    %v4437 = vmul.f32 %v4435, 1.442695
    %v4438 = vpow.pop %v4437
    %v4439 = vmul.f32 %v4436, 1.442695
    %v4440 = vpow.pop %v4439
    %v4441 = vsel %vm278, %v4438, 0.0
    %4442 = vadd.xlane.f32.xlu0 %v4441
    %v4443 = vpop.xlane.xlu0 %4442
    %v4444 = vsel %vm278, %v4440, 0.0
    %4445 = vadd.xlane.f32.xlu0 %v4444
    %v4446 = vpop.xlane.xlu0 %4445
    %v4447 = vrcp.pop %v4443
    %v4448 = vrcp.pop %v4446
    %v4449 = vmul.f32 %v4438, %v4447
    %v4450 = vmul.f32 %v4440, %v4448
    %v4451 = vcombine.high %v4449, 0.0
    %v4453 = vunpack.c.l.s4 1983009808
    %v4454 = vunpack.c.0.s8 %v4453
    %v4455 = vlaneseq
    %v4456 = vshrl.u32 %v4455, 7
    %v4457 = vsub.s32 %v4454, %v4456
    %v4458 = vrot.slane %v4449, %v4457
    %v4460 = vunpack.c.l.s4 1983009808
    %v4461 = vunpack.c.0.s8 %v4460
    %v4462 = vlaneseq
    %v4463 = vshrl.u32 %v4462, 7
    %v4464 = vsub.s32 %v4461, %v4463
    %v4465 = vrot.slane %v4451, %v4464
    %v4466 = vcombine.high %v4450, 0.0
    %v4468 = vunpack.c.l.s4 1983009808
    %v4469 = vunpack.c.0.s8 %v4468
    %v4470 = vlaneseq
    %v4471 = vshrl.u32 %v4470, 7
    %v4472 = vsub.s32 %v4469, %v4471
    %v4473 = vrot.slane %v4450, %v4472
    %v4475 = vunpack.c.l.s4 1983009808
    %v4476 = vunpack.c.0.s8 %v4475
    %v4477 = vlaneseq
    %v4478 = vshrl.u32 %v4477, 7
    %v4479 = vsub.s32 %v4476, %v4478
    %v4480 = vrot.slane %v4466, %v4479
    %v4481 = vcombine.low %v4458, %v4473
    %v4482 = vcombine.high %v4458, %v4473
    %v4484 = vunpack.c.l.s4 1934713408
    %v4485 = vunpack.c.0.s8 %v4484
    %v4486 = vlaneseq
    %v4487 = vshrl.u32 %v4486, 7
    %v4488 = vsub.s32 %v4485, %v4487
    %v4489 = vrot.slane %v4481, %v4488
    %v4491 = vunpack.c.l.s4 1934713408
    %v4492 = vunpack.c.0.s8 %v4491
    %v4493 = vlaneseq
    %v4494 = vshrl.u32 %v4493, 7
    %v4495 = vsub.s32 %v4492, %v4494
    %v4496 = vrot.slane %v4482, %v4495
    %v4497 = vcombine.low %v4465, %v4480
    %v4498 = vcombine.high %v4465, %v4480
    %v4500 = vunpack.c.l.s4 1934713408
    %v4501 = vunpack.c.0.s8 %v4500
    %v4502 = vlaneseq
    %v4503 = vshrl.u32 %v4502, 7
    %v4504 = vsub.s32 %v4501, %v4503
    %v4505 = vrot.slane %v4497, %v4504
    %v4507 = vunpack.c.l.s4 1934713408
    %v4508 = vunpack.c.0.s8 %v4507
    %v4509 = vlaneseq
    %v4510 = vshrl.u32 %v4509, 7
    %v4511 = vsub.s32 %v4508, %v4510
    %v4512 = vrot.slane %v4498, %v4511
    %v4513 = vcombine.high %v4489, 0.0
    %v4514 = vcombine.high %v4496, 0.0
    %v4515 = vcombine.high %v4505, 0.0
    %v4516 = vcombine.high %v4512, 0.0
    %4518 = vrot.lane.b32.xlu0 %v4513, 8
    %v4519 = vpop.permute.xlu0 %4518
    %4522 = vrot.lane.b32.xlu0 %v4496, 16
    %v4523 = vpop.permute.xlu0 %4522
    %4526 = vrot.lane.b32.xlu0 %v4514, 24
    %v4527 = vpop.permute.xlu0 %4526
    %4530 = vrot.lane.b32.xlu0 %v4505, 32
    %v4531 = vpop.permute.xlu0 %4530
    %4534 = vrot.lane.b32.xlu0 %v4515, 40
    %v4535 = vpop.permute.xlu0 %4534
    %4538 = vrot.lane.b32.xlu0 %v4512, 48
    %v4539 = vpop.permute.xlu0 %4538
    %4542 = vrot.lane.b32.xlu0 %v4516, 56
    %v4543 = vpop.permute.xlu0 %4542
    %v4545 = vsel %vm278, %v4489, %v4519
    %v4546 = vsel %vm396, %v4545, %v4523
    %v4547 = vsel %vm398, %v4546, %v4527
    %v4548 = vsel %vm180, %v4547, %v4531
    %v4549 = vsel %vm401, %v4548, %v4535
    %v4550 = vsel %vm403, %v4549, %v4539
    %v4551 = vsel %vm405, %v4550, %v4543
    %s4552 = scalar_lea.vmem [#allocation4], 14
    %4553 = vst.msk [vmem:[%s4552] sm:$0x3] %vm407, %v4551
    %v4554 = vpack.c.bf16 %v4449, %v4449
    %v4555 = vpack.c.bf16 %v4450, %v4450
    %4557 = vrot.lane.b32.xlu0 %v4165, 96
    %v4558 = vpop.permute.xlu0 %4557
    %v4560 = vsel %vm278, %v4554, 0
    %v4563 = vsel %vm416, %v4558, 0
    %4565 = vmatprep.subr.bf16.mxu0 0
    %4566 = vmatpush1.bf16.msra.mxu0 %v4563
    %4567 = vmatprep.subr.bf16.mxu0 0
    %4568 = vmatpush1.bf16.msra.mxu0 0
    %4569 = vmatprep.subr.bf16.mxu0 0
    %4570 = vmatpush1.bf16.msra.mxu0 0
    %4571 = vmatprep.subr.bf16.mxu0 0
    %4572 = vmatpush1.bf16.msra.mxu0 0
    %4573 = vmatprep.subr.bf16.mxu0 0
    %4574 = vmatpush1.bf16.msra.mxu0 0
    %4575 = vmatprep.subr.bf16.mxu0 0
    %4576 = vmatpush1.bf16.msra.mxu0 0
    %4577 = vmatprep.subr.bf16.mxu0 0
    %4578 = vmatpush1.bf16.msra.mxu0 0
    %4579 = vmatprep.subr.bf16.mxu0 0
    %4580 = vmatpush1.bf16.msra.mxu0 0
    %4581 = vmatprep.subr.bf16.mxu0 0
    %4582 = vmatpush1.bf16.msra.mxu0 0
    %4583 = vmatprep.subr.bf16.mxu0 0
    %4584 = vmatpush1.bf16.msra.mxu0 0
    %4585 = vmatprep.subr.bf16.mxu0 0
    %4586 = vmatpush1.bf16.msra.mxu0 0
    %4587 = vmatprep.subr.bf16.mxu0 0
    %4588 = vmatpush1.bf16.msra.mxu0 0
    %4589 = vmatprep.subr.bf16.mxu0 0
    %4590 = vmatpush1.bf16.msra.mxu0 0
    %4591 = vmatprep.subr.bf16.mxu0 0
    %4592 = vmatpush1.bf16.msra.mxu0 0
    %4593 = vmatprep.subr.bf16.mxu0 0
    %4594 = vmatpush1.bf16.msra.mxu0 0
    %4595 = vmatprep.subr.bf16.mxu0 0
    %4596 = vmatpush1.bf16.msra.mxu0 0
    %4597 = vmatprep.mubr.bf16.mxu0 0
    %4598 = vmatmul.mubr.bf16.gmra.mrb[0].mxu0 %v4560
    %v4599 = vpop.f32.mrb[0].mxu0
    %v4600 = vadd.f32 0.0, %v4599
    %v4601 = vpop.f32.mrb[0].mxu0
    %v4602 = vpop.f32.mrb[0].mxu0
    %v4603 = vpop.f32.mrb[0].mxu0
    %4604 = vdwg.mxu0
    %4606 = vrot.lane.b32.xlu0 %v4166, 96
    %v4607 = vpop.permute.xlu0 %4606
    %v4609 = vsel %vm278, %v4555, 0
    %v4612 = vsel %vm416, %v4607, 0
    %4614 = vmatprep.subr.bf16.mxu0 0
    %4615 = vmatpush1.bf16.msra.mxu0 %v4612
    %4616 = vmatprep.subr.bf16.mxu0 0
    %4617 = vmatpush1.bf16.msra.mxu0 0
    %4618 = vmatprep.subr.bf16.mxu0 0
    %4619 = vmatpush1.bf16.msra.mxu0 0
    %4620 = vmatprep.subr.bf16.mxu0 0
    %4621 = vmatpush1.bf16.msra.mxu0 0
    %4622 = vmatprep.subr.bf16.mxu0 0
    %4623 = vmatpush1.bf16.msra.mxu0 0
    %4624 = vmatprep.subr.bf16.mxu0 0
    %4625 = vmatpush1.bf16.msra.mxu0 0
    %4626 = vmatprep.subr.bf16.mxu0 0
    %4627 = vmatpush1.bf16.msra.mxu0 0
    %4628 = vmatprep.subr.bf16.mxu0 0
    %4629 = vmatpush1.bf16.msra.mxu0 0
    %4630 = vmatprep.subr.bf16.mxu0 0
    %4631 = vmatpush1.bf16.msra.mxu0 0
    %4632 = vmatprep.subr.bf16.mxu0 0
    %4633 = vmatpush1.bf16.msra.mxu0 0
    %4634 = vmatprep.subr.bf16.mxu0 0
    %4635 = vmatpush1.bf16.msra.mxu0 0
    %4636 = vmatprep.subr.bf16.mxu0 0
    %4637 = vmatpush1.bf16.msra.mxu0 0
    %4638 = vmatprep.subr.bf16.mxu0 0
    %4639 = vmatpush1.bf16.msra.mxu0 0
    %4640 = vmatprep.subr.bf16.mxu0 0
    %4641 = vmatpush1.bf16.msra.mxu0 0
    %4642 = vmatprep.subr.bf16.mxu0 0
    %4643 = vmatpush1.bf16.msra.mxu0 0
    %4644 = vmatprep.subr.bf16.mxu0 0
    %4645 = vmatpush1.bf16.msra.mxu0 0
    %4646 = vmatprep.mubr.bf16.mxu0 0
    %4647 = vmatmul.mubr.bf16.gmra.mrb[0].mxu0 %v4609
    %v4648 = vpop.f32.mrb[0].mxu0
    %v4649 = vadd.f32 0.0, %v4648
    %v4650 = vpop.f32.mrb[0].mxu0
    %v4651 = vpop.f32.mrb[0].mxu0
    %v4652 = vpop.f32.mrb[0].mxu0
    %4653 = vdwg.mxu0
    %v4654 = vpack.c.bf16 %v4649, %v4600
    %v4655 = vld [vmem:[%s4260 + $0x10] sm:$0xf]
    %v4656 = vld [vmem:[%s4260 + $0x14] sm:$0xf]
    %v4657 = vld [vmem:[%s4260 + $0x18] sm:$0xf]
    %v4658 = vld [vmem:[%s4260 + $0x1c] sm:$0xf]
    %v4663 = vunpack.c.l.b16 %v4655
    %v4664 = vunpack.c.l.b16 %v4656
    %v4665 = vunpack.c.l.b16 %v4657
    %v4666 = vunpack.c.l.b16 %v4658
    %v4667 = vpack.c.b16 %v4664, %v4663
    %v4668 = vpack.c.b16 %v4666, %v4665
    %v4672 = vsel %vm180, %v4654, 0
    %4674 = vmatprep.subr.bf16.mxu0 0
    %4675 = vmatpush1.bf16.msra.mxu0 %v4667
    %4676 = vmatprep.subr.bf16.mxu0 0
    %4677 = vmatpush1.bf16.msra.mxu0 %v4668
    %4678 = vmatprep.subr.bf16.mxu0 0
    %4679 = vmatpush1.bf16.msra.mxu0 0
    %4680 = vmatprep.subr.bf16.mxu0 0
    %4681 = vmatpush1.bf16.msra.mxu0 0
    %4682 = vmatprep.subr.bf16.mxu0 0
    %4683 = vmatpush1.bf16.msra.mxu0 0
    %4684 = vmatprep.subr.bf16.mxu0 0
    %4685 = vmatpush1.bf16.msra.mxu0 0
    %4686 = vmatprep.subr.bf16.mxu0 0
    %4687 = vmatpush1.bf16.msra.mxu0 0
    %4688 = vmatprep.subr.bf16.mxu0 0
    %4689 = vmatpush1.bf16.msra.mxu0 0
    %4690 = vmatprep.subr.bf16.mxu0 0
    %4691 = vmatpush1.bf16.msra.mxu0 0
    %4692 = vmatprep.subr.bf16.mxu0 0
    %4693 = vmatpush1.bf16.msra.mxu0 0
    %4694 = vmatprep.subr.bf16.mxu0 0
    %4695 = vmatpush1.bf16.msra.mxu0 0
    %4696 = vmatprep.subr.bf16.mxu0 0
    %4697 = vmatpush1.bf16.msra.mxu0 0
    %4698 = vmatprep.subr.bf16.mxu0 0
    %4699 = vmatpush1.bf16.msra.mxu0 0
    %4700 = vmatprep.subr.bf16.mxu0 0
    %4701 = vmatpush1.bf16.msra.mxu0 0
    %4702 = vmatprep.subr.bf16.mxu0 0
    %4703 = vmatpush1.bf16.msra.mxu0 0
    %4704 = vmatprep.subr.bf16.mxu0 0
    %4705 = vmatpush1.bf16.msra.mxu0 0
    %4706 = vmatprep.mubr.bf16.mxu0 0
    %4707 = vmatmul.mubr.bf16.gmra.mrb[0].mxu0 %v4672
    %v4708 = vpop.f32.mrb[0].mxu0
    %v4709 = vadd.f32 0.0, %v4708
    %v4710 = vpop.f32.mrb[0].mxu0
    %v4711 = vpop.f32.mrb[0].mxu0
    %v4712 = vadd.f32 0.0, %v4711
    %v4713 = vpop.f32.mrb[0].mxu0
    %4714 = vdwg.mxu0
    %v4715 = vadd.f32 %v4325, %v4709
    %v4716 = vadd.f32 %v4326, %v4712
    %v4717 = vadd.f32 %v3792, %v4715
    %v4718 = vadd.f32 %v3793, %v4716
    %v4719 = vsel %vm40, %v4717, 0.0
    %4720 = vadd.xlane.f32.xlu0 %v4719
    %v4721 = vpop.xlane.xlu0 %4720
    %v4722 = vsel %vm40, %v4718, 0.0
    %4723 = vadd.xlane.f32.xlu0 %v4722
    %v4724 = vpop.xlane.xlu0 %4723
    %v4725 = vmul.f32 %v4721, %v47
    %v4726 = vmul.f32 %v4724, %v47
    %v4727 = vsub.f32 %v4717, %v4725
    %v4728 = vsub.f32 %v4718, %v4726
    %v4729 = vmul.f32 %v4727, %v4727
    %v4730 = vmul.f32 %v4728, %v4728
    %v4731 = vsel %vm40, %v4729, 0.0
    %4732 = vadd.xlane.f32.xlu0 %v4731
    %v4733 = vpop.xlane.xlu0 %4732
    %v4734 = vsel %vm40, %v4730, 0.0
    %4735 = vadd.xlane.f32.xlu0 %v4734
    %v4736 = vpop.xlane.xlu0 %4735
    %v4737 = vmul.f32 %v4733, %v47
    %v4738 = vmul.f32 %v4736, %v47
    %v4739 = vadd.f32 %v4737, 1e-05
    %v4740 = vadd.f32 %v4738, 1e-05
    %v4741 = vrsqrt.pop %v4739
    %v4742 = vrsqrt.pop %v4740
    %v4743 = vmul.f32 %v4727, %v4741
    %v4744 = vmul.f32 %v4728, %v4742
    %v4745 = vlaneseq
    %v4746 = vshrl.u32 %v4745, 7
    %v4747 = vsub.s32 0, %v4746
    %v4748 = vrot.slane %v3796, %v4747
    %v4749 = vmul.f32 %v4743, %v4748
    %v4750 = vmul.f32 %v4744, %v4748
    %v4751 = vlaneseq
    %v4752 = vshrl.u32 %v4751, 7
    %v4753 = vsub.s32 0, %v4752
    %v4754 = vrot.slane %v3797, %v4753
    %v4755 = vadd.f32 %v4749, %v4754
    %v4756 = vadd.f32 %v4750, %v4754
    %v4757 = vpack.c.bf16 %v4756, %v4755
    %s4758 = scalar_lea.vmem %s3, 192
    %v4759 = vld [vmem:[%s4758] sm:$0xff]
    %v4760 = vld [vmem:[%s4758 + $0x8] sm:$0xff]
    %v4761 = vld [vmem:[%s4758 + $0x10] sm:$0xff]
    %v4762 = vld [vmem:[%s4758 + $0x18] sm:$0xff]
    %v4763 = vld [vmem:[%s4758 + $0x20] sm:$0xff]
    %v4764 = vld [vmem:[%s4758 + $0x28] sm:$0xff]
    %v4765 = vld [vmem:[%s4758 + $0x30] sm:$0xff]
    %v4766 = vld [vmem:[%s4758 + $0x38] sm:$0xff]
    %v4768 = vlaneseq
    %v4769 = vshrl.u32 %v4768, 7
    %v4770 = vsub.s32 0, %v4769
    %v4771 = vrot.slane %v3801, %v4770
    %v4772 = vlaneseq
    %v4773 = vshrl.u32 %v4772, 7
    %v4774 = vsub.s32 1, %v4773
    %v4775 = vrot.slane %v3801, %v4774
    %v4786 = vunpack.c.l.b16 %v4759
    %v4787 = vunpack.c.h.b16 %v4759
    %v4788 = vunpack.c.l.b16 %v4760
    %v4789 = vunpack.c.h.b16 %v4760
    %v4790 = vunpack.c.l.b16 %v4761
    %v4791 = vunpack.c.h.b16 %v4761
    %v4792 = vunpack.c.l.b16 %v4762
    %v4793 = vunpack.c.h.b16 %v4762
    %v4794 = vunpack.c.l.b16 %v4763
    %v4795 = vunpack.c.h.b16 %v4763
    %v4796 = vunpack.c.l.b16 %v4764
    %v4797 = vunpack.c.h.b16 %v4764
    %v4798 = vunpack.c.l.b16 %v4765
    %v4799 = vunpack.c.h.b16 %v4765
    %v4800 = vunpack.c.l.b16 %v4766
    %v4801 = vunpack.c.h.b16 %v4766
    %v4802 = vpack.c.b16 %v4788, %v4786
    %v4803 = vpack.c.b16 %v4789, %v4787
    %v4804 = vpack.c.b16 %v4792, %v4790
    %v4805 = vpack.c.b16 %v4793, %v4791
    %v4806 = vpack.c.b16 %v4796, %v4794
    %v4807 = vpack.c.b16 %v4797, %v4795
    %v4808 = vpack.c.b16 %v4800, %v4798
    %v4809 = vpack.c.b16 %v4801, %v4799
    %v4819 = vsel %vm40, %v4757, 0
    %4821 = vmatprep.subr.bf16.mxu0 %v4803
    %4822 = vmatpush1.bf16.msra.mxu0 %v4802
    %4823 = vmatprep.subr.bf16.mxu0 %v4805
    %4824 = vmatpush1.bf16.msra.mxu0 %v4804
    %4825 = vmatprep.subr.bf16.mxu0 %v4807
    %4826 = vmatpush1.bf16.msra.mxu0 %v4806
    %4827 = vmatprep.subr.bf16.mxu0 %v4809
    %4828 = vmatpush1.bf16.msra.mxu0 %v4808
    %4829 = vmatprep.subr.bf16.mxu0 0
    %4830 = vmatpush1.bf16.msra.mxu0 0
    %4831 = vmatprep.subr.bf16.mxu0 0
    %4832 = vmatpush1.bf16.msra.mxu0 0
    %4833 = vmatprep.subr.bf16.mxu0 0
    %4834 = vmatpush1.bf16.msra.mxu0 0
    %4835 = vmatprep.subr.bf16.mxu0 0
    %4836 = vmatpush1.bf16.msra.mxu0 0
    %4837 = vmatprep.subr.bf16.mxu0 0
    %4838 = vmatpush1.bf16.msra.mxu0 0
    %4839 = vmatprep.subr.bf16.mxu0 0
    %4840 = vmatpush1.bf16.msra.mxu0 0
    %4841 = vmatprep.subr.bf16.mxu0 0
    %4842 = vmatpush1.bf16.msra.mxu0 0
    %4843 = vmatprep.subr.bf16.mxu0 0
    %4844 = vmatpush1.bf16.msra.mxu0 0
    %4845 = vmatprep.subr.bf16.mxu0 0
    %4846 = vmatpush1.bf16.msra.mxu0 0
    %4847 = vmatprep.subr.bf16.mxu0 0
    %4848 = vmatpush1.bf16.msra.mxu0 0
    %4849 = vmatprep.subr.bf16.mxu0 0
    %4850 = vmatpush1.bf16.msra.mxu0 0
    %4851 = vmatprep.subr.bf16.mxu0 0
    %4852 = vmatpush1.bf16.msra.mxu0 0
    %4853 = vmatprep.mubr.bf16.mxu0 0
    %4854 = vmatmul.mubr.bf16.gmra.mrb[0].mxu0 %v4819
    %v4855 = vpop.f32.mrb[0].mxu0
    %v4856 = vadd.f32 %v4771, %v4855
    %v4857 = vpop.f32.mrb[0].mxu0
    %v4858 = vadd.f32 %v4775, %v4857
    %v4859 = vpop.f32.mrb[0].mxu0
    %v4860 = vadd.f32 %v4771, %v4859
    %v4861 = vpop.f32.mrb[0].mxu0
    %v4862 = vadd.f32 %v4775, %v4861
    %4863 = vdwg.mxu0
    %v4864 = vmax.f32 %v4856, 0.0
    %v4865 = vmax.f32 %v4858, 0.0
    %v4866 = vmax.f32 %v4860, 0.0
    %v4867 = vmax.f32 %v4862, 0.0
    %v4868 = vpack.c.bf16 %v4866, %v4864
    %v4869 = vpack.c.bf16 %v4867, %v4865
    %s4870 = scalar_lea.vmem %s4, 384
    %v4871 = vld [vmem:[%s4870] sm:$0xf]
    %v4872 = vld [vmem:[%s4870 + $0x4] sm:$0xf]
    %v4873 = vld [vmem:[%s4870 + $0x8] sm:$0xf]
    %v4874 = vld [vmem:[%s4870 + $0xc] sm:$0xf]
    %v4875 = vld [vmem:[%s4870 + $0x10] sm:$0xf]
    %v4876 = vld [vmem:[%s4870 + $0x14] sm:$0xf]
    %v4877 = vld [vmem:[%s4870 + $0x18] sm:$0xf]
    %v4878 = vld [vmem:[%s4870 + $0x1c] sm:$0xf]
    %v4879 = vld [vmem:[%s4870 + $0x20] sm:$0xf]
    %v4880 = vld [vmem:[%s4870 + $0x24] sm:$0xf]
    %v4881 = vld [vmem:[%s4870 + $0x28] sm:$0xf]
    %v4882 = vld [vmem:[%s4870 + $0x2c] sm:$0xf]
    %v4883 = vld [vmem:[%s4870 + $0x30] sm:$0xf]
    %v4884 = vld [vmem:[%s4870 + $0x34] sm:$0xf]
    %v4885 = vld [vmem:[%s4870 + $0x38] sm:$0xf]
    %v4886 = vld [vmem:[%s4870 + $0x3c] sm:$0xf]
    %v4887 = vld [vmem:[%s4870 + $0x40] sm:$0xf]
    %v4888 = vld [vmem:[%s4870 + $0x44] sm:$0xf]
    %v4889 = vld [vmem:[%s4870 + $0x48] sm:$0xf]
    %v4890 = vld [vmem:[%s4870 + $0x4c] sm:$0xf]
    %v4891 = vld [vmem:[%s4870 + $0x50] sm:$0xf]
    %v4892 = vld [vmem:[%s4870 + $0x54] sm:$0xf]
    %v4893 = vld [vmem:[%s4870 + $0x58] sm:$0xf]
    %v4894 = vld [vmem:[%s4870 + $0x5c] sm:$0xf]
    %v4895 = vld [vmem:[%s4870 + $0x60] sm:$0xf]
    %v4896 = vld [vmem:[%s4870 + $0x64] sm:$0xf]
    %v4897 = vld [vmem:[%s4870 + $0x68] sm:$0xf]
    %v4898 = vld [vmem:[%s4870 + $0x6c] sm:$0xf]
    %v4899 = vld [vmem:[%s4870 + $0x70] sm:$0xf]
    %v4900 = vld [vmem:[%s4870 + $0x74] sm:$0xf]
    %v4901 = vld [vmem:[%s4870 + $0x78] sm:$0xf]
    %v4902 = vld [vmem:[%s4870 + $0x7c] sm:$0xf]
    %v4903 = vlaneseq
    %v4904 = vshrl.u32 %v4903, 7
    %v4905 = vsub.s32 0, %v4904
    %v4906 = vrot.slane %v3799, %v4905
    %v4939 = vunpack.c.l.b16 %v4871
    %v4940 = vunpack.c.l.b16 %v4872
    %v4941 = vunpack.c.l.b16 %v4873
    %v4942 = vunpack.c.l.b16 %v4874
    %v4943 = vunpack.c.l.b16 %v4875
    %v4944 = vunpack.c.l.b16 %v4876
    %v4945 = vunpack.c.l.b16 %v4877
    %v4946 = vunpack.c.l.b16 %v4878
    %v4947 = vunpack.c.l.b16 %v4879
    %v4948 = vunpack.c.l.b16 %v4880
    %v4949 = vunpack.c.l.b16 %v4881
    %v4950 = vunpack.c.l.b16 %v4882
    %v4951 = vunpack.c.l.b16 %v4883
    %v4952 = vunpack.c.l.b16 %v4884
    %v4953 = vunpack.c.l.b16 %v4885
    %v4954 = vunpack.c.l.b16 %v4886
    %v4955 = vunpack.c.l.b16 %v4887
    %v4956 = vunpack.c.l.b16 %v4888
    %v4957 = vunpack.c.l.b16 %v4889
    %v4958 = vunpack.c.l.b16 %v4890
    %v4959 = vunpack.c.l.b16 %v4891
    %v4960 = vunpack.c.l.b16 %v4892
    %v4961 = vunpack.c.l.b16 %v4893
    %v4962 = vunpack.c.l.b16 %v4894
    %v4963 = vunpack.c.l.b16 %v4895
    %v4964 = vunpack.c.l.b16 %v4896
    %v4965 = vunpack.c.l.b16 %v4897
    %v4966 = vunpack.c.l.b16 %v4898
    %v4967 = vunpack.c.l.b16 %v4899
    %v4968 = vunpack.c.l.b16 %v4900
    %v4969 = vunpack.c.l.b16 %v4901
    %v4970 = vunpack.c.l.b16 %v4902
    %v4971 = vpack.c.b16 %v4940, %v4939
    %v4972 = vpack.c.b16 %v4942, %v4941
    %v4973 = vpack.c.b16 %v4944, %v4943
    %v4974 = vpack.c.b16 %v4946, %v4945
    %v4975 = vpack.c.b16 %v4948, %v4947
    %v4976 = vpack.c.b16 %v4950, %v4949
    %v4977 = vpack.c.b16 %v4952, %v4951
    %v4978 = vpack.c.b16 %v4954, %v4953
    %v4979 = vpack.c.b16 %v4956, %v4955
    %v4980 = vpack.c.b16 %v4958, %v4957
    %v4981 = vpack.c.b16 %v4960, %v4959
    %v4982 = vpack.c.b16 %v4962, %v4961
    %v4983 = vpack.c.b16 %v4964, %v4963
    %v4984 = vpack.c.b16 %v4966, %v4965
    %v4985 = vpack.c.b16 %v4968, %v4967
    %v4986 = vpack.c.b16 %v4970, %v4969
    %5003 = vmatprep.subr.bf16.mxu0 0
    %5004 = vmatpush1.bf16.msra.mxu0 %v4971
    %5005 = vmatprep.subr.bf16.mxu0 0
    %5006 = vmatpush1.bf16.msra.mxu0 %v4972
    %5007 = vmatprep.subr.bf16.mxu0 0
    %5008 = vmatpush1.bf16.msra.mxu0 %v4973
    %5009 = vmatprep.subr.bf16.mxu0 0
    %5010 = vmatpush1.bf16.msra.mxu0 %v4974
    %5011 = vmatprep.subr.bf16.mxu0 0
    %5012 = vmatpush1.bf16.msra.mxu0 %v4975
    %5013 = vmatprep.subr.bf16.mxu0 0
    %5014 = vmatpush1.bf16.msra.mxu0 %v4976
    %5015 = vmatprep.subr.bf16.mxu0 0
    %5016 = vmatpush1.bf16.msra.mxu0 %v4977
    %5017 = vmatprep.subr.bf16.mxu0 0
    %5018 = vmatpush1.bf16.msra.mxu0 %v4978
    %5019 = vmatprep.subr.bf16.mxu0 0
    %5020 = vmatpush1.bf16.msra.mxu0 %v4979
    %5021 = vmatprep.subr.bf16.mxu0 0
    %5022 = vmatpush1.bf16.msra.mxu0 %v4980
    %5023 = vmatprep.subr.bf16.mxu0 0
    %5024 = vmatpush1.bf16.msra.mxu0 %v4981
    %5025 = vmatprep.subr.bf16.mxu0 0
    %5026 = vmatpush1.bf16.msra.mxu0 %v4982
    %5027 = vmatprep.subr.bf16.mxu0 0
    %5028 = vmatpush1.bf16.msra.mxu0 %v4983
    %5029 = vmatprep.subr.bf16.mxu0 0
    %5030 = vmatpush1.bf16.msra.mxu0 %v4984
    %5031 = vmatprep.subr.bf16.mxu0 0
    %5032 = vmatpush1.bf16.msra.mxu0 %v4985
    %5033 = vmatprep.subr.bf16.mxu0 0
    %5034 = vmatpush1.bf16.msra.mxu0 %v4986
    %5035 = vmatprep.mubr.bf16.mxu0 %v4869
    %5036 = vmatmul.mubr.bf16.gmra.mrb[0].mxu0 %v4868
    %v5037 = vpop.f32.mrb[0].mxu0
    %v5038 = vadd.f32 %v4906, %v5037
    %v5039 = vpop.f32.mrb[0].mxu0
    %v5040 = vpop.f32.mrb[0].mxu0
    %v5041 = vadd.f32 %v4906, %v5040
    %v5042 = vpop.f32.mrb[0].mxu0
    %5043 = vdwg.mxu0
    %v5044 = vadd.f32 %v4717, %v5038
    %v5045 = vadd.f32 %v4718, %v5041
    %v5046 = vld [vmem:[%s5 + $0x18] sm:$0x1]
    %v5047 = vld [vmem:[%s5 + $0x19] sm:$0x1]
    %v5048 = vsel %vm40, %v5044, 0.0
    %5049 = vadd.xlane.f32.xlu0 %v5048
    %v5050 = vpop.xlane.xlu0 %5049
    %v5051 = vsel %vm40, %v5045, 0.0
    %5052 = vadd.xlane.f32.xlu0 %v5051
    %v5053 = vpop.xlane.xlu0 %5052
    %v5054 = vmul.f32 %v5050, %v47
    %v5055 = vmul.f32 %v5053, %v47
    %v5056 = vsub.f32 %v5044, %v5054
    %v5057 = vsub.f32 %v5045, %v5055
    %v5058 = vmul.f32 %v5056, %v5056
    %v5059 = vmul.f32 %v5057, %v5057
    %v5060 = vsel %vm40, %v5058, 0.0
    %5061 = vadd.xlane.f32.xlu0 %v5060
    %v5062 = vpop.xlane.xlu0 %5061
    %v5063 = vsel %vm40, %v5059, 0.0
    %5064 = vadd.xlane.f32.xlu0 %v5063
    %v5065 = vpop.xlane.xlu0 %5064
    %v5066 = vmul.f32 %v5062, %v47
    %v5067 = vmul.f32 %v5065, %v47
    %v5068 = vadd.f32 %v5066, 1e-05
    %v5069 = vadd.f32 %v5067, 1e-05
    %v5070 = vrsqrt.pop %v5068
    %v5071 = vrsqrt.pop %v5069
    %v5072 = vmul.f32 %v5056, %v5070
    %v5073 = vmul.f32 %v5057, %v5071
    %v5074 = vlaneseq
    %v5075 = vshrl.u32 %v5074, 7
    %v5076 = vsub.s32 0, %v5075
    %v5077 = vrot.slane %v5046, %v5076
    %v5078 = vmul.f32 %v5072, %v5077
    %v5079 = vmul.f32 %v5073, %v5077
    %v5080 = vlaneseq
    %v5081 = vshrl.u32 %v5080, 7
    %v5082 = vsub.s32 0, %v5081
    %v5083 = vrot.slane %v5047, %v5082
    %v5084 = vadd.f32 %v5078, %v5083
    %v5085 = vadd.f32 %v5079, %v5083
    %v5086 = vsel %vm40, %v5084, 0.0
    %v5087 = vrot.slane %v5086, 4
    %v5088 = vadd.f32 %v5086, %v5087
    %v5089 = vrot.slane %v5088, 2
    %v5090 = vadd.f32 %v5088, %v5089
    %v5091 = vrot.slane %v5090, 1
    %v5092 = vadd.f32 %v5090, %v5091
    %v5093 = vsel %vm40, %v5085, 0.0
    %v5094 = vrot.slane %v5093, 4
    %v5095 = vadd.f32 %v5093, %v5094
    %v5096 = vrot.slane %v5095, 2
    %v5097 = vadd.f32 %v5095, %v5096
    %v5098 = vrot.slane %v5097, 1
    %v5099 = vadd.f32 %v5097, %v5098
    %v5100 = vrcp.pop 8.0
    %v5101 = vmul.f32 %v5092, %v5100
    %v5102 = vmul.f32 %v5099, %v5100
    %vm5105 = vcmask 1041409
    %v5106 = vsel %vm5105, %v5102, %v5101
    %5108 = vst.msk [vmem:[#allocation2] sm:$0x3] %vm407, %v5106
    // Predicated region
    $region30: #{tpu_custom_call.1} parent=1 // pred_check
      _
    $region31: #{tpu_custom_call.1} parent=1 // pred_check_branch
      %5110 = sbr.rel (0) target = $region33
    $region32: #{tpu_custom_call.1} parent=1 // pred_region
      %s5112 = ssub.s32 32, 32
      %5113 = vsyncadd [#allocation3], %s5112
      %s5115 = sshll.u32 [#allocation2], 4
      %s5116 = int_to_ptr.vmem [resolvable:$true] %s5115
      %5118 = dma.vmem_to_hbm [thread:$0]  %s5116, 32, %s7, [#allocation3]
    $region33: #{tpu_custom_call.1} parent=1 // pred_fallthru
      _
    // Predicated region
    $region34: #{tpu_custom_call.1} parent=1 // pred_check
      _
    $region35: #{tpu_custom_call.1} parent=1 // pred_check_branch
      %5120 = sbr.rel (0) target = $region37
    $region36: #{tpu_custom_call.1} parent=1 // pred_region
      %s5122 = ssub.s32 256, 256
      %5123 = vsyncadd [#allocation5], %s5122
      %s5124 = sshll.u32 [#allocation4], 4
      %s5125 = int_to_ptr.vmem [resolvable:$true] %s5124
      %5130 = dma.vmem_to_hbm [thread:$0]  %s5125, 256, %s8, [#allocation5], 32, 32, 2
    $region37: #{tpu_custom_call.1} parent=1 // pred_fallthru
      _
    // Predicated region
    $region38: #{tpu_custom_call.1} parent=1 // pred_check
      _
    $region39: #{tpu_custom_call.1} parent=1 // pred_check_branch
      %5132 = sbr.rel (0) target = $region41
    $region40: #{tpu_custom_call.1} parent=1 // pred_region
      %5133 = dma.done [#allocation3], 32
    $region41: #{tpu_custom_call.1} parent=1 // pred_fallthru
      _
    // Predicated region
    $region42: #{tpu_custom_call.1} parent=1 // pred_check
      _
    $region43: #{tpu_custom_call.1} parent=1 // pred_check_branch
      %5135 = sbr.rel (0) target = $region45
    $region44: #{tpu_custom_call.1} parent=1 // pred_region
      %5136 = dma.done [#allocation5], 256
    $region45: #{tpu_custom_call.1} parent=1 // pred_fallthru
      _
    %5137 = vsyncpa [#allocation3], 1
    %5138 = vsyncpa [#allocation5], 1

</llo_original>
